<compile_context>
chip_gen: v7x
topology: tpu7x:2x2x1
jax: 0.10.0
libtpu: 0.0.40
codegen_flags: <defaults>
</compile_context>

<pallas_src>
import functools
import math

import jax
import jax.numpy as jnp
from jax.experimental import pallas as pl
from jax.experimental.pallas import tpu as pltpu

# ---------------- config ----------------
N_VOCAB = 40
HIDDEN = 32          # hidden_channels
FILTER = 64          # filter_channels (encoder FFN)
FILTER_DP = 64       # filter_channels_dp (duration predictor)
N_HEADS = 2
N_LAYERS = 2
KERNEL_SIZE = 3
OUT_CHANNELS = 16
GIN_CHANNELS = 8
LN_EPS = 1e-4        # glowTTS channel LayerNorm eps
OUT_W = 128          # lane-dense packed output width (x_m | x_logs | logw | pad)

_RECIP = pl.reciprocal if hasattr(pl, "reciprocal") else (lambda x, approx=False: 1.0 / x)


# ---------------- fused per-batch kernel ----------------
def _text_encoder_kernel(
    # scalar prefetch (SMEM)
    lens_ref,
    # VMEM inputs (per-batch blocks: tok, g; whole arrays: weights)
    tok_ref, g_ref, emb_ref,
    wqkv_ref, bqkv_ref, wo_ref, bo_ref, ln1g_ref, ln1b_ref,
    fw1_ref, fb1_ref, fw2_ref, fb2_ref, ln2g_ref, ln2b_ref,
    wms_ref, bms_ref,
    dpw1x_ref, dpw1g_ref, dpb1_ref, dpg1_ref, dpbe1_ref,
    dpw2_ref, dpb2_ref, dpg2_ref, dpbe2_ref,
    dpwp_ref, dpbp_ref,
    # outputs
    out_ref,
    # scratch
    attn_scr,
    *, T, H, NH, L, V, PAD):
  f32 = jnp.float32
  bf16 = jnp.bfloat16
  dk = H // NH
  scale = 1.0 / math.sqrt(dk)
  b = pl.program_id(0)
  length = lens_ref[b]

  def mm(a, w):
    # bf16 MXU matmul with f32 accumulation.
    return jnp.dot(a.astype(bf16), w.astype(bf16), preferred_element_type=f32)

  def layer_norm(v, gamma, beta):
    # glowTTS LayerNorm over the channel axis (last axis here), f32 math.
    mean = jnp.mean(v, axis=-1, keepdims=True)
    var = jnp.mean(jnp.square(v - mean), axis=-1, keepdims=True)
    return (v - mean) * jax.lax.rsqrt(var + LN_EPS) * gamma + beta

  # ---- per-batch masks, built ONCE (hoisted out of the layer/head loops) ----
  t_iota = jax.lax.broadcasted_iota(jnp.int32, (T, 1), 0)
  mask_col = (t_iota < length).astype(f32)                           # (T, 1)
  not_first = (t_iota >= 1).astype(f32)                              # 0 at t==0
  not_last = (t_iota <= T - 2).astype(f32)                           # 0 at t==T-1
  m_prev = jnp.logical_and(t_iota >= 1, t_iota <= length).astype(f32)   # mask[t-1]
  m_next = ((t_iota + 1) < length).astype(f32)                           # mask[t+1]
  rT = jax.lax.broadcasted_iota(jnp.int32, (T, T), 0)
  cT = jax.lax.broadcasted_iota(jnp.int32, (T, T), 1)
  valid = jnp.logical_and(rT < length, cT < length)                  # attn mask

  # ---- +/-1 time shift on the XLU (sublane roll), zeroed at the boundary ----
  def tprev(v):  # v[t-1], zero at t==0  ('same' zero padding)
    return pltpu.roll(v, shift=1, axis=0) * not_first

  def tnext(v):  # v[t+1], zero at t==T-1
    return pltpu.roll(v, shift=T - 1, axis=0) * not_last

  def conv3(xin, w, bias):
    # k=3 'same' conv as ONE tap-fused matmul: [x(t-1)|x(t)|x(t+1)] @ (3*Cin, Cout)
    xcat = jnp.concatenate([tprev(xin), xin, tnext(xin)], axis=1)
    return mm(xcat, w) + bias

  # ---- embedding lookup as bf16 one-hot matmul (sqrt(H) folded into table) ----
  # TODO(synk): for large vocab, switch to a scalar-prefetch-driven row gather.
  onehot = (tok_ref[...] ==
            jax.lax.broadcasted_iota(jnp.int32, (T, V), 1)).astype(bf16)
  x = jnp.dot(onehot, emb_ref[...], preferred_element_type=f32)      # (T, H)

  # ---- encoder: [MHSA -> LN -> FFN(conv3,relu,conv3) -> LN] x L ----
  for l in range(L):
    xm = x * mask_col
    qkv = mm(xm, wqkv_ref[l]) + bqkv_ref[l]                          # (T, 3H)
    for h in range(NH):
      q = qkv[:, h * dk:(h + 1) * dk] * scale
      k = qkv[:, H + h * dk:H + (h + 1) * dk]
      v = qkv[:, 2 * H + h * dk:2 * H + (h + 1) * dk]
      s = jax.lax.dot_general(q.astype(bf16), k.astype(bf16),
                              (((1,), (1,)), ((), ())),
                              preferred_element_type=f32)            # q @ k^T
      s = jnp.where(valid, s, -1e4)
      p = jnp.exp(s - jnp.max(s, axis=-1, keepdims=True))
      p = p * _RECIP(jnp.sum(p, axis=-1, keepdims=True), approx=True)
      # head result goes straight into a resident VMEM scratch (no concat)
      attn_scr[:, h * dk:(h + 1) * dk] = mm(p, v)

    x = layer_norm(xm + mm(attn_scr[...], wo_ref[l]) + bo_ref[l],
                   ln1g_ref[l], ln1b_ref[l])

    h1 = jnp.maximum(conv3(x * mask_col, fw1_ref[l], fb1_ref[l]), 0.0)
    h2 = conv3(h1 * mask_col, fw2_ref[l], fb2_ref[l])
    x = layer_norm(x + h2 * mask_col, ln2g_ref[l], ln2b_ref[l])

  x = x * mask_col

  # ---- proj_m | proj_s fused into one (T, 2*OUT) matmul ----
  ms = (mm(x, wms_ref[...]) + bms_ref[...]) * mask_col               # (T, 2*OUT)

  # ---- duration predictor on [detach(x) ; g]  (detach == identity fwd) ----
  # dp conv-1 is split: x part via the tap-fused conv, g part as per-batch
  # g@Wg (one tiny matmul per tap) broadcast over T with the shifted masks.
  # TODO(synk): modules.Conv1DBlock source not provided; implemented as the
  # standard glowTTS conv -> relu -> channel-LayerNorm -> dropout(id) block.
  g_row = g_ref[0]                                                   # (1, GIN)
  xcat = jnp.concatenate([tprev(x), x, tnext(x)], axis=1)            # (T, 3H)
  hdp = (mm(xcat, dpw1x_ref[...])
         + m_prev * mm(g_row, dpw1g_ref[0])
         + mask_col * mm(g_row, dpw1g_ref[1])
         + m_next * mm(g_row, dpw1g_ref[2])
         + dpb1_ref[...])
  hdp = layer_norm(jnp.maximum(hdp, 0.0), dpg1_ref[...], dpbe1_ref[...])
  hdp = layer_norm(jnp.maximum(conv3(hdp * mask_col, dpw2_ref[...],
                                     dpb2_ref[...]), 0.0),
                   dpg2_ref[...], dpbe2_ref[...])
  hdp = hdp * mask_col
  # 1-channel projection as VPU multiply + lane reduction (no (T,1) matmul).
  logw = jnp.sum(hdp * dpwp_ref[...], axis=1, keepdims=True) + dpbp_ref[...]

  # ---- single lane-dense (T, 128) store: [x_m | x_logs | logw | zero pad] ----
  out_ref[...] = jnp.concatenate(
      [ms, logw, jnp.zeros((T, PAD), f32)], axis=1)


# ---------------- wrapper ----------------
def _const_spec(shape):
  rank = len(shape)
  return pl.BlockSpec(shape, lambda *_: (0,) * rank)   # weights: VMEM-resident


def text_encoder_forward(params, x_tokens, x_lengths, g):
  B, T = x_tokens.shape
  BT = B * T
  pad = OUT_W - 2 * OUT_CHANNELS - 1

  tok = x_tokens.reshape(BT, 1).astype(jnp.int32)
  g3 = g.reshape(B, 1, GIN_CHANNELS).astype(jnp.float32)

  weights = [
      params["emb"],
      params["wqkv"], params["bqkv"], params["wo"], params["bo"],
      params["ln1g"], params["ln1b"],
      params["fw1"], params["fb1"], params["fw2"], params["fb2"],
      params["ln2g"], params["ln2b"],
      params["wms"], params["bms"],
      params["dpw1x"], params["dpw1g"], params["dpb1"], params["dpg1"],
      params["dpbe1"],
      params["dpw2"], params["dpb2"], params["dpg2"], params["dpbe2"],
      params["dpwp"], params["dpbp"],
  ]

  in_specs = [
      pl.BlockSpec((T, 1), lambda b, lens: (b, 0)),                 # tokens
      pl.BlockSpec((1, 1, GIN_CHANNELS), lambda b, lens: (b, 0, 0)),  # g
  ] + [_const_spec(w.shape) for w in weights]
  # NOTE: when the weights grow, add pipeline_mode=pl.Buffered(1) to the weight
  # specs (they never change across grid steps) to halve their VMEM footprint.

  kern = functools.partial(_text_encoder_kernel, T=T, H=HIDDEN, NH=N_HEADS,
                           L=N_LAYERS, V=N_VOCAB, PAD=pad)

  out = pl.pallas_call(
      kern,
      out_shape=jax.ShapeDtypeStruct((BT, OUT_W), jnp.float32),
      grid_spec=pltpu.PrefetchScalarGridSpec(
          num_scalar_prefetch=1,          # x_lengths -> SMEM, masks built in-kernel
          grid=(B,),                      # one batch element per grid step
          in_specs=in_specs,
          out_specs=pl.BlockSpec((T, OUT_W), lambda b, lens: (b, 0)),
          scratch_shapes=[pltpu.VMEM((T, HIDDEN), jnp.float32)],     # attn heads
      ),
      compiler_params=pltpu.CompilerParams(
          dimension_semantics=("parallel",),       # both TCs on v7x
          vmem_limit_bytes=32 * 1024 * 1024),      # explicit guard (<< physical)
  )(x_lengths.astype(jnp.int32), tok, g3, *weights)

  # unpack the lane-dense slab back to PyTorch (B, C, T) layout (tiny XLA glue)
  x_m = out[:, :OUT_CHANNELS].reshape(B, T, OUT_CHANNELS).transpose(0, 2, 1)
  x_logs = out[:, OUT_CHANNELS:2 * OUT_CHANNELS].reshape(
      B, T, OUT_CHANNELS).transpose(0, 2, 1)
  logw_out = out[:, 2 * OUT_CHANNELS:2 * OUT_CHANNELS + 1].reshape(
      B, T, 1).transpose(0, 2, 1)
  x_mask = (jnp.arange(T)[None, :] < x_lengths[:, None]
            ).astype(jnp.float32)[:, None, :]
  return x_m, x_logs, logw_out, x_mask


# ---------------- parameters ----------------
def init_params(key):
  keys = iter(jax.random.split(key, 40))
  bf16 = jnp.bfloat16

  def nrm(shape, scale=0.1, dtype=jnp.float32):
    return (scale * jax.random.normal(next(keys), shape, jnp.float32)).astype(dtype)

  L, H, F, FDP = N_LAYERS, HIDDEN, FILTER, FILTER_DP
  p = {}
  # nn.Embedding(n_vocab, hidden), init N(0, H^-0.5); the forward's *sqrt(H)
  # is folded into the table (mathematically identical).
  p["emb"] = ((H ** -0.5) * math.sqrt(H) *
              jax.random.normal(next(keys), (N_VOCAB, H), jnp.float32)).astype(bf16)
  # fused conv_q|conv_k|conv_v (k=1 convs == matmuls), stacked over layers
  p["wqkv"] = nrm((L, H, 3 * H), dtype=bf16)
  p["bqkv"] = jnp.zeros((L, 1, 3 * H), jnp.float32)
  p["wo"] = nrm((L, H, H), dtype=bf16)
  p["bo"] = jnp.zeros((L, 1, H), jnp.float32)
  p["ln1g"] = jnp.ones((L, 1, H), jnp.float32)
  p["ln1b"] = jnp.zeros((L, 1, H), jnp.float32)
  # FFN k=3 convs, taps fused along the contraction: (L, 3*Cin, Cout);
  # rows [0:Cin) act on x[t-1], [Cin:2Cin) on x[t], [2Cin:3Cin) on x[t+1].
  p["fw1"] = nrm((L, 3 * H, F), dtype=bf16)
  p["fb1"] = jnp.zeros((L, 1, F), jnp.float32)
  p["fw2"] = nrm((L, 3 * F, H), dtype=bf16)
  p["fb2"] = jnp.zeros((L, 1, H), jnp.float32)
  p["ln2g"] = jnp.ones((L, 1, H), jnp.float32)
  p["ln2b"] = jnp.zeros((L, 1, H), jnp.float32)
  # proj_m and proj_s fused into one (H, 2*OUT) matmul
  p["wms"] = nrm((H, 2 * OUT_CHANNELS), dtype=bf16)
  p["bms"] = jnp.zeros((1, 2 * OUT_CHANNELS), jnp.float32)
  # duration predictor: conv-1 split into x part (tap-fused) and per-tap g part
  p["dpw1x"] = nrm((3 * H, FDP), dtype=bf16)
  p["dpw1g"] = nrm((KERNEL_SIZE, GIN_CHANNELS, FDP), dtype=bf16)
  p["dpb1"] = jnp.zeros((1, FDP), jnp.float32)
  p["dpg1"] = jnp.ones((1, FDP), jnp.float32)
  p["dpbe1"] = jnp.zeros((1, FDP), jnp.float32)
  p["dpw2"] = nrm((3 * FDP, FDP), dtype=bf16)
  p["dpb2"] = jnp.zeros((1, FDP), jnp.float32)
  p["dpg2"] = jnp.ones((1, FDP), jnp.float32)
  p["dpbe2"] = jnp.zeros((1, FDP), jnp.float32)
  p["dpwp"] = nrm((1, FDP))                       # f32, applied as VPU reduce
  p["dpbp"] = jnp.zeros((1, 1), jnp.float32)
  return p


if __name__ == "__main__":
  key = jax.random.PRNGKey(0)
  pkey, tkey, gkey = jax.random.split(key, 3)
  params = init_params(pkey)

  B, T = 2, 8
  x_tokens = jax.random.randint(tkey, (B, T), 0, N_VOCAB)
  x_lengths = jnp.array([8, 5], dtype=jnp.int32)
  g = jax.random.normal(gkey, (B, GIN_CHANNELS), dtype=jnp.float32)

  fwd = jax.jit(text_encoder_forward)
  x_m, x_logs, logw, x_mask = jax.block_until_ready(
      fwd(params, x_tokens, x_lengths, g))

  assert x_m.shape == (B, OUT_CHANNELS, T)
  assert x_logs.shape == (B, OUT_CHANNELS, T)
  assert logw.shape == (B, 1, T)
  assert x_mask.shape == (B, 1, T)
  assert bool(jnp.all(jnp.isfinite(x_m))) and bool(jnp.all(jnp.isfinite(logw)))
  print("KERNEL_OK")
</pallas_src>

<mosaic_0001>
module attributes {stable_mosaic.version = 11 : i64} {
  func.func @_text_encoder_kernel(%arg0: i32, %arg1: memref<2xi32, #tpu.memory_space<smem>>, %arg2: memref<8x1xi32, #tpu.memory_space<vmem>>, %arg3: memref<1x1x8xf32, #tpu.memory_space<vmem>>, %arg4: memref<40x32xbf16, #tpu.memory_space<vmem>>, %arg5: memref<2x32x96xbf16, #tpu.memory_space<vmem>>, %arg6: memref<2x1x96xf32, #tpu.memory_space<vmem>>, %arg7: memref<2x32x32xbf16, #tpu.memory_space<vmem>>, %arg8: memref<2x1x32xf32, #tpu.memory_space<vmem>>, %arg9: memref<2x1x32xf32, #tpu.memory_space<vmem>>, %arg10: memref<2x1x32xf32, #tpu.memory_space<vmem>>, %arg11: memref<2x96x64xbf16, #tpu.memory_space<vmem>>, %arg12: memref<2x1x64xf32, #tpu.memory_space<vmem>>, %arg13: memref<2x192x32xbf16, #tpu.memory_space<vmem>>, %arg14: memref<2x1x32xf32, #tpu.memory_space<vmem>>, %arg15: memref<2x1x32xf32, #tpu.memory_space<vmem>>, %arg16: memref<2x1x32xf32, #tpu.memory_space<vmem>>, %arg17: memref<32x32xbf16, #tpu.memory_space<vmem>>, %arg18: memref<1x32xf32, #tpu.memory_space<vmem>>, %arg19: memref<96x64xbf16, #tpu.memory_space<vmem>>, %arg20: memref<3x8x64xbf16, #tpu.memory_space<vmem>>, %arg21: memref<1x64xf32, #tpu.memory_space<vmem>>, %arg22: memref<1x64xf32, #tpu.memory_space<vmem>>, %arg23: memref<1x64xf32, #tpu.memory_space<vmem>>, %arg24: memref<192x64xbf16, #tpu.memory_space<vmem>>, %arg25: memref<1x64xf32, #tpu.memory_space<vmem>>, %arg26: memref<1x64xf32, #tpu.memory_space<vmem>>, %arg27: memref<1x64xf32, #tpu.memory_space<vmem>>, %arg28: memref<1x64xf32, #tpu.memory_space<vmem>>, %arg29: memref<1x1xf32, #tpu.memory_space<vmem>>, %arg30: memref<8x128xf32, #tpu.memory_space<vmem>>, %arg31: memref<8x32xf32, #tpu.memory_space<vmem>>) attributes {dimension_semantics = [#tpu.dimension_semantics<parallel>], iteration_bounds = array<i64: 2>, scalar_prefetch = 1 : i64, scratch_operands = 1 : i64, tpu.core_type = #tpu.core_type<tc>, window_params = [{transform_indices = @transform_0, window_bounds = array<i64: 8, 1>}, {transform_indices = @transform_1, window_bounds = array<i64: 1, 1, 8>}, {pipeline_mode = #tpu.pipeline_mode<synchronous>, transform_indices = @transform_2, window_bounds = array<i64: 40, 32>}, {pipeline_mode = #tpu.pipeline_mode<synchronous>, transform_indices = @transform_3, window_bounds = array<i64: 2, 32, 96>}, {pipeline_mode = #tpu.pipeline_mode<synchronous>, transform_indices = @transform_4, window_bounds = array<i64: 2, 1, 96>}, {pipeline_mode = #tpu.pipeline_mode<synchronous>, transform_indices = @transform_5, window_bounds = array<i64: 2, 32, 32>}, {pipeline_mode = #tpu.pipeline_mode<synchronous>, transform_indices = @transform_6, window_bounds = array<i64: 2, 1, 32>}, {pipeline_mode = #tpu.pipeline_mode<synchronous>, transform_indices = @transform_7, window_bounds = array<i64: 2, 1, 32>}, {pipeline_mode = #tpu.pipeline_mode<synchronous>, transform_indices = @transform_8, window_bounds = array<i64: 2, 1, 32>}, {pipeline_mode = #tpu.pipeline_mode<synchronous>, transform_indices = @transform_9, window_bounds = array<i64: 2, 96, 64>}, {pipeline_mode = #tpu.pipeline_mode<synchronous>, transform_indices = @transform_10, window_bounds = array<i64: 2, 1, 64>}, {pipeline_mode = #tpu.pipeline_mode<synchronous>, transform_indices = @transform_11, window_bounds = array<i64: 2, 192, 32>}, {pipeline_mode = #tpu.pipeline_mode<synchronous>, transform_indices = @transform_12, window_bounds = array<i64: 2, 1, 32>}, {pipeline_mode = #tpu.pipeline_mode<synchronous>, transform_indices = @transform_13, window_bounds = array<i64: 2, 1, 32>}, {pipeline_mode = #tpu.pipeline_mode<synchronous>, transform_indices = @transform_14, window_bounds = array<i64: 2, 1, 32>}, {pipeline_mode = #tpu.pipeline_mode<synchronous>, transform_indices = @transform_15, window_bounds = array<i64: 32, 32>}, {pipeline_mode = #tpu.pipeline_mode<synchronous>, transform_indices = @transform_16, window_bounds = array<i64: 1, 32>}, {pipeline_mode = #tpu.pipeline_mode<synchronous>, transform_indices = @transform_17, window_bounds = array<i64: 96, 64>}, {pipeline_mode = #tpu.pipeline_mode<synchronous>, transform_indices = @transform_18, window_bounds = array<i64: 3, 8, 64>}, {pipeline_mode = #tpu.pipeline_mode<synchronous>, transform_indices = @transform_19, window_bounds = array<i64: 1, 64>}, {pipeline_mode = #tpu.pipeline_mode<synchronous>, transform_indices = @transform_20, window_bounds = array<i64: 1, 64>}, {pipeline_mode = #tpu.pipeline_mode<synchronous>, transform_indices = @transform_21, window_bounds = array<i64: 1, 64>}, {pipeline_mode = #tpu.pipeline_mode<synchronous>, transform_indices = @transform_22, window_bounds = array<i64: 192, 64>}, {pipeline_mode = #tpu.pipeline_mode<synchronous>, transform_indices = @transform_23, window_bounds = array<i64: 1, 64>}, {pipeline_mode = #tpu.pipeline_mode<synchronous>, transform_indices = @transform_24, window_bounds = array<i64: 1, 64>}, {pipeline_mode = #tpu.pipeline_mode<synchronous>, transform_indices = @transform_25, window_bounds = array<i64: 1, 64>}, {pipeline_mode = #tpu.pipeline_mode<synchronous>, transform_indices = @transform_26, window_bounds = array<i64: 1, 64>}, {pipeline_mode = #tpu.pipeline_mode<synchronous>, transform_indices = @transform_27, window_bounds = array<i64: 1, 1>}, {transform_indices = @transform_28, window_bounds = array<i64: 8, 128>}]} {
    %0 = arith.index_cast %arg0 : i32 to index
    %1 = memref.load %arg1[%0] : memref<2xi32, #tpu.memory_space<smem>>
    %2 = tpu.iota {dimensions = array<i32: 0>} : vector<8x1xi32>
    %3 = vector.broadcast %1 : i32 to vector<8x1xi32>
    %4 = arith.cmpi slt, %2, %3 : vector<8x1xi32>
    %5 = arith.extui %4 : vector<8x1xi1> to vector<8x1xi32>
    %6 = arith.sitofp %5 : vector<8x1xi32> to vector<8x1xf32>
    %c1_i32 = arith.constant 1 : i32
    %7 = vector.broadcast %c1_i32 : i32 to vector<8x1xi32>
    %8 = arith.cmpi sge, %2, %7 : vector<8x1xi32>
    %9 = arith.extui %8 : vector<8x1xi1> to vector<8x1xi32>
    %10 = arith.sitofp %9 : vector<8x1xi32> to vector<8x1xf32>
    %c6_i32 = arith.constant 6 : i32
    %11 = vector.broadcast %c6_i32 : i32 to vector<8x1xi32>
    %12 = arith.cmpi sle, %2, %11 : vector<8x1xi32>
    %13 = arith.extui %12 : vector<8x1xi1> to vector<8x1xi32>
    %14 = arith.sitofp %13 : vector<8x1xi32> to vector<8x1xf32>
    %c1_i32_0 = arith.constant 1 : i32
    %15 = vector.broadcast %c1_i32_0 : i32 to vector<8x1xi32>
    %16 = arith.cmpi sge, %2, %15 : vector<8x1xi32>
    %17 = vector.broadcast %1 : i32 to vector<8x1xi32>
    %18 = arith.cmpi sle, %2, %17 : vector<8x1xi32>
    %19 = arith.andi %16, %18 : vector<8x1xi1>
    %20 = arith.extui %19 : vector<8x1xi1> to vector<8x1xi32>
    %21 = arith.sitofp %20 : vector<8x1xi32> to vector<8x1xf32>
    %c1_i32_1 = arith.constant 1 : i32
    %22 = vector.broadcast %c1_i32_1 : i32 to vector<8x1xi32>
    %23 = arith.addi %2, %22 : vector<8x1xi32>
    %24 = vector.broadcast %1 : i32 to vector<8x1xi32>
    %25 = arith.cmpi slt, %23, %24 : vector<8x1xi32>
    %26 = arith.extui %25 : vector<8x1xi1> to vector<8x1xi32>
    %27 = arith.sitofp %26 : vector<8x1xi32> to vector<8x1xf32>
    %28 = tpu.iota {dimensions = array<i32: 0>} : vector<8x8xi32>
    %29 = tpu.iota {dimensions = array<i32: 1>} : vector<8x8xi32>
    %30 = vector.broadcast %1 : i32 to vector<8x8xi32>
    %31 = arith.cmpi slt, %28, %30 : vector<8x8xi32>
    %32 = vector.broadcast %1 : i32 to vector<8x8xi32>
    %33 = arith.cmpi slt, %29, %32 : vector<8x8xi32>
    %34 = arith.andi %31, %33 : vector<8x8xi1>
    %c0 = arith.constant 0 : index
    %c0_2 = arith.constant 0 : index
    %35 = vector.load %arg2[%c0, %c0_2] : memref<8x1xi32, #tpu.memory_space<vmem>>, vector<8x1xi32>
    %36 = tpu.iota {dimensions = array<i32: 1>} : vector<8x40xi32>
    %37 = vector.broadcast %35 : vector<8x1xi32> to vector<8x40xi32>
    %38 = arith.cmpi eq, %37, %36 : vector<8x40xi32>
    %39 = arith.extui %38 : vector<8x40xi1> to vector<8x40xi32>
    %40 = arith.sitofp %39 : vector<8x40xi32> to vector<8x40xf32>
    %41 = arith.truncf %40 : vector<8x40xf32> to vector<8x40xbf16>
    %c0_3 = arith.constant 0 : index
    %c0_4 = arith.constant 0 : index
    %42 = vector.load %arg4[%c0_3, %c0_4] : memref<40x32xbf16, #tpu.memory_space<vmem>>, vector<40x32xbf16>
    %cst = arith.constant dense<0.000000e+00> : vector<8x32xf32>
    %43 = tpu.matmul %41, %42, %cst {dimension_numbers = #tpu.dot_dimension_numbers<[1], [0], [0], [1], [0, 0, 1, 1], [], []>} : vector<8x40xbf16>, vector<40x32xbf16>, vector<8x32xf32> -> vector<8x32xf32>
    %44 = vector.broadcast %6 : vector<8x1xf32> to vector<8x32xf32>
    %45 = arith.mulf %43, %44 : vector<8x32xf32>
    %c0_5 = arith.constant 0 : index
    %c0_6 = arith.constant 0 : index
    %c0_7 = arith.constant 0 : index
    %46 = vector.load %arg5[%c0_5, %c0_6, %c0_7] : memref<2x32x96xbf16, #tpu.memory_space<vmem>>, vector<1x32x96xbf16>
    %47 = vector.shape_cast %46 : vector<1x32x96xbf16> to vector<32x96xbf16>
    %48 = arith.truncf %45 : vector<8x32xf32> to vector<8x32xbf16>
    %cst_8 = arith.constant dense<0.000000e+00> : vector<8x96xf32>
    %49 = tpu.matmul %48, %47, %cst_8 {dimension_numbers = #tpu.dot_dimension_numbers<[1], [0], [0], [1], [0, 0, 1, 1], [], []>} : vector<8x32xbf16>, vector<32x96xbf16>, vector<8x96xf32> -> vector<8x96xf32>
    %c0_9 = arith.constant 0 : index
    %c0_10 = arith.constant 0 : index
    %c0_11 = arith.constant 0 : index
    %50 = vector.load %arg6[%c0_9, %c0_10, %c0_11] : memref<2x1x96xf32, #tpu.memory_space<vmem>>, vector<1x1x96xf32>
    %51 = vector.shape_cast %50 : vector<1x1x96xf32> to vector<1x96xf32>
    %52 = vector.broadcast %51 : vector<1x96xf32> to vector<8x96xf32>
    %53 = arith.addf %49, %52 : vector<8x96xf32>
    %54 = vector.extract_strided_slice %53 {offsets = [0, 0], sizes = [8, 16], strides = [1, 1]} : vector<8x96xf32> to vector<8x16xf32>
    %cst_12 = arith.constant 2.500000e-01 : f32
    %55 = vector.broadcast %cst_12 : f32 to vector<8x16xf32>
    %56 = arith.mulf %54, %55 : vector<8x16xf32>
    %57 = vector.extract_strided_slice %53 {offsets = [0, 32], sizes = [8, 16], strides = [1, 1]} : vector<8x96xf32> to vector<8x16xf32>
    %58 = vector.extract_strided_slice %53 {offsets = [0, 64], sizes = [8, 16], strides = [1, 1]} : vector<8x96xf32> to vector<8x16xf32>
    %59 = arith.truncf %56 : vector<8x16xf32> to vector<8x16xbf16>
    %60 = arith.truncf %57 : vector<8x16xf32> to vector<8x16xbf16>
    %cst_13 = arith.constant dense<0.000000e+00> : vector<8x8xf32>
    %61 = tpu.matmul %59, %60, %cst_13 {dimension_numbers = #tpu.dot_dimension_numbers<[1], [1], [0], [0], [0, 0, 1, 0], [], []>} : vector<8x16xbf16>, vector<8x16xbf16>, vector<8x8xf32> -> vector<8x8xf32>
    %cst_14 = arith.constant -1.000000e+04 : f32
    %62 = vector.broadcast %cst_14 : f32 to vector<8x8xf32>
    %63 = arith.select %34, %61, %62 : vector<8x8xi1>, vector<8x8xf32>
    %cst_15 = arith.constant dense<0xFF800000> : vector<8xf32>
    %64 = vector.multi_reduction <maximumf>, %63, %cst_15 [1] : vector<8x8xf32> to vector<8xf32>
    %65 = vector.shape_cast %64 : vector<8xf32> to vector<8x1xf32>
    %66 = vector.broadcast %65 : vector<8x1xf32> to vector<8x8xf32>
    %67 = arith.subf %63, %66 : vector<8x8xf32>
    %68 = math.exp %67 : vector<8x8xf32>
    %cst_16 = arith.constant dense<0.000000e+00> : vector<8xf32>
    %69 = vector.multi_reduction <add>, %68, %cst_16 [1] : vector<8x8xf32> to vector<8xf32>
    %70 = vector.shape_cast %69 : vector<8xf32> to vector<8x1xf32>
    %71 = tpu.reciprocal %70 {approx = true} : vector<8x1xf32> -> vector<8x1xf32>
    %72 = vector.broadcast %71 : vector<8x1xf32> to vector<8x8xf32>
    %73 = arith.mulf %68, %72 : vector<8x8xf32>
    %74 = arith.truncf %73 : vector<8x8xf32> to vector<8x8xbf16>
    %75 = arith.truncf %58 : vector<8x16xf32> to vector<8x16xbf16>
    %cst_17 = arith.constant dense<0.000000e+00> : vector<8x16xf32>
    %76 = tpu.matmul %74, %75, %cst_17 {dimension_numbers = #tpu.dot_dimension_numbers<[1], [0], [0], [1], [0, 0, 1, 1], [], []>} : vector<8x8xbf16>, vector<8x16xbf16>, vector<8x16xf32> -> vector<8x16xf32>
    %c0_18 = arith.constant 0 : index
    %c0_19 = arith.constant 0 : index
    %77 = vector.load %arg31[%c0_18, %c0_19] : memref<8x32xf32, #tpu.memory_space<vmem>>, vector<8x16xf32>
    tpu.vector_store %arg31[%c0_18, %c0_19], %76 {strides = array<i32>} : memref<8x32xf32, #tpu.memory_space<vmem>>, vector<8x16xf32>,
    %78 = vector.extract_strided_slice %53 {offsets = [0, 16], sizes = [8, 16], strides = [1, 1]} : vector<8x96xf32> to vector<8x16xf32>
    %cst_20 = arith.constant 2.500000e-01 : f32
    %79 = vector.broadcast %cst_20 : f32 to vector<8x16xf32>
    %80 = arith.mulf %78, %79 : vector<8x16xf32>
    %81 = vector.extract_strided_slice %53 {offsets = [0, 48], sizes = [8, 16], strides = [1, 1]} : vector<8x96xf32> to vector<8x16xf32>
    %82 = vector.extract_strided_slice %53 {offsets = [0, 80], sizes = [8, 16], strides = [1, 1]} : vector<8x96xf32> to vector<8x16xf32>
    %83 = arith.truncf %80 : vector<8x16xf32> to vector<8x16xbf16>
    %84 = arith.truncf %81 : vector<8x16xf32> to vector<8x16xbf16>
    %cst_21 = arith.constant dense<0.000000e+00> : vector<8x8xf32>
    %85 = tpu.matmul %83, %84, %cst_21 {dimension_numbers = #tpu.dot_dimension_numbers<[1], [1], [0], [0], [0, 0, 1, 0], [], []>} : vector<8x16xbf16>, vector<8x16xbf16>, vector<8x8xf32> -> vector<8x8xf32>
    %cst_22 = arith.constant -1.000000e+04 : f32
    %86 = vector.broadcast %cst_22 : f32 to vector<8x8xf32>
    %87 = arith.select %34, %85, %86 : vector<8x8xi1>, vector<8x8xf32>
    %cst_23 = arith.constant dense<0xFF800000> : vector<8xf32>
    %88 = vector.multi_reduction <maximumf>, %87, %cst_23 [1] : vector<8x8xf32> to vector<8xf32>
    %89 = vector.shape_cast %88 : vector<8xf32> to vector<8x1xf32>
    %90 = vector.broadcast %89 : vector<8x1xf32> to vector<8x8xf32>
    %91 = arith.subf %87, %90 : vector<8x8xf32>
    %92 = math.exp %91 : vector<8x8xf32>
    %cst_24 = arith.constant dense<0.000000e+00> : vector<8xf32>
    %93 = vector.multi_reduction <add>, %92, %cst_24 [1] : vector<8x8xf32> to vector<8xf32>
    %94 = vector.shape_cast %93 : vector<8xf32> to vector<8x1xf32>
    %95 = tpu.reciprocal %94 {approx = true} : vector<8x1xf32> -> vector<8x1xf32>
    %96 = vector.broadcast %95 : vector<8x1xf32> to vector<8x8xf32>
    %97 = arith.mulf %92, %96 : vector<8x8xf32>
    %98 = arith.truncf %97 : vector<8x8xf32> to vector<8x8xbf16>
    %99 = arith.truncf %82 : vector<8x16xf32> to vector<8x16xbf16>
    %cst_25 = arith.constant dense<0.000000e+00> : vector<8x16xf32>
    %100 = tpu.matmul %98, %99, %cst_25 {dimension_numbers = #tpu.dot_dimension_numbers<[1], [0], [0], [1], [0, 0, 1, 1], [], []>} : vector<8x8xbf16>, vector<8x16xbf16>, vector<8x16xf32> -> vector<8x16xf32>
    %c0_26 = arith.constant 0 : index
    %c16 = arith.constant 16 : index
    %101 = vector.load %arg31[%c0_26, %c16] : memref<8x32xf32, #tpu.memory_space<vmem>>, vector<8x16xf32>
    tpu.vector_store %arg31[%c0_26, %c16], %100 {strides = array<i32>} : memref<8x32xf32, #tpu.memory_space<vmem>>, vector<8x16xf32>,
    %c0_27 = arith.constant 0 : index
    %c0_28 = arith.constant 0 : index
    %102 = vector.load %arg31[%c0_27, %c0_28] : memref<8x32xf32, #tpu.memory_space<vmem>>, vector<8x32xf32>
    %c0_29 = arith.constant 0 : index
    %c0_30 = arith.constant 0 : index
    %c0_31 = arith.constant 0 : index
    %103 = vector.load %arg7[%c0_29, %c0_30, %c0_31] : memref<2x32x32xbf16, #tpu.memory_space<vmem>>, vector<1x32x32xbf16>
    %104 = vector.shape_cast %103 : vector<1x32x32xbf16> to vector<32x32xbf16>
    %105 = arith.truncf %102 : vector<8x32xf32> to vector<8x32xbf16>
    %cst_32 = arith.constant dense<0.000000e+00> : vector<8x32xf32>
    %106 = tpu.matmul %105, %104, %cst_32 {dimension_numbers = #tpu.dot_dimension_numbers<[1], [0], [0], [1], [0, 0, 1, 1], [], []>} : vector<8x32xbf16>, vector<32x32xbf16>, vector<8x32xf32> -> vector<8x32xf32>
    %107 = arith.addf %45, %106 : vector<8x32xf32>
    %c0_33 = arith.constant 0 : index
    %c0_34 = arith.constant 0 : index
    %c0_35 = arith.constant 0 : index
    %108 = vector.load %arg8[%c0_33, %c0_34, %c0_35] : memref<2x1x32xf32, #tpu.memory_space<vmem>>, vector<1x1x32xf32>
    %109 = vector.shape_cast %108 : vector<1x1x32xf32> to vector<1x32xf32>
    %110 = vector.broadcast %109 : vector<1x32xf32> to vector<8x32xf32>
    %111 = arith.addf %107, %110 : vector<8x32xf32>
    %c0_36 = arith.constant 0 : index
    %c0_37 = arith.constant 0 : index
    %c0_38 = arith.constant 0 : index
    %112 = vector.load %arg9[%c0_36, %c0_37, %c0_38] : memref<2x1x32xf32, #tpu.memory_space<vmem>>, vector<1x1x32xf32>
    %113 = vector.shape_cast %112 : vector<1x1x32xf32> to vector<1x32xf32>
    %c0_39 = arith.constant 0 : index
    %c0_40 = arith.constant 0 : index
    %c0_41 = arith.constant 0 : index
    %114 = vector.load %arg10[%c0_39, %c0_40, %c0_41] : memref<2x1x32xf32, #tpu.memory_space<vmem>>, vector<1x1x32xf32>
    %115 = vector.shape_cast %114 : vector<1x1x32xf32> to vector<1x32xf32>
    %cst_42 = arith.constant dense<0.000000e+00> : vector<8xf32>
    %116 = vector.multi_reduction <add>, %111, %cst_42 [1] : vector<8x32xf32> to vector<8xf32>
    %117 = vector.shape_cast %116 : vector<8xf32> to vector<8x1xf32>
    %cst_43 = arith.constant 3.200000e+01 : f32
    %118 = vector.broadcast %cst_43 : f32 to vector<8x1xf32>
    %119 = arith.divf %117, %118 : vector<8x1xf32>
    %120 = vector.broadcast %119 : vector<8x1xf32> to vector<8x32xf32>
    %121 = arith.subf %111, %120 : vector<8x32xf32>
    %122 = arith.mulf %121, %121 : vector<8x32xf32>
    %cst_44 = arith.constant dense<0.000000e+00> : vector<8xf32>
    %123 = vector.multi_reduction <add>, %122, %cst_44 [1] : vector<8x32xf32> to vector<8xf32>
    %124 = vector.shape_cast %123 : vector<8xf32> to vector<8x1xf32>
    %cst_45 = arith.constant 3.200000e+01 : f32
    %125 = vector.broadcast %cst_45 : f32 to vector<8x1xf32>
    %126 = arith.divf %124, %125 : vector<8x1xf32>
    %127 = vector.broadcast %119 : vector<8x1xf32> to vector<8x32xf32>
    %128 = arith.subf %111, %127 : vector<8x32xf32>
    %cst_46 = arith.constant 9.99999974E-5 : f32
    %129 = vector.broadcast %cst_46 : f32 to vector<8x1xf32>
    %130 = arith.addf %126, %129 : vector<8x1xf32>
    %131 = math.rsqrt %130 : vector<8x1xf32>
    %132 = vector.broadcast %131 : vector<8x1xf32> to vector<8x32xf32>
    %133 = arith.mulf %128, %132 : vector<8x32xf32>
    %134 = vector.broadcast %113 : vector<1x32xf32> to vector<8x32xf32>
    %135 = arith.mulf %133, %134 : vector<8x32xf32>
    %136 = vector.broadcast %115 : vector<1x32xf32> to vector<8x32xf32>
    %137 = arith.addf %135, %136 : vector<8x32xf32>
    %138 = vector.broadcast %6 : vector<8x1xf32> to vector<8x32xf32>
    %139 = arith.mulf %137, %138 : vector<8x32xf32>
    %c0_47 = arith.constant 0 : index
    %c0_48 = arith.constant 0 : index
    %c0_49 = arith.constant 0 : index
    %140 = vector.load %arg11[%c0_47, %c0_48, %c0_49] : memref<2x96x64xbf16, #tpu.memory_space<vmem>>, vector<1x96x64xbf16>
    %141 = vector.shape_cast %140 : vector<1x96x64xbf16> to vector<96x64xbf16>
    %c0_50 = arith.constant 0 : index
    %c0_51 = arith.constant 0 : index
    %c0_52 = arith.constant 0 : index
    %142 = vector.load %arg12[%c0_50, %c0_51, %c0_52] : memref<2x1x64xf32, #tpu.memory_space<vmem>>, vector<1x1x64xf32>
    %143 = vector.shape_cast %142 : vector<1x1x64xf32> to vector<1x64xf32>
    %c1_i32_53 = arith.constant 1 : i32
    %144 = tpu.dynamic_rotate %139 by %c1_i32_53 dim 0 : vector<8x32xf32>, i32 -> vector<8x32xf32>
    %145 = vector.broadcast %10 : vector<8x1xf32> to vector<8x32xf32>
    %146 = arith.mulf %144, %145 : vector<8x32xf32>
    %c7_i32 = arith.constant 7 : i32
    %147 = tpu.dynamic_rotate %139 by %c7_i32 dim 0 : vector<8x32xf32>, i32 -> vector<8x32xf32>
    %148 = vector.broadcast %14 : vector<8x1xf32> to vector<8x32xf32>
    %149 = arith.mulf %147, %148 : vector<8x32xf32>
    %150 = tpu.concatenate %146, %139, %149 in 1 : vector<8x32xf32>, vector<8x32xf32>, vector<8x32xf32> -> vector<8x96xf32>
    %151 = arith.truncf %150 : vector<8x96xf32> to vector<8x96xbf16>
    %cst_54 = arith.constant dense<0.000000e+00> : vector<8x64xf32>
    %152 = tpu.matmul %151, %141, %cst_54 {dimension_numbers = #tpu.dot_dimension_numbers<[1], [0], [0], [1], [0, 0, 1, 1], [], []>} : vector<8x96xbf16>, vector<96x64xbf16>, vector<8x64xf32> -> vector<8x64xf32>
    %153 = vector.broadcast %143 : vector<1x64xf32> to vector<8x64xf32>
    %154 = arith.addf %152, %153 : vector<8x64xf32>
    %cst_55 = arith.constant 0.000000e+00 : f32
    %155 = vector.broadcast %cst_55 : f32 to vector<8x64xf32>
    %156 = arith.maximumf %154, %155 : vector<8x64xf32>
    %157 = vector.broadcast %6 : vector<8x1xf32> to vector<8x64xf32>
    %158 = arith.mulf %156, %157 : vector<8x64xf32>
    %c0_56 = arith.constant 0 : index
    %c0_57 = arith.constant 0 : index
    %c0_58 = arith.constant 0 : index
    %159 = vector.load %arg13[%c0_56, %c0_57, %c0_58] : memref<2x192x32xbf16, #tpu.memory_space<vmem>>, vector<1x192x32xbf16>
    %160 = vector.shape_cast %159 : vector<1x192x32xbf16> to vector<192x32xbf16>
    %c0_59 = arith.constant 0 : index
    %c0_60 = arith.constant 0 : index
    %c0_61 = arith.constant 0 : index
    %161 = vector.load %arg14[%c0_59, %c0_60, %c0_61] : memref<2x1x32xf32, #tpu.memory_space<vmem>>, vector<1x1x32xf32>
    %162 = vector.shape_cast %161 : vector<1x1x32xf32> to vector<1x32xf32>
    %c1_i32_62 = arith.constant 1 : i32
    %163 = tpu.dynamic_rotate %158 by %c1_i32_62 dim 0 : vector<8x64xf32>, i32 -> vector<8x64xf32>
    %164 = vector.broadcast %10 : vector<8x1xf32> to vector<8x64xf32>
    %165 = arith.mulf %163, %164 : vector<8x64xf32>
    %c7_i32_63 = arith.constant 7 : i32
    %166 = tpu.dynamic_rotate %158 by %c7_i32_63 dim 0 : vector<8x64xf32>, i32 -> vector<8x64xf32>
    %167 = vector.broadcast %14 : vector<8x1xf32> to vector<8x64xf32>
    %168 = arith.mulf %166, %167 : vector<8x64xf32>
    %169 = tpu.concatenate %165, %158, %168 in 1 : vector<8x64xf32>, vector<8x64xf32>, vector<8x64xf32> -> vector<8x192xf32>
    %170 = arith.truncf %169 : vector<8x192xf32> to vector<8x192xbf16>
    %cst_64 = arith.constant dense<0.000000e+00> : vector<8x32xf32>
    %171 = tpu.matmul %170, %160, %cst_64 {dimension_numbers = #tpu.dot_dimension_numbers<[1], [0], [0], [1], [0, 0, 1, 1], [], []>} : vector<8x192xbf16>, vector<192x32xbf16>, vector<8x32xf32> -> vector<8x32xf32>
    %172 = vector.broadcast %162 : vector<1x32xf32> to vector<8x32xf32>
    %173 = arith.addf %171, %172 : vector<8x32xf32>
    %174 = vector.broadcast %6 : vector<8x1xf32> to vector<8x32xf32>
    %175 = arith.mulf %173, %174 : vector<8x32xf32>
    %176 = arith.addf %137, %175 : vector<8x32xf32>
    %c0_65 = arith.constant 0 : index
    %c0_66 = arith.constant 0 : index
    %c0_67 = arith.constant 0 : index
    %177 = vector.load %arg15[%c0_65, %c0_66, %c0_67] : memref<2x1x32xf32, #tpu.memory_space<vmem>>, vector<1x1x32xf32>
    %178 = vector.shape_cast %177 : vector<1x1x32xf32> to vector<1x32xf32>
    %c0_68 = arith.constant 0 : index
    %c0_69 = arith.constant 0 : index
    %c0_70 = arith.constant 0 : index
    %179 = vector.load %arg16[%c0_68, %c0_69, %c0_70] : memref<2x1x32xf32, #tpu.memory_space<vmem>>, vector<1x1x32xf32>
    %180 = vector.shape_cast %179 : vector<1x1x32xf32> to vector<1x32xf32>
    %cst_71 = arith.constant dense<0.000000e+00> : vector<8xf32>
    %181 = vector.multi_reduction <add>, %176, %cst_71 [1] : vector<8x32xf32> to vector<8xf32>
    %182 = vector.shape_cast %181 : vector<8xf32> to vector<8x1xf32>
    %cst_72 = arith.constant 3.200000e+01 : f32
    %183 = vector.broadcast %cst_72 : f32 to vector<8x1xf32>
    %184 = arith.divf %182, %183 : vector<8x1xf32>
    %185 = vector.broadcast %184 : vector<8x1xf32> to vector<8x32xf32>
    %186 = arith.subf %176, %185 : vector<8x32xf32>
    %187 = arith.mulf %186, %186 : vector<8x32xf32>
    %cst_73 = arith.constant dense<0.000000e+00> : vector<8xf32>
    %188 = vector.multi_reduction <add>, %187, %cst_73 [1] : vector<8x32xf32> to vector<8xf32>
    %189 = vector.shape_cast %188 : vector<8xf32> to vector<8x1xf32>
    %cst_74 = arith.constant 3.200000e+01 : f32
    %190 = vector.broadcast %cst_74 : f32 to vector<8x1xf32>
    %191 = arith.divf %189, %190 : vector<8x1xf32>
    %192 = vector.broadcast %184 : vector<8x1xf32> to vector<8x32xf32>
    %193 = arith.subf %176, %192 : vector<8x32xf32>
    %cst_75 = arith.constant 9.99999974E-5 : f32
    %194 = vector.broadcast %cst_75 : f32 to vector<8x1xf32>
    %195 = arith.addf %191, %194 : vector<8x1xf32>
    %196 = math.rsqrt %195 : vector<8x1xf32>
    %197 = vector.broadcast %196 : vector<8x1xf32> to vector<8x32xf32>
    %198 = arith.mulf %193, %197 : vector<8x32xf32>
    %199 = vector.broadcast %178 : vector<1x32xf32> to vector<8x32xf32>
    %200 = arith.mulf %198, %199 : vector<8x32xf32>
    %201 = vector.broadcast %180 : vector<1x32xf32> to vector<8x32xf32>
    %202 = arith.addf %200, %201 : vector<8x32xf32>
    %203 = vector.broadcast %6 : vector<8x1xf32> to vector<8x32xf32>
    %204 = arith.mulf %202, %203 : vector<8x32xf32>
    %c1 = arith.constant 1 : index
    %c0_76 = arith.constant 0 : index
    %c0_77 = arith.constant 0 : index
    %205 = vector.load %arg5[%c1, %c0_76, %c0_77] : memref<2x32x96xbf16, #tpu.memory_space<vmem>>, vector<1x32x96xbf16>
    %206 = vector.shape_cast %205 : vector<1x32x96xbf16> to vector<32x96xbf16>
    %207 = arith.truncf %204 : vector<8x32xf32> to vector<8x32xbf16>
    %cst_78 = arith.constant dense<0.000000e+00> : vector<8x96xf32>
    %208 = tpu.matmul %207, %206, %cst_78 {dimension_numbers = #tpu.dot_dimension_numbers<[1], [0], [0], [1], [0, 0, 1, 1], [], []>} : vector<8x32xbf16>, vector<32x96xbf16>, vector<8x96xf32> -> vector<8x96xf32>
    %c1_79 = arith.constant 1 : index
    %c0_80 = arith.constant 0 : index
    %c0_81 = arith.constant 0 : index
    %209 = vector.load %arg6[%c1_79, %c0_80, %c0_81] : memref<2x1x96xf32, #tpu.memory_space<vmem>>, vector<1x1x96xf32>
    %210 = vector.shape_cast %209 : vector<1x1x96xf32> to vector<1x96xf32>
    %211 = vector.broadcast %210 : vector<1x96xf32> to vector<8x96xf32>
    %212 = arith.addf %208, %211 : vector<8x96xf32>
    %213 = vector.extract_strided_slice %212 {offsets = [0, 0], sizes = [8, 16], strides = [1, 1]} : vector<8x96xf32> to vector<8x16xf32>
    %cst_82 = arith.constant 2.500000e-01 : f32
    %214 = vector.broadcast %cst_82 : f32 to vector<8x16xf32>
    %215 = arith.mulf %213, %214 : vector<8x16xf32>
    %216 = vector.extract_strided_slice %212 {offsets = [0, 32], sizes = [8, 16], strides = [1, 1]} : vector<8x96xf32> to vector<8x16xf32>
    %217 = vector.extract_strided_slice %212 {offsets = [0, 64], sizes = [8, 16], strides = [1, 1]} : vector<8x96xf32> to vector<8x16xf32>
    %218 = arith.truncf %215 : vector<8x16xf32> to vector<8x16xbf16>
    %219 = arith.truncf %216 : vector<8x16xf32> to vector<8x16xbf16>
    %cst_83 = arith.constant dense<0.000000e+00> : vector<8x8xf32>
    %220 = tpu.matmul %218, %219, %cst_83 {dimension_numbers = #tpu.dot_dimension_numbers<[1], [1], [0], [0], [0, 0, 1, 0], [], []>} : vector<8x16xbf16>, vector<8x16xbf16>, vector<8x8xf32> -> vector<8x8xf32>
    %cst_84 = arith.constant -1.000000e+04 : f32
    %221 = vector.broadcast %cst_84 : f32 to vector<8x8xf32>
    %222 = arith.select %34, %220, %221 : vector<8x8xi1>, vector<8x8xf32>
    %cst_85 = arith.constant dense<0xFF800000> : vector<8xf32>
    %223 = vector.multi_reduction <maximumf>, %222, %cst_85 [1] : vector<8x8xf32> to vector<8xf32>
    %224 = vector.shape_cast %223 : vector<8xf32> to vector<8x1xf32>
    %225 = vector.broadcast %224 : vector<8x1xf32> to vector<8x8xf32>
    %226 = arith.subf %222, %225 : vector<8x8xf32>
    %227 = math.exp %226 : vector<8x8xf32>
    %cst_86 = arith.constant dense<0.000000e+00> : vector<8xf32>
    %228 = vector.multi_reduction <add>, %227, %cst_86 [1] : vector<8x8xf32> to vector<8xf32>
    %229 = vector.shape_cast %228 : vector<8xf32> to vector<8x1xf32>
    %230 = tpu.reciprocal %229 {approx = true} : vector<8x1xf32> -> vector<8x1xf32>
    %231 = vector.broadcast %230 : vector<8x1xf32> to vector<8x8xf32>
    %232 = arith.mulf %227, %231 : vector<8x8xf32>
    %233 = arith.truncf %232 : vector<8x8xf32> to vector<8x8xbf16>
    %234 = arith.truncf %217 : vector<8x16xf32> to vector<8x16xbf16>
    %cst_87 = arith.constant dense<0.000000e+00> : vector<8x16xf32>
    %235 = tpu.matmul %233, %234, %cst_87 {dimension_numbers = #tpu.dot_dimension_numbers<[1], [0], [0], [1], [0, 0, 1, 1], [], []>} : vector<8x8xbf16>, vector<8x16xbf16>, vector<8x16xf32> -> vector<8x16xf32>
    %c0_88 = arith.constant 0 : index
    %c0_89 = arith.constant 0 : index
    %236 = vector.load %arg31[%c0_88, %c0_89] : memref<8x32xf32, #tpu.memory_space<vmem>>, vector<8x16xf32>
    tpu.vector_store %arg31[%c0_88, %c0_89], %235 {strides = array<i32>} : memref<8x32xf32, #tpu.memory_space<vmem>>, vector<8x16xf32>,
    %237 = vector.extract_strided_slice %212 {offsets = [0, 16], sizes = [8, 16], strides = [1, 1]} : vector<8x96xf32> to vector<8x16xf32>
    %cst_90 = arith.constant 2.500000e-01 : f32
    %238 = vector.broadcast %cst_90 : f32 to vector<8x16xf32>
    %239 = arith.mulf %237, %238 : vector<8x16xf32>
    %240 = vector.extract_strided_slice %212 {offsets = [0, 48], sizes = [8, 16], strides = [1, 1]} : vector<8x96xf32> to vector<8x16xf32>
    %241 = vector.extract_strided_slice %212 {offsets = [0, 80], sizes = [8, 16], strides = [1, 1]} : vector<8x96xf32> to vector<8x16xf32>
    %242 = arith.truncf %239 : vector<8x16xf32> to vector<8x16xbf16>
    %243 = arith.truncf %240 : vector<8x16xf32> to vector<8x16xbf16>
    %cst_91 = arith.constant dense<0.000000e+00> : vector<8x8xf32>
    %244 = tpu.matmul %242, %243, %cst_91 {dimension_numbers = #tpu.dot_dimension_numbers<[1], [1], [0], [0], [0, 0, 1, 0], [], []>} : vector<8x16xbf16>, vector<8x16xbf16>, vector<8x8xf32> -> vector<8x8xf32>
    %cst_92 = arith.constant -1.000000e+04 : f32
    %245 = vector.broadcast %cst_92 : f32 to vector<8x8xf32>
    %246 = arith.select %34, %244, %245 : vector<8x8xi1>, vector<8x8xf32>
    %cst_93 = arith.constant dense<0xFF800000> : vector<8xf32>
    %247 = vector.multi_reduction <maximumf>, %246, %cst_93 [1] : vector<8x8xf32> to vector<8xf32>
    %248 = vector.shape_cast %247 : vector<8xf32> to vector<8x1xf32>
    %249 = vector.broadcast %248 : vector<8x1xf32> to vector<8x8xf32>
    %250 = arith.subf %246, %249 : vector<8x8xf32>
    %251 = math.exp %250 : vector<8x8xf32>
    %cst_94 = arith.constant dense<0.000000e+00> : vector<8xf32>
    %252 = vector.multi_reduction <add>, %251, %cst_94 [1] : vector<8x8xf32> to vector<8xf32>
    %253 = vector.shape_cast %252 : vector<8xf32> to vector<8x1xf32>
    %254 = tpu.reciprocal %253 {approx = true} : vector<8x1xf32> -> vector<8x1xf32>
    %255 = vector.broadcast %254 : vector<8x1xf32> to vector<8x8xf32>
    %256 = arith.mulf %251, %255 : vector<8x8xf32>
    %257 = arith.truncf %256 : vector<8x8xf32> to vector<8x8xbf16>
    %258 = arith.truncf %241 : vector<8x16xf32> to vector<8x16xbf16>
    %cst_95 = arith.constant dense<0.000000e+00> : vector<8x16xf32>
    %259 = tpu.matmul %257, %258, %cst_95 {dimension_numbers = #tpu.dot_dimension_numbers<[1], [0], [0], [1], [0, 0, 1, 1], [], []>} : vector<8x8xbf16>, vector<8x16xbf16>, vector<8x16xf32> -> vector<8x16xf32>
    %c0_96 = arith.constant 0 : index
    %c16_97 = arith.constant 16 : index
    %260 = vector.load %arg31[%c0_96, %c16_97] : memref<8x32xf32, #tpu.memory_space<vmem>>, vector<8x16xf32>
    tpu.vector_store %arg31[%c0_96, %c16_97], %259 {strides = array<i32>} : memref<8x32xf32, #tpu.memory_space<vmem>>, vector<8x16xf32>,
    %c0_98 = arith.constant 0 : index
    %c0_99 = arith.constant 0 : index
    %261 = vector.load %arg31[%c0_98, %c0_99] : memref<8x32xf32, #tpu.memory_space<vmem>>, vector<8x32xf32>
    %c1_100 = arith.constant 1 : index
    %c0_101 = arith.constant 0 : index
    %c0_102 = arith.constant 0 : index
    %262 = vector.load %arg7[%c1_100, %c0_101, %c0_102] : memref<2x32x32xbf16, #tpu.memory_space<vmem>>, vector<1x32x32xbf16>
    %263 = vector.shape_cast %262 : vector<1x32x32xbf16> to vector<32x32xbf16>
    %264 = arith.truncf %261 : vector<8x32xf32> to vector<8x32xbf16>
    %cst_103 = arith.constant dense<0.000000e+00> : vector<8x32xf32>
    %265 = tpu.matmul %264, %263, %cst_103 {dimension_numbers = #tpu.dot_dimension_numbers<[1], [0], [0], [1], [0, 0, 1, 1], [], []>} : vector<8x32xbf16>, vector<32x32xbf16>, vector<8x32xf32> -> vector<8x32xf32>
    %266 = arith.addf %204, %265 : vector<8x32xf32>
    %c1_104 = arith.constant 1 : index
    %c0_105 = arith.constant 0 : index
    %c0_106 = arith.constant 0 : index
    %267 = vector.load %arg8[%c1_104, %c0_105, %c0_106] : memref<2x1x32xf32, #tpu.memory_space<vmem>>, vector<1x1x32xf32>
    %268 = vector.shape_cast %267 : vector<1x1x32xf32> to vector<1x32xf32>
    %269 = vector.broadcast %268 : vector<1x32xf32> to vector<8x32xf32>
    %270 = arith.addf %266, %269 : vector<8x32xf32>
    %c1_107 = arith.constant 1 : index
    %c0_108 = arith.constant 0 : index
    %c0_109 = arith.constant 0 : index
    %271 = vector.load %arg9[%c1_107, %c0_108, %c0_109] : memref<2x1x32xf32, #tpu.memory_space<vmem>>, vector<1x1x32xf32>
    %272 = vector.shape_cast %271 : vector<1x1x32xf32> to vector<1x32xf32>
    %c1_110 = arith.constant 1 : index
    %c0_111 = arith.constant 0 : index
    %c0_112 = arith.constant 0 : index
    %273 = vector.load %arg10[%c1_110, %c0_111, %c0_112] : memref<2x1x32xf32, #tpu.memory_space<vmem>>, vector<1x1x32xf32>
    %274 = vector.shape_cast %273 : vector<1x1x32xf32> to vector<1x32xf32>
    %cst_113 = arith.constant dense<0.000000e+00> : vector<8xf32>
    %275 = vector.multi_reduction <add>, %270, %cst_113 [1] : vector<8x32xf32> to vector<8xf32>
    %276 = vector.shape_cast %275 : vector<8xf32> to vector<8x1xf32>
    %cst_114 = arith.constant 3.200000e+01 : f32
    %277 = vector.broadcast %cst_114 : f32 to vector<8x1xf32>
    %278 = arith.divf %276, %277 : vector<8x1xf32>
    %279 = vector.broadcast %278 : vector<8x1xf32> to vector<8x32xf32>
    %280 = arith.subf %270, %279 : vector<8x32xf32>
    %281 = arith.mulf %280, %280 : vector<8x32xf32>
    %cst_115 = arith.constant dense<0.000000e+00> : vector<8xf32>
    %282 = vector.multi_reduction <add>, %281, %cst_115 [1] : vector<8x32xf32> to vector<8xf32>
    %283 = vector.shape_cast %282 : vector<8xf32> to vector<8x1xf32>
    %cst_116 = arith.constant 3.200000e+01 : f32
    %284 = vector.broadcast %cst_116 : f32 to vector<8x1xf32>
    %285 = arith.divf %283, %284 : vector<8x1xf32>
    %286 = vector.broadcast %278 : vector<8x1xf32> to vector<8x32xf32>
    %287 = arith.subf %270, %286 : vector<8x32xf32>
    %cst_117 = arith.constant 9.99999974E-5 : f32
    %288 = vector.broadcast %cst_117 : f32 to vector<8x1xf32>
    %289 = arith.addf %285, %288 : vector<8x1xf32>
    %290 = math.rsqrt %289 : vector<8x1xf32>
    %291 = vector.broadcast %290 : vector<8x1xf32> to vector<8x32xf32>
    %292 = arith.mulf %287, %291 : vector<8x32xf32>
    %293 = vector.broadcast %272 : vector<1x32xf32> to vector<8x32xf32>
    %294 = arith.mulf %292, %293 : vector<8x32xf32>
    %295 = vector.broadcast %274 : vector<1x32xf32> to vector<8x32xf32>
    %296 = arith.addf %294, %295 : vector<8x32xf32>
    %297 = vector.broadcast %6 : vector<8x1xf32> to vector<8x32xf32>
    %298 = arith.mulf %296, %297 : vector<8x32xf32>
    %c1_118 = arith.constant 1 : index
    %c0_119 = arith.constant 0 : index
    %c0_120 = arith.constant 0 : index
    %299 = vector.load %arg11[%c1_118, %c0_119, %c0_120] : memref<2x96x64xbf16, #tpu.memory_space<vmem>>, vector<1x96x64xbf16>
    %300 = vector.shape_cast %299 : vector<1x96x64xbf16> to vector<96x64xbf16>
    %c1_121 = arith.constant 1 : index
    %c0_122 = arith.constant 0 : index
    %c0_123 = arith.constant 0 : index
    %301 = vector.load %arg12[%c1_121, %c0_122, %c0_123] : memref<2x1x64xf32, #tpu.memory_space<vmem>>, vector<1x1x64xf32>
    %302 = vector.shape_cast %301 : vector<1x1x64xf32> to vector<1x64xf32>
    %c1_i32_124 = arith.constant 1 : i32
    %303 = tpu.dynamic_rotate %298 by %c1_i32_124 dim 0 : vector<8x32xf32>, i32 -> vector<8x32xf32>
    %304 = vector.broadcast %10 : vector<8x1xf32> to vector<8x32xf32>
    %305 = arith.mulf %303, %304 : vector<8x32xf32>
    %c7_i32_125 = arith.constant 7 : i32
    %306 = tpu.dynamic_rotate %298 by %c7_i32_125 dim 0 : vector<8x32xf32>, i32 -> vector<8x32xf32>
    %307 = vector.broadcast %14 : vector<8x1xf32> to vector<8x32xf32>
    %308 = arith.mulf %306, %307 : vector<8x32xf32>
    %309 = tpu.concatenate %305, %298, %308 in 1 : vector<8x32xf32>, vector<8x32xf32>, vector<8x32xf32> -> vector<8x96xf32>
    %310 = arith.truncf %309 : vector<8x96xf32> to vector<8x96xbf16>
    %cst_126 = arith.constant dense<0.000000e+00> : vector<8x64xf32>
    %311 = tpu.matmul %310, %300, %cst_126 {dimension_numbers = #tpu.dot_dimension_numbers<[1], [0], [0], [1], [0, 0, 1, 1], [], []>} : vector<8x96xbf16>, vector<96x64xbf16>, vector<8x64xf32> -> vector<8x64xf32>
    %312 = vector.broadcast %302 : vector<1x64xf32> to vector<8x64xf32>
    %313 = arith.addf %311, %312 : vector<8x64xf32>
    %cst_127 = arith.constant 0.000000e+00 : f32
    %314 = vector.broadcast %cst_127 : f32 to vector<8x64xf32>
    %315 = arith.maximumf %313, %314 : vector<8x64xf32>
    %316 = vector.broadcast %6 : vector<8x1xf32> to vector<8x64xf32>
    %317 = arith.mulf %315, %316 : vector<8x64xf32>
    %c1_128 = arith.constant 1 : index
    %c0_129 = arith.constant 0 : index
    %c0_130 = arith.constant 0 : index
    %318 = vector.load %arg13[%c1_128, %c0_129, %c0_130] : memref<2x192x32xbf16, #tpu.memory_space<vmem>>, vector<1x192x32xbf16>
    %319 = vector.shape_cast %318 : vector<1x192x32xbf16> to vector<192x32xbf16>
    %c1_131 = arith.constant 1 : index
    %c0_132 = arith.constant 0 : index
    %c0_133 = arith.constant 0 : index
    %320 = vector.load %arg14[%c1_131, %c0_132, %c0_133] : memref<2x1x32xf32, #tpu.memory_space<vmem>>, vector<1x1x32xf32>
    %321 = vector.shape_cast %320 : vector<1x1x32xf32> to vector<1x32xf32>
    %c1_i32_134 = arith.constant 1 : i32
    %322 = tpu.dynamic_rotate %317 by %c1_i32_134 dim 0 : vector<8x64xf32>, i32 -> vector<8x64xf32>
    %323 = vector.broadcast %10 : vector<8x1xf32> to vector<8x64xf32>
    %324 = arith.mulf %322, %323 : vector<8x64xf32>
    %c7_i32_135 = arith.constant 7 : i32
    %325 = tpu.dynamic_rotate %317 by %c7_i32_135 dim 0 : vector<8x64xf32>, i32 -> vector<8x64xf32>
    %326 = vector.broadcast %14 : vector<8x1xf32> to vector<8x64xf32>
    %327 = arith.mulf %325, %326 : vector<8x64xf32>
    %328 = tpu.concatenate %324, %317, %327 in 1 : vector<8x64xf32>, vector<8x64xf32>, vector<8x64xf32> -> vector<8x192xf32>
    %329 = arith.truncf %328 : vector<8x192xf32> to vector<8x192xbf16>
    %cst_136 = arith.constant dense<0.000000e+00> : vector<8x32xf32>
    %330 = tpu.matmul %329, %319, %cst_136 {dimension_numbers = #tpu.dot_dimension_numbers<[1], [0], [0], [1], [0, 0, 1, 1], [], []>} : vector<8x192xbf16>, vector<192x32xbf16>, vector<8x32xf32> -> vector<8x32xf32>
    %331 = vector.broadcast %321 : vector<1x32xf32> to vector<8x32xf32>
    %332 = arith.addf %330, %331 : vector<8x32xf32>
    %333 = vector.broadcast %6 : vector<8x1xf32> to vector<8x32xf32>
    %334 = arith.mulf %332, %333 : vector<8x32xf32>
    %335 = arith.addf %296, %334 : vector<8x32xf32>
    %c1_137 = arith.constant 1 : index
    %c0_138 = arith.constant 0 : index
    %c0_139 = arith.constant 0 : index
    %336 = vector.load %arg15[%c1_137, %c0_138, %c0_139] : memref<2x1x32xf32, #tpu.memory_space<vmem>>, vector<1x1x32xf32>
    %337 = vector.shape_cast %336 : vector<1x1x32xf32> to vector<1x32xf32>
    %c1_140 = arith.constant 1 : index
    %c0_141 = arith.constant 0 : index
    %c0_142 = arith.constant 0 : index
    %338 = vector.load %arg16[%c1_140, %c0_141, %c0_142] : memref<2x1x32xf32, #tpu.memory_space<vmem>>, vector<1x1x32xf32>
    %339 = vector.shape_cast %338 : vector<1x1x32xf32> to vector<1x32xf32>
    %cst_143 = arith.constant dense<0.000000e+00> : vector<8xf32>
    %340 = vector.multi_reduction <add>, %335, %cst_143 [1] : vector<8x32xf32> to vector<8xf32>
    %341 = vector.shape_cast %340 : vector<8xf32> to vector<8x1xf32>
    %cst_144 = arith.constant 3.200000e+01 : f32
    %342 = vector.broadcast %cst_144 : f32 to vector<8x1xf32>
    %343 = arith.divf %341, %342 : vector<8x1xf32>
    %344 = vector.broadcast %343 : vector<8x1xf32> to vector<8x32xf32>
    %345 = arith.subf %335, %344 : vector<8x32xf32>
    %346 = arith.mulf %345, %345 : vector<8x32xf32>
    %cst_145 = arith.constant dense<0.000000e+00> : vector<8xf32>
    %347 = vector.multi_reduction <add>, %346, %cst_145 [1] : vector<8x32xf32> to vector<8xf32>
    %348 = vector.shape_cast %347 : vector<8xf32> to vector<8x1xf32>
    %cst_146 = arith.constant 3.200000e+01 : f32
    %349 = vector.broadcast %cst_146 : f32 to vector<8x1xf32>
    %350 = arith.divf %348, %349 : vector<8x1xf32>
    %351 = vector.broadcast %343 : vector<8x1xf32> to vector<8x32xf32>
    %352 = arith.subf %335, %351 : vector<8x32xf32>
    %cst_147 = arith.constant 9.99999974E-5 : f32
    %353 = vector.broadcast %cst_147 : f32 to vector<8x1xf32>
    %354 = arith.addf %350, %353 : vector<8x1xf32>
    %355 = math.rsqrt %354 : vector<8x1xf32>
    %356 = vector.broadcast %355 : vector<8x1xf32> to vector<8x32xf32>
    %357 = arith.mulf %352, %356 : vector<8x32xf32>
    %358 = vector.broadcast %337 : vector<1x32xf32> to vector<8x32xf32>
    %359 = arith.mulf %357, %358 : vector<8x32xf32>
    %360 = vector.broadcast %339 : vector<1x32xf32> to vector<8x32xf32>
    %361 = arith.addf %359, %360 : vector<8x32xf32>
    %362 = vector.broadcast %6 : vector<8x1xf32> to vector<8x32xf32>
    %363 = arith.mulf %361, %362 : vector<8x32xf32>
    %c0_148 = arith.constant 0 : index
    %c0_149 = arith.constant 0 : index
    %364 = vector.load %arg17[%c0_148, %c0_149] : memref<32x32xbf16, #tpu.memory_space<vmem>>, vector<32x32xbf16>
    %365 = arith.truncf %363 : vector<8x32xf32> to vector<8x32xbf16>
    %cst_150 = arith.constant dense<0.000000e+00> : vector<8x32xf32>
    %366 = tpu.matmul %365, %364, %cst_150 {dimension_numbers = #tpu.dot_dimension_numbers<[1], [0], [0], [1], [0, 0, 1, 1], [], []>} : vector<8x32xbf16>, vector<32x32xbf16>, vector<8x32xf32> -> vector<8x32xf32>
    %c0_151 = arith.constant 0 : index
    %c0_152 = arith.constant 0 : index
    %367 = vector.load %arg18[%c0_151, %c0_152] : memref<1x32xf32, #tpu.memory_space<vmem>>, vector<1x32xf32>
    %368 = vector.broadcast %367 : vector<1x32xf32> to vector<8x32xf32>
    %369 = arith.addf %366, %368 : vector<8x32xf32>
    %370 = vector.broadcast %6 : vector<8x1xf32> to vector<8x32xf32>
    %371 = arith.mulf %369, %370 : vector<8x32xf32>
    %c0_153 = arith.constant 0 : index
    %c0_154 = arith.constant 0 : index
    %c0_155 = arith.constant 0 : index
    %372 = vector.load %arg3[%c0_153, %c0_154, %c0_155] : memref<1x1x8xf32, #tpu.memory_space<vmem>>, vector<1x1x8xf32>
    %373 = vector.shape_cast %372 : vector<1x1x8xf32> to vector<1x8xf32>
    %c1_i32_156 = arith.constant 1 : i32
    %374 = tpu.dynamic_rotate %363 by %c1_i32_156 dim 0 : vector<8x32xf32>, i32 -> vector<8x32xf32>
    %375 = vector.broadcast %10 : vector<8x1xf32> to vector<8x32xf32>
    %376 = arith.mulf %374, %375 : vector<8x32xf32>
    %c7_i32_157 = arith.constant 7 : i32
    %377 = tpu.dynamic_rotate %363 by %c7_i32_157 dim 0 : vector<8x32xf32>, i32 -> vector<8x32xf32>
    %378 = vector.broadcast %14 : vector<8x1xf32> to vector<8x32xf32>
    %379 = arith.mulf %377, %378 : vector<8x32xf32>
    %380 = tpu.concatenate %376, %363, %379 in 1 : vector<8x32xf32>, vector<8x32xf32>, vector<8x32xf32> -> vector<8x96xf32>
    %c0_158 = arith.constant 0 : index
    %c0_159 = arith.constant 0 : index
    %381 = vector.load %arg19[%c0_158, %c0_159] : memref<96x64xbf16, #tpu.memory_space<vmem>>, vector<96x64xbf16>
    %382 = arith.truncf %380 : vector<8x96xf32> to vector<8x96xbf16>
    %cst_160 = arith.constant dense<0.000000e+00> : vector<8x64xf32>
    %383 = tpu.matmul %382, %381, %cst_160 {dimension_numbers = #tpu.dot_dimension_numbers<[1], [0], [0], [1], [0, 0, 1, 1], [], []>} : vector<8x96xbf16>, vector<96x64xbf16>, vector<8x64xf32> -> vector<8x64xf32>
    %c0_161 = arith.constant 0 : index
    %c0_162 = arith.constant 0 : index
    %c0_163 = arith.constant 0 : index
    %384 = vector.load %arg20[%c0_161, %c0_162, %c0_163] : memref<3x8x64xbf16, #tpu.memory_space<vmem>>, vector<1x8x64xbf16>
    %385 = vector.shape_cast %384 : vector<1x8x64xbf16> to vector<8x64xbf16>
    %386 = arith.truncf %373 : vector<1x8xf32> to vector<1x8xbf16>
    %cst_164 = arith.constant dense<0.000000e+00> : vector<1x64xf32>
    %387 = tpu.matmul %386, %385, %cst_164 {dimension_numbers = #tpu.dot_dimension_numbers<[1], [0], [0], [1], [0, 0, 1, 1], [], []>} : vector<1x8xbf16>, vector<8x64xbf16>, vector<1x64xf32> -> vector<1x64xf32>
    %388 = vector.broadcast %21 : vector<8x1xf32> to vector<8x64xf32>
    %389 = vector.broadcast %387 : vector<1x64xf32> to vector<8x64xf32>
    %390 = arith.mulf %388, %389 : vector<8x64xf32>
    %391 = arith.addf %383, %390 : vector<8x64xf32>
    %c1_165 = arith.constant 1 : index
    %c0_166 = arith.constant 0 : index
    %c0_167 = arith.constant 0 : index
    %392 = vector.load %arg20[%c1_165, %c0_166, %c0_167] : memref<3x8x64xbf16, #tpu.memory_space<vmem>>, vector<1x8x64xbf16>
    %393 = vector.shape_cast %392 : vector<1x8x64xbf16> to vector<8x64xbf16>
    %394 = arith.truncf %373 : vector<1x8xf32> to vector<1x8xbf16>
    %cst_168 = arith.constant dense<0.000000e+00> : vector<1x64xf32>
    %395 = tpu.matmul %394, %393, %cst_168 {dimension_numbers = #tpu.dot_dimension_numbers<[1], [0], [0], [1], [0, 0, 1, 1], [], []>} : vector<1x8xbf16>, vector<8x64xbf16>, vector<1x64xf32> -> vector<1x64xf32>
    %396 = vector.broadcast %6 : vector<8x1xf32> to vector<8x64xf32>
    %397 = vector.broadcast %395 : vector<1x64xf32> to vector<8x64xf32>
    %398 = arith.mulf %396, %397 : vector<8x64xf32>
    %399 = arith.addf %391, %398 : vector<8x64xf32>
    %c2 = arith.constant 2 : index
    %c0_169 = arith.constant 0 : index
    %c0_170 = arith.constant 0 : index
    %400 = vector.load %arg20[%c2, %c0_169, %c0_170] : memref<3x8x64xbf16, #tpu.memory_space<vmem>>, vector<1x8x64xbf16>
    %401 = vector.shape_cast %400 : vector<1x8x64xbf16> to vector<8x64xbf16>
    %402 = arith.truncf %373 : vector<1x8xf32> to vector<1x8xbf16>
    %cst_171 = arith.constant dense<0.000000e+00> : vector<1x64xf32>
    %403 = tpu.matmul %402, %401, %cst_171 {dimension_numbers = #tpu.dot_dimension_numbers<[1], [0], [0], [1], [0, 0, 1, 1], [], []>} : vector<1x8xbf16>, vector<8x64xbf16>, vector<1x64xf32> -> vector<1x64xf32>
    %404 = vector.broadcast %27 : vector<8x1xf32> to vector<8x64xf32>
    %405 = vector.broadcast %403 : vector<1x64xf32> to vector<8x64xf32>
    %406 = arith.mulf %404, %405 : vector<8x64xf32>
    %407 = arith.addf %399, %406 : vector<8x64xf32>
    %c0_172 = arith.constant 0 : index
    %c0_173 = arith.constant 0 : index
    %408 = vector.load %arg21[%c0_172, %c0_173] : memref<1x64xf32, #tpu.memory_space<vmem>>, vector<1x64xf32>
    %409 = vector.broadcast %408 : vector<1x64xf32> to vector<8x64xf32>
    %410 = arith.addf %407, %409 : vector<8x64xf32>
    %cst_174 = arith.constant 0.000000e+00 : f32
    %411 = vector.broadcast %cst_174 : f32 to vector<8x64xf32>
    %412 = arith.maximumf %410, %411 : vector<8x64xf32>
    %c0_175 = arith.constant 0 : index
    %c0_176 = arith.constant 0 : index
    %413 = vector.load %arg22[%c0_175, %c0_176] : memref<1x64xf32, #tpu.memory_space<vmem>>, vector<1x64xf32>
    %c0_177 = arith.constant 0 : index
    %c0_178 = arith.constant 0 : index
    %414 = vector.load %arg23[%c0_177, %c0_178] : memref<1x64xf32, #tpu.memory_space<vmem>>, vector<1x64xf32>
    %cst_179 = arith.constant dense<0.000000e+00> : vector<8xf32>
    %415 = vector.multi_reduction <add>, %412, %cst_179 [1] : vector<8x64xf32> to vector<8xf32>
    %416 = vector.shape_cast %415 : vector<8xf32> to vector<8x1xf32>
    %cst_180 = arith.constant 6.400000e+01 : f32
    %417 = vector.broadcast %cst_180 : f32 to vector<8x1xf32>
    %418 = arith.divf %416, %417 : vector<8x1xf32>
    %419 = vector.broadcast %418 : vector<8x1xf32> to vector<8x64xf32>
    %420 = arith.subf %412, %419 : vector<8x64xf32>
    %421 = arith.mulf %420, %420 : vector<8x64xf32>
    %cst_181 = arith.constant dense<0.000000e+00> : vector<8xf32>
    %422 = vector.multi_reduction <add>, %421, %cst_181 [1] : vector<8x64xf32> to vector<8xf32>
    %423 = vector.shape_cast %422 : vector<8xf32> to vector<8x1xf32>
    %cst_182 = arith.constant 6.400000e+01 : f32
    %424 = vector.broadcast %cst_182 : f32 to vector<8x1xf32>
    %425 = arith.divf %423, %424 : vector<8x1xf32>
    %426 = vector.broadcast %418 : vector<8x1xf32> to vector<8x64xf32>
    %427 = arith.subf %412, %426 : vector<8x64xf32>
    %cst_183 = arith.constant 9.99999974E-5 : f32
    %428 = vector.broadcast %cst_183 : f32 to vector<8x1xf32>
    %429 = arith.addf %425, %428 : vector<8x1xf32>
    %430 = math.rsqrt %429 : vector<8x1xf32>
    %431 = vector.broadcast %430 : vector<8x1xf32> to vector<8x64xf32>
    %432 = arith.mulf %427, %431 : vector<8x64xf32>
    %433 = vector.broadcast %413 : vector<1x64xf32> to vector<8x64xf32>
    %434 = arith.mulf %432, %433 : vector<8x64xf32>
    %435 = vector.broadcast %414 : vector<1x64xf32> to vector<8x64xf32>
    %436 = arith.addf %434, %435 : vector<8x64xf32>
    %437 = vector.broadcast %6 : vector<8x1xf32> to vector<8x64xf32>
    %438 = arith.mulf %436, %437 : vector<8x64xf32>
    %c0_184 = arith.constant 0 : index
    %c0_185 = arith.constant 0 : index
    %439 = vector.load %arg24[%c0_184, %c0_185] : memref<192x64xbf16, #tpu.memory_space<vmem>>, vector<192x64xbf16>
    %c0_186 = arith.constant 0 : index
    %c0_187 = arith.constant 0 : index
    %440 = vector.load %arg25[%c0_186, %c0_187] : memref<1x64xf32, #tpu.memory_space<vmem>>, vector<1x64xf32>
    %c1_i32_188 = arith.constant 1 : i32
    %441 = tpu.dynamic_rotate %438 by %c1_i32_188 dim 0 : vector<8x64xf32>, i32 -> vector<8x64xf32>
    %442 = vector.broadcast %10 : vector<8x1xf32> to vector<8x64xf32>
    %443 = arith.mulf %441, %442 : vector<8x64xf32>
    %c7_i32_189 = arith.constant 7 : i32
    %444 = tpu.dynamic_rotate %438 by %c7_i32_189 dim 0 : vector<8x64xf32>, i32 -> vector<8x64xf32>
    %445 = vector.broadcast %14 : vector<8x1xf32> to vector<8x64xf32>
    %446 = arith.mulf %444, %445 : vector<8x64xf32>
    %447 = tpu.concatenate %443, %438, %446 in 1 : vector<8x64xf32>, vector<8x64xf32>, vector<8x64xf32> -> vector<8x192xf32>
    %448 = arith.truncf %447 : vector<8x192xf32> to vector<8x192xbf16>
    %cst_190 = arith.constant dense<0.000000e+00> : vector<8x64xf32>
    %449 = tpu.matmul %448, %439, %cst_190 {dimension_numbers = #tpu.dot_dimension_numbers<[1], [0], [0], [1], [0, 0, 1, 1], [], []>} : vector<8x192xbf16>, vector<192x64xbf16>, vector<8x64xf32> -> vector<8x64xf32>
    %450 = vector.broadcast %440 : vector<1x64xf32> to vector<8x64xf32>
    %451 = arith.addf %449, %450 : vector<8x64xf32>
    %cst_191 = arith.constant 0.000000e+00 : f32
    %452 = vector.broadcast %cst_191 : f32 to vector<8x64xf32>
    %453 = arith.maximumf %451, %452 : vector<8x64xf32>
    %c0_192 = arith.constant 0 : index
    %c0_193 = arith.constant 0 : index
    %454 = vector.load %arg26[%c0_192, %c0_193] : memref<1x64xf32, #tpu.memory_space<vmem>>, vector<1x64xf32>
    %c0_194 = arith.constant 0 : index
    %c0_195 = arith.constant 0 : index
    %455 = vector.load %arg27[%c0_194, %c0_195] : memref<1x64xf32, #tpu.memory_space<vmem>>, vector<1x64xf32>
    %cst_196 = arith.constant dense<0.000000e+00> : vector<8xf32>
    %456 = vector.multi_reduction <add>, %453, %cst_196 [1] : vector<8x64xf32> to vector<8xf32>
    %457 = vector.shape_cast %456 : vector<8xf32> to vector<8x1xf32>
    %cst_197 = arith.constant 6.400000e+01 : f32
    %458 = vector.broadcast %cst_197 : f32 to vector<8x1xf32>
    %459 = arith.divf %457, %458 : vector<8x1xf32>
    %460 = vector.broadcast %459 : vector<8x1xf32> to vector<8x64xf32>
    %461 = arith.subf %453, %460 : vector<8x64xf32>
    %462 = arith.mulf %461, %461 : vector<8x64xf32>
    %cst_198 = arith.constant dense<0.000000e+00> : vector<8xf32>
    %463 = vector.multi_reduction <add>, %462, %cst_198 [1] : vector<8x64xf32> to vector<8xf32>
    %464 = vector.shape_cast %463 : vector<8xf32> to vector<8x1xf32>
    %cst_199 = arith.constant 6.400000e+01 : f32
    %465 = vector.broadcast %cst_199 : f32 to vector<8x1xf32>
    %466 = arith.divf %464, %465 : vector<8x1xf32>
    %467 = vector.broadcast %459 : vector<8x1xf32> to vector<8x64xf32>
    %468 = arith.subf %453, %467 : vector<8x64xf32>
    %cst_200 = arith.constant 9.99999974E-5 : f32
    %469 = vector.broadcast %cst_200 : f32 to vector<8x1xf32>
    %470 = arith.addf %466, %469 : vector<8x1xf32>
    %471 = math.rsqrt %470 : vector<8x1xf32>
    %472 = vector.broadcast %471 : vector<8x1xf32> to vector<8x64xf32>
    %473 = arith.mulf %468, %472 : vector<8x64xf32>
    %474 = vector.broadcast %454 : vector<1x64xf32> to vector<8x64xf32>
    %475 = arith.mulf %473, %474 : vector<8x64xf32>
    %476 = vector.broadcast %455 : vector<1x64xf32> to vector<8x64xf32>
    %477 = arith.addf %475, %476 : vector<8x64xf32>
    %478 = vector.broadcast %6 : vector<8x1xf32> to vector<8x64xf32>
    %479 = arith.mulf %477, %478 : vector<8x64xf32>
    %c0_201 = arith.constant 0 : index
    %c0_202 = arith.constant 0 : index
    %480 = vector.load %arg28[%c0_201, %c0_202] : memref<1x64xf32, #tpu.memory_space<vmem>>, vector<1x64xf32>
    %481 = vector.broadcast %480 : vector<1x64xf32> to vector<8x64xf32>
    %482 = arith.mulf %479, %481 : vector<8x64xf32>
    %cst_203 = arith.constant dense<0.000000e+00> : vector<8xf32>
    %483 = vector.multi_reduction <add>, %482, %cst_203 [1] : vector<8x64xf32> to vector<8xf32>
    %484 = vector.shape_cast %483 : vector<8xf32> to vector<8x1xf32>
    %c0_204 = arith.constant 0 : index
    %c0_205 = arith.constant 0 : index
    %485 = vector.load %arg29[%c0_204, %c0_205] : memref<1x1xf32, #tpu.memory_space<vmem>>, vector<1x1xf32>
    %486 = vector.broadcast %485 : vector<1x1xf32> to vector<8x1xf32>
    %487 = arith.addf %484, %486 : vector<8x1xf32>
    %cst_206 = arith.constant 0.000000e+00 : f32
    %488 = vector.broadcast %cst_206 : f32 to vector<8x95xf32>
    %489 = tpu.concatenate %371, %487, %488 in 1 : vector<8x32xf32>, vector<8x1xf32>, vector<8x95xf32> -> vector<8x128xf32>
    %c0_207 = arith.constant 0 : index
    %c0_208 = arith.constant 0 : index
    %490 = vector.load %arg30[%c0_207, %c0_208] : memref<8x128xf32, #tpu.memory_space<vmem>>, vector<8x128xf32>
    tpu.vector_store %arg30[%c0_207, %c0_208], %489 {strides = array<i32>} : memref<8x128xf32, #tpu.memory_space<vmem>>, vector<8x128xf32>,
    return
  }
  func.func @transform_0(%arg0: i32, %arg1: memref<2xi32, #tpu.memory_space<smem>>) -> (i32, i32) {
    %c0_i32 = arith.constant 0 : i32
    %c0_i32_0 = arith.constant 0 : i32
    return %arg0, %c0_i32 : i32, i32
  }
  func.func @transform_1(%arg0: i32, %arg1: memref<2xi32, #tpu.memory_space<smem>>) -> (i32, i32, i32) {
    %c0_i32 = arith.constant 0 : i32
    %c0_i32_0 = arith.constant 0 : i32
    %c0_i32_1 = arith.constant 0 : i32
    return %arg0, %c0_i32, %c0_i32_0 : i32, i32, i32
  }
  func.func @transform_2(%arg0: i32, %arg1: memref<2xi32, #tpu.memory_space<smem>>) -> (i32, i32) {
    %c0_i32 = arith.constant 0 : i32
    %c0_i32_0 = arith.constant 0 : i32
    %c0_i32_1 = arith.constant 0 : i32
    return %c0_i32, %c0_i32_0 : i32, i32
  }
  func.func @transform_3(%arg0: i32, %arg1: memref<2xi32, #tpu.memory_space<smem>>) -> (i32, i32, i32) {
    %c0_i32 = arith.constant 0 : i32
    %c0_i32_0 = arith.constant 0 : i32
    %c0_i32_1 = arith.constant 0 : i32
    %c0_i32_2 = arith.constant 0 : i32
    return %c0_i32, %c0_i32_0, %c0_i32_1 : i32, i32, i32
  }
  func.func @transform_4(%arg0: i32, %arg1: memref<2xi32, #tpu.memory_space<smem>>) -> (i32, i32, i32) {
    %c0_i32 = arith.constant 0 : i32
    %c0_i32_0 = arith.constant 0 : i32
    %c0_i32_1 = arith.constant 0 : i32
    %c0_i32_2 = arith.constant 0 : i32
    return %c0_i32, %c0_i32_0, %c0_i32_1 : i32, i32, i32
  }
  func.func @transform_5(%arg0: i32, %arg1: memref<2xi32, #tpu.memory_space<smem>>) -> (i32, i32, i32) {
    %c0_i32 = arith.constant 0 : i32
    %c0_i32_0 = arith.constant 0 : i32
    %c0_i32_1 = arith.constant 0 : i32
    %c0_i32_2 = arith.constant 0 : i32
    return %c0_i32, %c0_i32_0, %c0_i32_1 : i32, i32, i32
  }
  func.func @transform_6(%arg0: i32, %arg1: memref<2xi32, #tpu.memory_space<smem>>) -> (i32, i32, i32) {
    %c0_i32 = arith.constant 0 : i32
    %c0_i32_0 = arith.constant 0 : i32
    %c0_i32_1 = arith.constant 0 : i32
    %c0_i32_2 = arith.constant 0 : i32
    return %c0_i32, %c0_i32_0, %c0_i32_1 : i32, i32, i32
  }
  func.func @transform_7(%arg0: i32, %arg1: memref<2xi32, #tpu.memory_space<smem>>) -> (i32, i32, i32) {
    %c0_i32 = arith.constant 0 : i32
    %c0_i32_0 = arith.constant 0 : i32
    %c0_i32_1 = arith.constant 0 : i32
    %c0_i32_2 = arith.constant 0 : i32
    return %c0_i32, %c0_i32_0, %c0_i32_1 : i32, i32, i32
  }
  func.func @transform_8(%arg0: i32, %arg1: memref<2xi32, #tpu.memory_space<smem>>) -> (i32, i32, i32) {
    %c0_i32 = arith.constant 0 : i32
    %c0_i32_0 = arith.constant 0 : i32
    %c0_i32_1 = arith.constant 0 : i32
    %c0_i32_2 = arith.constant 0 : i32
    return %c0_i32, %c0_i32_0, %c0_i32_1 : i32, i32, i32
  }
  func.func @transform_9(%arg0: i32, %arg1: memref<2xi32, #tpu.memory_space<smem>>) -> (i32, i32, i32) {
    %c0_i32 = arith.constant 0 : i32
    %c0_i32_0 = arith.constant 0 : i32
    %c0_i32_1 = arith.constant 0 : i32
    %c0_i32_2 = arith.constant 0 : i32
    return %c0_i32, %c0_i32_0, %c0_i32_1 : i32, i32, i32
  }
  func.func @transform_10(%arg0: i32, %arg1: memref<2xi32, #tpu.memory_space<smem>>) -> (i32, i32, i32) {
    %c0_i32 = arith.constant 0 : i32
    %c0_i32_0 = arith.constant 0 : i32
    %c0_i32_1 = arith.constant 0 : i32
    %c0_i32_2 = arith.constant 0 : i32
    return %c0_i32, %c0_i32_0, %c0_i32_1 : i32, i32, i32
  }
  func.func @transform_11(%arg0: i32, %arg1: memref<2xi32, #tpu.memory_space<smem>>) -> (i32, i32, i32) {
    %c0_i32 = arith.constant 0 : i32
    %c0_i32_0 = arith.constant 0 : i32
    %c0_i32_1 = arith.constant 0 : i32
    %c0_i32_2 = arith.constant 0 : i32
    return %c0_i32, %c0_i32_0, %c0_i32_1 : i32, i32, i32
  }
  func.func @transform_12(%arg0: i32, %arg1: memref<2xi32, #tpu.memory_space<smem>>) -> (i32, i32, i32) {
    %c0_i32 = arith.constant 0 : i32
    %c0_i32_0 = arith.constant 0 : i32
    %c0_i32_1 = arith.constant 0 : i32
    %c0_i32_2 = arith.constant 0 : i32
    return %c0_i32, %c0_i32_0, %c0_i32_1 : i32, i32, i32
  }
  func.func @transform_13(%arg0: i32, %arg1: memref<2xi32, #tpu.memory_space<smem>>) -> (i32, i32, i32) {
    %c0_i32 = arith.constant 0 : i32
    %c0_i32_0 = arith.constant 0 : i32
    %c0_i32_1 = arith.constant 0 : i32
    %c0_i32_2 = arith.constant 0 : i32
    return %c0_i32, %c0_i32_0, %c0_i32_1 : i32, i32, i32
  }
  func.func @transform_14(%arg0: i32, %arg1: memref<2xi32, #tpu.memory_space<smem>>) -> (i32, i32, i32) {
    %c0_i32 = arith.constant 0 : i32
    %c0_i32_0 = arith.constant 0 : i32
    %c0_i32_1 = arith.constant 0 : i32
    %c0_i32_2 = arith.constant 0 : i32
    return %c0_i32, %c0_i32_0, %c0_i32_1 : i32, i32, i32
  }
  func.func @transform_15(%arg0: i32, %arg1: memref<2xi32, #tpu.memory_space<smem>>) -> (i32, i32) {
    %c0_i32 = arith.constant 0 : i32
    %c0_i32_0 = arith.constant 0 : i32
    %c0_i32_1 = arith.constant 0 : i32
    return %c0_i32, %c0_i32_0 : i32, i32
  }
  func.func @transform_16(%arg0: i32, %arg1: memref<2xi32, #tpu.memory_space<smem>>) -> (i32, i32) {
    %c0_i32 = arith.constant 0 : i32
    %c0_i32_0 = arith.constant 0 : i32
    %c0_i32_1 = arith.constant 0 : i32
    return %c0_i32, %c0_i32_0 : i32, i32
  }
  func.func @transform_17(%arg0: i32, %arg1: memref<2xi32, #tpu.memory_space<smem>>) -> (i32, i32) {
    %c0_i32 = arith.constant 0 : i32
    %c0_i32_0 = arith.constant 0 : i32
    %c0_i32_1 = arith.constant 0 : i32
    return %c0_i32, %c0_i32_0 : i32, i32
  }
  func.func @transform_18(%arg0: i32, %arg1: memref<2xi32, #tpu.memory_space<smem>>) -> (i32, i32, i32) {
    %c0_i32 = arith.constant 0 : i32
    %c0_i32_0 = arith.constant 0 : i32
    %c0_i32_1 = arith.constant 0 : i32
    %c0_i32_2 = arith.constant 0 : i32
    return %c0_i32, %c0_i32_0, %c0_i32_1 : i32, i32, i32
  }
  func.func @transform_19(%arg0: i32, %arg1: memref<2xi32, #tpu.memory_space<smem>>) -> (i32, i32) {
    %c0_i32 = arith.constant 0 : i32
    %c0_i32_0 = arith.constant 0 : i32
    %c0_i32_1 = arith.constant 0 : i32
    return %c0_i32, %c0_i32_0 : i32, i32
  }
  func.func @transform_20(%arg0: i32, %arg1: memref<2xi32, #tpu.memory_space<smem>>) -> (i32, i32) {
    %c0_i32 = arith.constant 0 : i32
    %c0_i32_0 = arith.constant 0 : i32
    %c0_i32_1 = arith.constant 0 : i32
    return %c0_i32, %c0_i32_0 : i32, i32
  }
  func.func @transform_21(%arg0: i32, %arg1: memref<2xi32, #tpu.memory_space<smem>>) -> (i32, i32) {
    %c0_i32 = arith.constant 0 : i32
    %c0_i32_0 = arith.constant 0 : i32
    %c0_i32_1 = arith.constant 0 : i32
    return %c0_i32, %c0_i32_0 : i32, i32
  }
  func.func @transform_22(%arg0: i32, %arg1: memref<2xi32, #tpu.memory_space<smem>>) -> (i32, i32) {
    %c0_i32 = arith.constant 0 : i32
    %c0_i32_0 = arith.constant 0 : i32
    %c0_i32_1 = arith.constant 0 : i32
    return %c0_i32, %c0_i32_0 : i32, i32
  }
  func.func @transform_23(%arg0: i32, %arg1: memref<2xi32, #tpu.memory_space<smem>>) -> (i32, i32) {
    %c0_i32 = arith.constant 0 : i32
    %c0_i32_0 = arith.constant 0 : i32
    %c0_i32_1 = arith.constant 0 : i32
    return %c0_i32, %c0_i32_0 : i32, i32
  }
  func.func @transform_24(%arg0: i32, %arg1: memref<2xi32, #tpu.memory_space<smem>>) -> (i32, i32) {
    %c0_i32 = arith.constant 0 : i32
    %c0_i32_0 = arith.constant 0 : i32
    %c0_i32_1 = arith.constant 0 : i32
    return %c0_i32, %c0_i32_0 : i32, i32
  }
  func.func @transform_25(%arg0: i32, %arg1: memref<2xi32, #tpu.memory_space<smem>>) -> (i32, i32) {
    %c0_i32 = arith.constant 0 : i32
    %c0_i32_0 = arith.constant 0 : i32
    %c0_i32_1 = arith.constant 0 : i32
    return %c0_i32, %c0_i32_0 : i32, i32
  }
  func.func @transform_26(%arg0: i32, %arg1: memref<2xi32, #tpu.memory_space<smem>>) -> (i32, i32) {
    %c0_i32 = arith.constant 0 : i32
    %c0_i32_0 = arith.constant 0 : i32
    %c0_i32_1 = arith.constant 0 : i32
    return %c0_i32, %c0_i32_0 : i32, i32
  }
  func.func @transform_27(%arg0: i32, %arg1: memref<2xi32, #tpu.memory_space<smem>>) -> (i32, i32) {
    %c0_i32 = arith.constant 0 : i32
    %c0_i32_0 = arith.constant 0 : i32
    %c0_i32_1 = arith.constant 0 : i32
    return %c0_i32, %c0_i32_0 : i32, i32
  }
  func.func @transform_28(%arg0: i32, %arg1: memref<2xi32, #tpu.memory_space<smem>>) -> (i32, i32) {
    %c0_i32 = arith.constant 0 : i32
    %c0_i32_0 = arith.constant 0 : i32
    return %arg0, %c0_i32 : i32, i32
  }
}

</mosaic_0001>

<llo_original>
// kernel: text_encoder_forward.1
$region0: #{text_encoder_forward.1}
  #allocation0 [shape = 'u32[]', space=smem, size = 0x4, offset = 0x4, fixed_abs, tag = 'smem constant byte address 0x4 - core index']
  #allocation1 [shape = 'u32[144,128]{1,0:T(1,128)}', space=vmem, size = 0x12000, scoped, tag = 'internal scratch']
  #allocation2 [shape = 'f32[8,32]{1,0:T(8,128)}', space=vmem, size = 0x1000, scoped, tag = 'scratch operand']
  #allocation3 [shape = 's32[1]{0}', space=sflag, size = 0x4, scoped, tag = 'scoped memory for text_encoder_forward.1']
  #allocation4 [shape = 'u8[512]{0}', space=smem, size = 0x200, scoped, tag = 'prefetched SMEM operand 0']
  #allocation5 [shape = 'f32[1,1]{1,0:T(1,128)S(1)}', space=vmem, size = 0x200, scoped, tag = 'scoped memory for text_encoder_forward.1']
  %s0 = inlined_call_operand.smem [shape: u32[30], index: -1, kind: input, shape index: {}]
  %s1 = sld [smem:[%s0]]
  %s2 = scalar_lea.smem %s0, 1
  %s3 = sld [smem:[%s2]]
  %s4 = scalar_lea.smem %s0, 2
  %s5 = sld [smem:[%s4]]
  %s6 = scalar_lea.smem %s0, 3
  %s7 = sld [smem:[%s6]]
  %s8 = scalar_lea.smem %s0, 4
  %s9 = sld [smem:[%s8]]
  %s10 = scalar_lea.smem %s0, 5
  %s11 = sld [smem:[%s10]]
  %s12 = scalar_lea.smem %s0, 6
  %s13 = sld [smem:[%s12]]
  %s14 = scalar_lea.smem %s0, 7
  %s15 = sld [smem:[%s14]]
  %s16 = scalar_lea.smem %s0, 8
  %s17 = sld [smem:[%s16]]
  %s18 = scalar_lea.smem %s0, 9
  %s19 = sld [smem:[%s18]]
  %s20 = scalar_lea.smem %s0, 10
  %s21 = sld [smem:[%s20]]
  %s22 = scalar_lea.smem %s0, 11
  %s23 = sld [smem:[%s22]]
  %s24 = scalar_lea.smem %s0, 12
  %s25 = sld [smem:[%s24]]
  %s26 = scalar_lea.smem %s0, 13
  %s27 = sld [smem:[%s26]]
  %s28 = scalar_lea.smem %s0, 14
  %s29 = sld [smem:[%s28]]
  %s30 = scalar_lea.smem %s0, 15
  %s31 = sld [smem:[%s30]]
  %s32 = scalar_lea.smem %s0, 16
  %s33 = sld [smem:[%s32]]
  %s34 = scalar_lea.smem %s0, 17
  %s35 = sld [smem:[%s34]]
  %s36 = scalar_lea.smem %s0, 18
  %s37 = sld [smem:[%s36]]
  %s38 = scalar_lea.smem %s0, 19
  %s39 = sld [smem:[%s38]]
  %s40 = scalar_lea.smem %s0, 20
  %s41 = sld [smem:[%s40]]
  %s42 = scalar_lea.smem %s0, 21
  %s43 = sld [smem:[%s42]]
  %s44 = scalar_lea.smem %s0, 22
  %s45 = sld [smem:[%s44]]
  %s46 = scalar_lea.smem %s0, 23
  %s47 = sld [smem:[%s46]]
  %s48 = scalar_lea.smem %s0, 24
  %s49 = sld [smem:[%s48]]
  %s50 = scalar_lea.smem %s0, 25
  %s51 = sld [smem:[%s50]]
  %s52 = scalar_lea.smem %s0, 26
  %s53 = sld [smem:[%s52]]
  %s54 = scalar_lea.smem %s0, 27
  %s55 = sld [smem:[%s54]]
  %s56 = scalar_lea.smem %s0, 28
  %s57 = sld [smem:[%s56]]
  %s58 = scalar_lea.smem %s0, 29
  %s59 = sld [smem:[%s58]]
  %s60 = sld [smem:[#allocation0]]
  $region145: #{text_encoder_forward.1} parent=0
    _
  %s62 = ssub.s32 1, %s60
  %s63 = scalar_select 0, %s62, %s60
  %s64 = sshll.u32 %s1, 4
  %s65 = int_to_ptr.vmem [resolvable:$true] %s64
  %67 = dma.vmem_to_smem %s65, 16, [#allocation4], [#allocation3]
  %v68 = vstv %s57
  %69 = vst [vmem:[#allocation5] sm:$0x1] %v68
  %70 = dma.done [#allocation3], 16
  %71 = sfence
  loop: start=0, step=1, limit=4
  $region2: #{text_encoder_forward.1} parent=0 // loop_pre_header
    _
  $region3: #{text_encoder_forward.1} parent=0 // loop_header
    %s73 = sphi 0, %s77
    %p74 = scmp.ge.s32.totalorder %s73, 4
    %s83 = sphi 0, %s85
    %s86 = sphi 0, %s83
    %s87 = sphi 0, %s86
    %s103 = sphi 0, %s87
    %s109 = sphi 0, %s111
    %s112 = sphi 0, %s109
    %s113 = sphi 0, %s112
    %s129 = sphi 0, %s113
    %s133 = sphi 0, %s133
    %s135 = sphi 0, %s133
    %s136 = sphi 0, %s135
    %s150 = sphi 0, %s136
    %s154 = sphi 0, %s154
    %s156 = sphi 0, %s154
    %s157 = sphi 0, %s156
    %s171 = sphi 0, %s157
    %s175 = sphi 0, %s175
    %s177 = sphi 0, %s175
    %s178 = sphi 0, %s177
    %s192 = sphi 0, %s178
    %s196 = sphi 0, %s196
    %s198 = sphi 0, %s196
    %s199 = sphi 0, %s198
    %s213 = sphi 0, %s199
    %s217 = sphi 0, %s217
    %s219 = sphi 0, %s217
    %s220 = sphi 0, %s219
    %s234 = sphi 0, %s220
    %s238 = sphi 0, %s238
    %s240 = sphi 0, %s238
    %s241 = sphi 0, %s240
    %s255 = sphi 0, %s241
    %s259 = sphi 0, %s259
    %s261 = sphi 0, %s259
    %s262 = sphi 0, %s261
    %s276 = sphi 0, %s262
    %s280 = sphi 0, %s280
    %s282 = sphi 0, %s280
    %s283 = sphi 0, %s282
    %s297 = sphi 0, %s283
    %s301 = sphi 0, %s301
    %s303 = sphi 0, %s301
    %s304 = sphi 0, %s303
    %s318 = sphi 0, %s304
    %s322 = sphi 0, %s322
    %s324 = sphi 0, %s322
    %s325 = sphi 0, %s324
    %s339 = sphi 0, %s325
    %s343 = sphi 0, %s343
    %s345 = sphi 0, %s343
    %s346 = sphi 0, %s345
    %s360 = sphi 0, %s346
    %s364 = sphi 0, %s364
    %s366 = sphi 0, %s364
    %s367 = sphi 0, %s366
    %s381 = sphi 0, %s367
    %s385 = sphi 0, %s385
    %s387 = sphi 0, %s385
    %s388 = sphi 0, %s387
    %s402 = sphi 0, %s388
    %s406 = sphi 0, %s406
    %s408 = sphi 0, %s406
    %s409 = sphi 0, %s408
    %s423 = sphi 0, %s409
    %s427 = sphi 0, %s427
    %s429 = sphi 0, %s427
    %s430 = sphi 0, %s429
    %s444 = sphi 0, %s430
    %s448 = sphi 0, %s448
    %s450 = sphi 0, %s448
    %s451 = sphi 0, %s450
    %s465 = sphi 0, %s451
    %s469 = sphi 0, %s469
    %s471 = sphi 0, %s469
    %s472 = sphi 0, %s471
    %s486 = sphi 0, %s472
    %s490 = sphi 0, %s490
    %s492 = sphi 0, %s490
    %s493 = sphi 0, %s492
    %s507 = sphi 0, %s493
    %s511 = sphi 0, %s511
    %s513 = sphi 0, %s511
    %s514 = sphi 0, %s513
    %s528 = sphi 0, %s514
    %s532 = sphi 0, %s532
    %s534 = sphi 0, %s532
    %s535 = sphi 0, %s534
    %s549 = sphi 0, %s535
    %s553 = sphi 0, %s553
    %s555 = sphi 0, %s553
    %s556 = sphi 0, %s555
    %s570 = sphi 0, %s556
    %s574 = sphi 0, %s574
    %s576 = sphi 0, %s574
    %s577 = sphi 0, %s576
    %s591 = sphi 0, %s577
    %s595 = sphi 0, %s595
    %s597 = sphi 0, %s595
    %s598 = sphi 0, %s597
    %s612 = sphi 0, %s598
    %s616 = sphi 0, %s616
    %s618 = sphi 0, %s616
    %s619 = sphi 0, %s618
    %s633 = sphi 0, %s619
    %s637 = sphi 0, %s637
    %s639 = sphi 0, %s637
    %s640 = sphi 0, %s639
    %s654 = sphi 0, %s640
    %s658 = sphi 0, %s658
    %s660 = sphi 0, %s658
    %s661 = sphi 0, %s660
    %s675 = sphi 0, %s661
    %s681 = sphi 0, %s683
    %s684 = sphi 0, %s681
    %s685 = sphi 0, %s684
    %s701 = sphi 0, %s685
  $region4: #{text_encoder_forward.1} parent=0 // loop_header_branch
    %76 = sbr.rel (%p74) target = $region8
  $region5: #{text_encoder_forward.1} parent=0 // loop_body
    %s78 = ssub.s32 %s73, 1
    %s79 = ssub.s32 %s73, 2
    %s80 = sadd.s32 %s73, 1
    %s81 = ssub.s32 %s73, %s80
    %p82 = scmp.eq.s32.totalorder %s81, 0
    %s84 = sadd.s32 %s83, 1
    %s85 = scalar_select %p82, %s83, %s84
    %p88 = pneg %p82
    %p89 = scmp.eq.s32.totalorder %s73, 1
    %p90 = por %p88, %p89
    %p91 = scmp.ne.s32.totalorder %s83, %s86
    %p92 = scmp.eq.s32.totalorder %s73, 0
    %p93 = por %p91, %p92
    %p94 = scmp.ne.s32.totalorder %s83, %s86
    %p95 = scmp.eq.s32.totalorder %s78, 1
    %p96 = por %p94, %p95
    %p97 = scmp.ne.s32.totalorder %s86, %s87
    %p98 = scmp.eq.s32.totalorder %s78, 0
    %p99 = por %p97, %p98
    %p100 = scmp.ne.s32.totalorder %s86, %s87
    %p101 = scmp.eq.s32.totalorder %s79, 1
    %p102 = por %p100, %p101
    %p104 = scmp.ne.s32.totalorder %s87, %s103
    %p105 = scmp.eq.s32.totalorder %s79, 0
    %p106 = por %p104, %p105
    %s107 = ssub.s32 %s73, %s80
    %p108 = scmp.eq.s32.totalorder %s107, 0
    %s110 = sadd.s32 %s109, 1
    %s111 = scalar_select %p108, %s109, %s110
    %p114 = pneg %p108
    %p115 = scmp.eq.s32.totalorder %s73, 1
    %p116 = por %p114, %p115
    %p117 = scmp.ne.s32.totalorder %s109, %s112
    %p118 = scmp.eq.s32.totalorder %s73, 0
    %p119 = por %p117, %p118
    %p120 = scmp.ne.s32.totalorder %s109, %s112
    %p121 = scmp.eq.s32.totalorder %s78, 1
    %p122 = por %p120, %p121
    %p123 = scmp.ne.s32.totalorder %s112, %s113
    %p124 = scmp.eq.s32.totalorder %s78, 0
    %p125 = por %p123, %p124
    %p126 = scmp.ne.s32.totalorder %s112, %s113
    %p127 = scmp.eq.s32.totalorder %s79, 1
    %p128 = por %p126, %p127
    %p130 = scmp.ne.s32.totalorder %s113, %s129
    %p131 = scmp.eq.s32.totalorder %s79, 0
    %p132 = por %p130, %p131
    %s134 = sadd.s32 %s133, 1
    %p137 = scmp.eq.s32.totalorder %s73, 1
    %p138 = scmp.ne.s32.totalorder %s133, %s135
    %p139 = scmp.eq.s32.totalorder %s73, 0
    %p140 = por %p138, %p139
    %p141 = scmp.ne.s32.totalorder %s133, %s135
    %p142 = scmp.eq.s32.totalorder %s78, 1
    %p143 = por %p141, %p142
    %p144 = scmp.ne.s32.totalorder %s135, %s136
    %p145 = scmp.eq.s32.totalorder %s78, 0
    %p146 = por %p144, %p145
    %p147 = scmp.ne.s32.totalorder %s135, %s136
    %p148 = scmp.eq.s32.totalorder %s79, 1
    %p149 = por %p147, %p148
    %p151 = scmp.ne.s32.totalorder %s136, %s150
    %p152 = scmp.eq.s32.totalorder %s79, 0
    %p153 = por %p151, %p152
    %s155 = sadd.s32 %s154, 1
    %p158 = scmp.eq.s32.totalorder %s73, 1
    %p159 = scmp.ne.s32.totalorder %s154, %s156
    %p160 = scmp.eq.s32.totalorder %s73, 0
    %p161 = por %p159, %p160
    %p162 = scmp.ne.s32.totalorder %s154, %s156
    %p163 = scmp.eq.s32.totalorder %s78, 1
    %p164 = por %p162, %p163
    %p165 = scmp.ne.s32.totalorder %s156, %s157
    %p166 = scmp.eq.s32.totalorder %s78, 0
    %p167 = por %p165, %p166
    %p168 = scmp.ne.s32.totalorder %s156, %s157
    %p169 = scmp.eq.s32.totalorder %s79, 1
    %p170 = por %p168, %p169
    %p172 = scmp.ne.s32.totalorder %s157, %s171
    %p173 = scmp.eq.s32.totalorder %s79, 0
    %p174 = por %p172, %p173
    %s176 = sadd.s32 %s175, 1
    %p179 = scmp.eq.s32.totalorder %s73, 1
    %p180 = scmp.ne.s32.totalorder %s175, %s177
    %p181 = scmp.eq.s32.totalorder %s73, 0
    %p182 = por %p180, %p181
    %p183 = scmp.ne.s32.totalorder %s175, %s177
    %p184 = scmp.eq.s32.totalorder %s78, 1
    %p185 = por %p183, %p184
    %p186 = scmp.ne.s32.totalorder %s177, %s178
    %p187 = scmp.eq.s32.totalorder %s78, 0
    %p188 = por %p186, %p187
    %p189 = scmp.ne.s32.totalorder %s177, %s178
    %p190 = scmp.eq.s32.totalorder %s79, 1
    %p191 = por %p189, %p190
    %p193 = scmp.ne.s32.totalorder %s178, %s192
    %p194 = scmp.eq.s32.totalorder %s79, 0
    %p195 = por %p193, %p194
    %s197 = sadd.s32 %s196, 1
    %p200 = scmp.eq.s32.totalorder %s73, 1
    %p201 = scmp.ne.s32.totalorder %s196, %s198
    %p202 = scmp.eq.s32.totalorder %s73, 0
    %p203 = por %p201, %p202
    %p204 = scmp.ne.s32.totalorder %s196, %s198
    %p205 = scmp.eq.s32.totalorder %s78, 1
    %p206 = por %p204, %p205
    %p207 = scmp.ne.s32.totalorder %s198, %s199
    %p208 = scmp.eq.s32.totalorder %s78, 0
    %p209 = por %p207, %p208
    %p210 = scmp.ne.s32.totalorder %s198, %s199
    %p211 = scmp.eq.s32.totalorder %s79, 1
    %p212 = por %p210, %p211
    %p214 = scmp.ne.s32.totalorder %s199, %s213
    %p215 = scmp.eq.s32.totalorder %s79, 0
    %p216 = por %p214, %p215
    %s218 = sadd.s32 %s217, 1
    %p221 = scmp.eq.s32.totalorder %s73, 1
    %p222 = scmp.ne.s32.totalorder %s217, %s219
    %p223 = scmp.eq.s32.totalorder %s73, 0
    %p224 = por %p222, %p223
    %p225 = scmp.ne.s32.totalorder %s217, %s219
    %p226 = scmp.eq.s32.totalorder %s78, 1
    %p227 = por %p225, %p226
    %p228 = scmp.ne.s32.totalorder %s219, %s220
    %p229 = scmp.eq.s32.totalorder %s78, 0
    %p230 = por %p228, %p229
    %p231 = scmp.ne.s32.totalorder %s219, %s220
    %p232 = scmp.eq.s32.totalorder %s79, 1
    %p233 = por %p231, %p232
    %p235 = scmp.ne.s32.totalorder %s220, %s234
    %p236 = scmp.eq.s32.totalorder %s79, 0
    %p237 = por %p235, %p236
    %s239 = sadd.s32 %s238, 1
    %p242 = scmp.eq.s32.totalorder %s73, 1
    %p243 = scmp.ne.s32.totalorder %s238, %s240
    %p244 = scmp.eq.s32.totalorder %s73, 0
    %p245 = por %p243, %p244
    %p246 = scmp.ne.s32.totalorder %s238, %s240
    %p247 = scmp.eq.s32.totalorder %s78, 1
    %p248 = por %p246, %p247
    %p249 = scmp.ne.s32.totalorder %s240, %s241
    %p250 = scmp.eq.s32.totalorder %s78, 0
    %p251 = por %p249, %p250
    %p252 = scmp.ne.s32.totalorder %s240, %s241
    %p253 = scmp.eq.s32.totalorder %s79, 1
    %p254 = por %p252, %p253
    %p256 = scmp.ne.s32.totalorder %s241, %s255
    %p257 = scmp.eq.s32.totalorder %s79, 0
    %p258 = por %p256, %p257
    %s260 = sadd.s32 %s259, 1
    %p263 = scmp.eq.s32.totalorder %s73, 1
    %p264 = scmp.ne.s32.totalorder %s259, %s261
    %p265 = scmp.eq.s32.totalorder %s73, 0
    %p266 = por %p264, %p265
    %p267 = scmp.ne.s32.totalorder %s259, %s261
    %p268 = scmp.eq.s32.totalorder %s78, 1
    %p269 = por %p267, %p268
    %p270 = scmp.ne.s32.totalorder %s261, %s262
    %p271 = scmp.eq.s32.totalorder %s78, 0
    %p272 = por %p270, %p271
    %p273 = scmp.ne.s32.totalorder %s261, %s262
    %p274 = scmp.eq.s32.totalorder %s79, 1
    %p275 = por %p273, %p274
    %p277 = scmp.ne.s32.totalorder %s262, %s276
    %p278 = scmp.eq.s32.totalorder %s79, 0
    %p279 = por %p277, %p278
    %s281 = sadd.s32 %s280, 1
    %p284 = scmp.eq.s32.totalorder %s73, 1
    %p285 = scmp.ne.s32.totalorder %s280, %s282
    %p286 = scmp.eq.s32.totalorder %s73, 0
    %p287 = por %p285, %p286
    %p288 = scmp.ne.s32.totalorder %s280, %s282
    %p289 = scmp.eq.s32.totalorder %s78, 1
    %p290 = por %p288, %p289
    %p291 = scmp.ne.s32.totalorder %s282, %s283
    %p292 = scmp.eq.s32.totalorder %s78, 0
    %p293 = por %p291, %p292
    %p294 = scmp.ne.s32.totalorder %s282, %s283
    %p295 = scmp.eq.s32.totalorder %s79, 1
    %p296 = por %p294, %p295
    %p298 = scmp.ne.s32.totalorder %s283, %s297
    %p299 = scmp.eq.s32.totalorder %s79, 0
    %p300 = por %p298, %p299
    %s302 = sadd.s32 %s301, 1
    %p305 = scmp.eq.s32.totalorder %s73, 1
    %p306 = scmp.ne.s32.totalorder %s301, %s303
    %p307 = scmp.eq.s32.totalorder %s73, 0
    %p308 = por %p306, %p307
    %p309 = scmp.ne.s32.totalorder %s301, %s303
    %p310 = scmp.eq.s32.totalorder %s78, 1
    %p311 = por %p309, %p310
    %p312 = scmp.ne.s32.totalorder %s303, %s304
    %p313 = scmp.eq.s32.totalorder %s78, 0
    %p314 = por %p312, %p313
    %p315 = scmp.ne.s32.totalorder %s303, %s304
    %p316 = scmp.eq.s32.totalorder %s79, 1
    %p317 = por %p315, %p316
    %p319 = scmp.ne.s32.totalorder %s304, %s318
    %p320 = scmp.eq.s32.totalorder %s79, 0
    %p321 = por %p319, %p320
    %s323 = sadd.s32 %s322, 1
    %p326 = scmp.eq.s32.totalorder %s73, 1
    %p327 = scmp.ne.s32.totalorder %s322, %s324
    %p328 = scmp.eq.s32.totalorder %s73, 0
    %p329 = por %p327, %p328
    %p330 = scmp.ne.s32.totalorder %s322, %s324
    %p331 = scmp.eq.s32.totalorder %s78, 1
    %p332 = por %p330, %p331
    %p333 = scmp.ne.s32.totalorder %s324, %s325
    %p334 = scmp.eq.s32.totalorder %s78, 0
    %p335 = por %p333, %p334
    %p336 = scmp.ne.s32.totalorder %s324, %s325
    %p337 = scmp.eq.s32.totalorder %s79, 1
    %p338 = por %p336, %p337
    %p340 = scmp.ne.s32.totalorder %s325, %s339
    %p341 = scmp.eq.s32.totalorder %s79, 0
    %p342 = por %p340, %p341
    %s344 = sadd.s32 %s343, 1
    %p347 = scmp.eq.s32.totalorder %s73, 1
    %p348 = scmp.ne.s32.totalorder %s343, %s345
    %p349 = scmp.eq.s32.totalorder %s73, 0
    %p350 = por %p348, %p349
    %p351 = scmp.ne.s32.totalorder %s343, %s345
    %p352 = scmp.eq.s32.totalorder %s78, 1
    %p353 = por %p351, %p352
    %p354 = scmp.ne.s32.totalorder %s345, %s346
    %p355 = scmp.eq.s32.totalorder %s78, 0
    %p356 = por %p354, %p355
    %p357 = scmp.ne.s32.totalorder %s345, %s346
    %p358 = scmp.eq.s32.totalorder %s79, 1
    %p359 = por %p357, %p358
    %p361 = scmp.ne.s32.totalorder %s346, %s360
    %p362 = scmp.eq.s32.totalorder %s79, 0
    %p363 = por %p361, %p362
    %s365 = sadd.s32 %s364, 1
    %p368 = scmp.eq.s32.totalorder %s73, 1
    %p369 = scmp.ne.s32.totalorder %s364, %s366
    %p370 = scmp.eq.s32.totalorder %s73, 0
    %p371 = por %p369, %p370
    %p372 = scmp.ne.s32.totalorder %s364, %s366
    %p373 = scmp.eq.s32.totalorder %s78, 1
    %p374 = por %p372, %p373
    %p375 = scmp.ne.s32.totalorder %s366, %s367
    %p376 = scmp.eq.s32.totalorder %s78, 0
    %p377 = por %p375, %p376
    %p378 = scmp.ne.s32.totalorder %s366, %s367
    %p379 = scmp.eq.s32.totalorder %s79, 1
    %p380 = por %p378, %p379
    %p382 = scmp.ne.s32.totalorder %s367, %s381
    %p383 = scmp.eq.s32.totalorder %s79, 0
    %p384 = por %p382, %p383
    %s386 = sadd.s32 %s385, 1
    %p389 = scmp.eq.s32.totalorder %s73, 1
    %p390 = scmp.ne.s32.totalorder %s385, %s387
    %p391 = scmp.eq.s32.totalorder %s73, 0
    %p392 = por %p390, %p391
    %p393 = scmp.ne.s32.totalorder %s385, %s387
    %p394 = scmp.eq.s32.totalorder %s78, 1
    %p395 = por %p393, %p394
    %p396 = scmp.ne.s32.totalorder %s387, %s388
    %p397 = scmp.eq.s32.totalorder %s78, 0
    %p398 = por %p396, %p397
    %p399 = scmp.ne.s32.totalorder %s387, %s388
    %p400 = scmp.eq.s32.totalorder %s79, 1
    %p401 = por %p399, %p400
    %p403 = scmp.ne.s32.totalorder %s388, %s402
    %p404 = scmp.eq.s32.totalorder %s79, 0
    %p405 = por %p403, %p404
    %s407 = sadd.s32 %s406, 1
    %p410 = scmp.eq.s32.totalorder %s73, 1
    %p411 = scmp.ne.s32.totalorder %s406, %s408
    %p412 = scmp.eq.s32.totalorder %s73, 0
    %p413 = por %p411, %p412
    %p414 = scmp.ne.s32.totalorder %s406, %s408
    %p415 = scmp.eq.s32.totalorder %s78, 1
    %p416 = por %p414, %p415
    %p417 = scmp.ne.s32.totalorder %s408, %s409
    %p418 = scmp.eq.s32.totalorder %s78, 0
    %p419 = por %p417, %p418
    %p420 = scmp.ne.s32.totalorder %s408, %s409
    %p421 = scmp.eq.s32.totalorder %s79, 1
    %p422 = por %p420, %p421
    %p424 = scmp.ne.s32.totalorder %s409, %s423
    %p425 = scmp.eq.s32.totalorder %s79, 0
    %p426 = por %p424, %p425
    %s428 = sadd.s32 %s427, 1
    %p431 = scmp.eq.s32.totalorder %s73, 1
    %p432 = scmp.ne.s32.totalorder %s427, %s429
    %p433 = scmp.eq.s32.totalorder %s73, 0
    %p434 = por %p432, %p433
    %p435 = scmp.ne.s32.totalorder %s427, %s429
    %p436 = scmp.eq.s32.totalorder %s78, 1
    %p437 = por %p435, %p436
    %p438 = scmp.ne.s32.totalorder %s429, %s430
    %p439 = scmp.eq.s32.totalorder %s78, 0
    %p440 = por %p438, %p439
    %p441 = scmp.ne.s32.totalorder %s429, %s430
    %p442 = scmp.eq.s32.totalorder %s79, 1
    %p443 = por %p441, %p442
    %p445 = scmp.ne.s32.totalorder %s430, %s444
    %p446 = scmp.eq.s32.totalorder %s79, 0
    %p447 = por %p445, %p446
    %s449 = sadd.s32 %s448, 1
    %p452 = scmp.eq.s32.totalorder %s73, 1
    %p453 = scmp.ne.s32.totalorder %s448, %s450
    %p454 = scmp.eq.s32.totalorder %s73, 0
    %p455 = por %p453, %p454
    %p456 = scmp.ne.s32.totalorder %s448, %s450
    %p457 = scmp.eq.s32.totalorder %s78, 1
    %p458 = por %p456, %p457
    %p459 = scmp.ne.s32.totalorder %s450, %s451
    %p460 = scmp.eq.s32.totalorder %s78, 0
    %p461 = por %p459, %p460
    %p462 = scmp.ne.s32.totalorder %s450, %s451
    %p463 = scmp.eq.s32.totalorder %s79, 1
    %p464 = por %p462, %p463
    %p466 = scmp.ne.s32.totalorder %s451, %s465
    %p467 = scmp.eq.s32.totalorder %s79, 0
    %p468 = por %p466, %p467
    %s470 = sadd.s32 %s469, 1
    %p473 = scmp.eq.s32.totalorder %s73, 1
    %p474 = scmp.ne.s32.totalorder %s469, %s471
    %p475 = scmp.eq.s32.totalorder %s73, 0
    %p476 = por %p474, %p475
    %p477 = scmp.ne.s32.totalorder %s469, %s471
    %p478 = scmp.eq.s32.totalorder %s78, 1
    %p479 = por %p477, %p478
    %p480 = scmp.ne.s32.totalorder %s471, %s472
    %p481 = scmp.eq.s32.totalorder %s78, 0
    %p482 = por %p480, %p481
    %p483 = scmp.ne.s32.totalorder %s471, %s472
    %p484 = scmp.eq.s32.totalorder %s79, 1
    %p485 = por %p483, %p484
    %p487 = scmp.ne.s32.totalorder %s472, %s486
    %p488 = scmp.eq.s32.totalorder %s79, 0
    %p489 = por %p487, %p488
    %s491 = sadd.s32 %s490, 1
    %p494 = scmp.eq.s32.totalorder %s73, 1
    %p495 = scmp.ne.s32.totalorder %s490, %s492
    %p496 = scmp.eq.s32.totalorder %s73, 0
    %p497 = por %p495, %p496
    %p498 = scmp.ne.s32.totalorder %s490, %s492
    %p499 = scmp.eq.s32.totalorder %s78, 1
    %p500 = por %p498, %p499
    %p501 = scmp.ne.s32.totalorder %s492, %s493
    %p502 = scmp.eq.s32.totalorder %s78, 0
    %p503 = por %p501, %p502
    %p504 = scmp.ne.s32.totalorder %s492, %s493
    %p505 = scmp.eq.s32.totalorder %s79, 1
    %p506 = por %p504, %p505
    %p508 = scmp.ne.s32.totalorder %s493, %s507
    %p509 = scmp.eq.s32.totalorder %s79, 0
    %p510 = por %p508, %p509
    %s512 = sadd.s32 %s511, 1
    %p515 = scmp.eq.s32.totalorder %s73, 1
    %p516 = scmp.ne.s32.totalorder %s511, %s513
    %p517 = scmp.eq.s32.totalorder %s73, 0
    %p518 = por %p516, %p517
    %p519 = scmp.ne.s32.totalorder %s511, %s513
    %p520 = scmp.eq.s32.totalorder %s78, 1
    %p521 = por %p519, %p520
    %p522 = scmp.ne.s32.totalorder %s513, %s514
    %p523 = scmp.eq.s32.totalorder %s78, 0
    %p524 = por %p522, %p523
    %p525 = scmp.ne.s32.totalorder %s513, %s514
    %p526 = scmp.eq.s32.totalorder %s79, 1
    %p527 = por %p525, %p526
    %p529 = scmp.ne.s32.totalorder %s514, %s528
    %p530 = scmp.eq.s32.totalorder %s79, 0
    %p531 = por %p529, %p530
    %s533 = sadd.s32 %s532, 1
    %p536 = scmp.eq.s32.totalorder %s73, 1
    %p537 = scmp.ne.s32.totalorder %s532, %s534
    %p538 = scmp.eq.s32.totalorder %s73, 0
    %p539 = por %p537, %p538
    %p540 = scmp.ne.s32.totalorder %s532, %s534
    %p541 = scmp.eq.s32.totalorder %s78, 1
    %p542 = por %p540, %p541
    %p543 = scmp.ne.s32.totalorder %s534, %s535
    %p544 = scmp.eq.s32.totalorder %s78, 0
    %p545 = por %p543, %p544
    %p546 = scmp.ne.s32.totalorder %s534, %s535
    %p547 = scmp.eq.s32.totalorder %s79, 1
    %p548 = por %p546, %p547
    %p550 = scmp.ne.s32.totalorder %s535, %s549
    %p551 = scmp.eq.s32.totalorder %s79, 0
    %p552 = por %p550, %p551
    %s554 = sadd.s32 %s553, 1
    %p557 = scmp.eq.s32.totalorder %s73, 1
    %p558 = scmp.ne.s32.totalorder %s553, %s555
    %p559 = scmp.eq.s32.totalorder %s73, 0
    %p560 = por %p558, %p559
    %p561 = scmp.ne.s32.totalorder %s553, %s555
    %p562 = scmp.eq.s32.totalorder %s78, 1
    %p563 = por %p561, %p562
    %p564 = scmp.ne.s32.totalorder %s555, %s556
    %p565 = scmp.eq.s32.totalorder %s78, 0
    %p566 = por %p564, %p565
    %p567 = scmp.ne.s32.totalorder %s555, %s556
    %p568 = scmp.eq.s32.totalorder %s79, 1
    %p569 = por %p567, %p568
    %p571 = scmp.ne.s32.totalorder %s556, %s570
    %p572 = scmp.eq.s32.totalorder %s79, 0
    %p573 = por %p571, %p572
    %s575 = sadd.s32 %s574, 1
    %p578 = scmp.eq.s32.totalorder %s73, 1
    %p579 = scmp.ne.s32.totalorder %s574, %s576
    %p580 = scmp.eq.s32.totalorder %s73, 0
    %p581 = por %p579, %p580
    %p582 = scmp.ne.s32.totalorder %s574, %s576
    %p583 = scmp.eq.s32.totalorder %s78, 1
    %p584 = por %p582, %p583
    %p585 = scmp.ne.s32.totalorder %s576, %s577
    %p586 = scmp.eq.s32.totalorder %s78, 0
    %p587 = por %p585, %p586
    %p588 = scmp.ne.s32.totalorder %s576, %s577
    %p589 = scmp.eq.s32.totalorder %s79, 1
    %p590 = por %p588, %p589
    %p592 = scmp.ne.s32.totalorder %s577, %s591
    %p593 = scmp.eq.s32.totalorder %s79, 0
    %p594 = por %p592, %p593
    %s596 = sadd.s32 %s595, 1
    %p599 = scmp.eq.s32.totalorder %s73, 1
    %p600 = scmp.ne.s32.totalorder %s595, %s597
    %p601 = scmp.eq.s32.totalorder %s73, 0
    %p602 = por %p600, %p601
    %p603 = scmp.ne.s32.totalorder %s595, %s597
    %p604 = scmp.eq.s32.totalorder %s78, 1
    %p605 = por %p603, %p604
    %p606 = scmp.ne.s32.totalorder %s597, %s598
    %p607 = scmp.eq.s32.totalorder %s78, 0
    %p608 = por %p606, %p607
    %p609 = scmp.ne.s32.totalorder %s597, %s598
    %p610 = scmp.eq.s32.totalorder %s79, 1
    %p611 = por %p609, %p610
    %p613 = scmp.ne.s32.totalorder %s598, %s612
    %p614 = scmp.eq.s32.totalorder %s79, 0
    %p615 = por %p613, %p614
    %s617 = sadd.s32 %s616, 1
    %p620 = scmp.eq.s32.totalorder %s73, 1
    %p621 = scmp.ne.s32.totalorder %s616, %s618
    %p622 = scmp.eq.s32.totalorder %s73, 0
    %p623 = por %p621, %p622
    %p624 = scmp.ne.s32.totalorder %s616, %s618
    %p625 = scmp.eq.s32.totalorder %s78, 1
    %p626 = por %p624, %p625
    %p627 = scmp.ne.s32.totalorder %s618, %s619
    %p628 = scmp.eq.s32.totalorder %s78, 0
    %p629 = por %p627, %p628
    %p630 = scmp.ne.s32.totalorder %s618, %s619
    %p631 = scmp.eq.s32.totalorder %s79, 1
    %p632 = por %p630, %p631
    %p634 = scmp.ne.s32.totalorder %s619, %s633
    %p635 = scmp.eq.s32.totalorder %s79, 0
    %p636 = por %p634, %p635
    %s638 = sadd.s32 %s637, 1
    %p641 = scmp.eq.s32.totalorder %s73, 1
    %p642 = scmp.ne.s32.totalorder %s637, %s639
    %p643 = scmp.eq.s32.totalorder %s73, 0
    %p644 = por %p642, %p643
    %p645 = scmp.ne.s32.totalorder %s637, %s639
    %p646 = scmp.eq.s32.totalorder %s78, 1
    %p647 = por %p645, %p646
    %p648 = scmp.ne.s32.totalorder %s639, %s640
    %p649 = scmp.eq.s32.totalorder %s78, 0
    %p650 = por %p648, %p649
    %p651 = scmp.ne.s32.totalorder %s639, %s640
    %p652 = scmp.eq.s32.totalorder %s79, 1
    %p653 = por %p651, %p652
    %p655 = scmp.ne.s32.totalorder %s640, %s654
    %p656 = scmp.eq.s32.totalorder %s79, 0
    %p657 = por %p655, %p656
    %s659 = sadd.s32 %s658, 1
    %p662 = scmp.eq.s32.totalorder %s73, 1
    %p663 = scmp.ne.s32.totalorder %s658, %s660
    %p664 = scmp.eq.s32.totalorder %s73, 0
    %p665 = por %p663, %p664
    %p666 = scmp.ne.s32.totalorder %s658, %s660
    %p667 = scmp.eq.s32.totalorder %s78, 1
    %p668 = por %p666, %p667
    %p669 = scmp.ne.s32.totalorder %s660, %s661
    %p670 = scmp.eq.s32.totalorder %s78, 0
    %p671 = por %p669, %p670
    %p672 = scmp.ne.s32.totalorder %s660, %s661
    %p673 = scmp.eq.s32.totalorder %s79, 1
    %p674 = por %p672, %p673
    %p676 = scmp.ne.s32.totalorder %s661, %s675
    %p677 = scmp.eq.s32.totalorder %s79, 0
    %p678 = por %p676, %p677
    %s679 = ssub.s32 %s73, %s80
    %p680 = scmp.eq.s32.totalorder %s679, 0
    %s682 = sadd.s32 %s681, 1
    %s683 = scalar_select %p680, %s681, %s682
    %p686 = pneg %p680
    %p687 = scmp.eq.s32.totalorder %s73, 1
    %p688 = por %p686, %p687
    %p689 = scmp.ne.s32.totalorder %s681, %s684
    %p690 = scmp.eq.s32.totalorder %s73, 0
    %p691 = por %p689, %p690
    %p692 = scmp.ne.s32.totalorder %s681, %s684
    %p693 = scmp.eq.s32.totalorder %s78, 1
    %p694 = por %p692, %p693
    %p695 = scmp.ne.s32.totalorder %s684, %s685
    %p696 = scmp.eq.s32.totalorder %s78, 0
    %p697 = por %p695, %p696
    %p698 = scmp.ne.s32.totalorder %s684, %s685
    %p699 = scmp.eq.s32.totalorder %s79, 1
    %p700 = por %p698, %p699
    %p702 = scmp.ne.s32.totalorder %s685, %s701
    %p703 = scmp.eq.s32.totalorder %s79, 0
    %p704 = por %p702, %p703
    %p705 = scmp.le.s32.totalorder 1, %s73
    %p706 = scmp.lt.s32.totalorder %s73, 3
    %p707 = pnand %p705, %p706
    %p708 = pneg %p707
    // Predicated region
    $region9: #{text_encoder_forward.1} parent=5 // pred_check
      _
    $region10: #{text_encoder_forward.1} parent=5 // pred_check_branch
      %710 = sbr.rel (%p707) target = $region12
    $region11: #{text_encoder_forward.1} parent=5 // pred_region
      %s711 = ssub.s32 %s73, 1
      // Predicated region
      $region13: #{text_encoder_forward.1} parent=11 // pred_check
        %p712 = pneg %p146
      $region14: #{text_encoder_forward.1} parent=11 // pred_check_branch
        %714 = sbr.rel (%p712) target = $region16
      $region15: #{text_encoder_forward.1} parent=11 // pred_region
        _
      $region16: #{text_encoder_forward.1} parent=11 // pred_fallthru
        _
      // Predicated region
      $region17: #{text_encoder_forward.1} parent=11 // pred_check
        %p715 = pneg %p167
      $region18: #{text_encoder_forward.1} parent=11 // pred_check_branch
        %717 = sbr.rel (%p715) target = $region20
      $region19: #{text_encoder_forward.1} parent=11 // pred_region
        _
      $region20: #{text_encoder_forward.1} parent=11 // pred_fallthru
        _
      // Predicated region
      $region21: #{text_encoder_forward.1} parent=11 // pred_check
        %p718 = pneg %p188
      $region22: #{text_encoder_forward.1} parent=11 // pred_check_branch
        %720 = sbr.rel (%p718) target = $region24
      $region23: #{text_encoder_forward.1} parent=11 // pred_region
        _
      $region24: #{text_encoder_forward.1} parent=11 // pred_fallthru
        _
      // Predicated region
      $region25: #{text_encoder_forward.1} parent=11 // pred_check
        %p721 = pneg %p209
      $region26: #{text_encoder_forward.1} parent=11 // pred_check_branch
        %723 = sbr.rel (%p721) target = $region28
      $region27: #{text_encoder_forward.1} parent=11 // pred_region
        _
      $region28: #{text_encoder_forward.1} parent=11 // pred_fallthru
        _
      // Predicated region
      $region29: #{text_encoder_forward.1} parent=11 // pred_check
        %p724 = pneg %p230
      $region30: #{text_encoder_forward.1} parent=11 // pred_check_branch
        %726 = sbr.rel (%p724) target = $region32
      $region31: #{text_encoder_forward.1} parent=11 // pred_region
        _
      $region32: #{text_encoder_forward.1} parent=11 // pred_fallthru
        _
      // Predicated region
      $region33: #{text_encoder_forward.1} parent=11 // pred_check
        %p727 = pneg %p251
      $region34: #{text_encoder_forward.1} parent=11 // pred_check_branch
        %729 = sbr.rel (%p727) target = $region36
      $region35: #{text_encoder_forward.1} parent=11 // pred_region
        _
      $region36: #{text_encoder_forward.1} parent=11 // pred_fallthru
        _
      // Predicated region
      $region37: #{text_encoder_forward.1} parent=11 // pred_check
        %p730 = pneg %p272
      $region38: #{text_encoder_forward.1} parent=11 // pred_check_branch
        %732 = sbr.rel (%p730) target = $region40
      $region39: #{text_encoder_forward.1} parent=11 // pred_region
        _
      $region40: #{text_encoder_forward.1} parent=11 // pred_fallthru
        _
      // Predicated region
      $region41: #{text_encoder_forward.1} parent=11 // pred_check
        %p733 = pneg %p293
      $region42: #{text_encoder_forward.1} parent=11 // pred_check_branch
        %735 = sbr.rel (%p733) target = $region44
      $region43: #{text_encoder_forward.1} parent=11 // pred_region
        _
      $region44: #{text_encoder_forward.1} parent=11 // pred_fallthru
        _
      // Predicated region
      $region45: #{text_encoder_forward.1} parent=11 // pred_check
        %p736 = pneg %p314
      $region46: #{text_encoder_forward.1} parent=11 // pred_check_branch
        %738 = sbr.rel (%p736) target = $region48
      $region47: #{text_encoder_forward.1} parent=11 // pred_region
        _
      $region48: #{text_encoder_forward.1} parent=11 // pred_fallthru
        _
      // Predicated region
      $region49: #{text_encoder_forward.1} parent=11 // pred_check
        %p739 = pneg %p335
      $region50: #{text_encoder_forward.1} parent=11 // pred_check_branch
        %741 = sbr.rel (%p739) target = $region52
      $region51: #{text_encoder_forward.1} parent=11 // pred_region
        _
      $region52: #{text_encoder_forward.1} parent=11 // pred_fallthru
        _
      // Predicated region
      $region53: #{text_encoder_forward.1} parent=11 // pred_check
        %p742 = pneg %p356
      $region54: #{text_encoder_forward.1} parent=11 // pred_check_branch
        %744 = sbr.rel (%p742) target = $region56
      $region55: #{text_encoder_forward.1} parent=11 // pred_region
        _
      $region56: #{text_encoder_forward.1} parent=11 // pred_fallthru
        _
      // Predicated region
      $region57: #{text_encoder_forward.1} parent=11 // pred_check
        %p745 = pneg %p377
      $region58: #{text_encoder_forward.1} parent=11 // pred_check_branch
        %747 = sbr.rel (%p745) target = $region60
      $region59: #{text_encoder_forward.1} parent=11 // pred_region
        _
      $region60: #{text_encoder_forward.1} parent=11 // pred_fallthru
        _
      // Predicated region
      $region61: #{text_encoder_forward.1} parent=11 // pred_check
        %p748 = pneg %p398
      $region62: #{text_encoder_forward.1} parent=11 // pred_check_branch
        %750 = sbr.rel (%p748) target = $region64
      $region63: #{text_encoder_forward.1} parent=11 // pred_region
        _
      $region64: #{text_encoder_forward.1} parent=11 // pred_fallthru
        _
      // Predicated region
      $region65: #{text_encoder_forward.1} parent=11 // pred_check
        %p751 = pneg %p419
      $region66: #{text_encoder_forward.1} parent=11 // pred_check_branch
        %753 = sbr.rel (%p751) target = $region68
      $region67: #{text_encoder_forward.1} parent=11 // pred_region
        _
      $region68: #{text_encoder_forward.1} parent=11 // pred_fallthru
        _
      // Predicated region
      $region69: #{text_encoder_forward.1} parent=11 // pred_check
        %p754 = pneg %p440
      $region70: #{text_encoder_forward.1} parent=11 // pred_check_branch
        %756 = sbr.rel (%p754) target = $region72
      $region71: #{text_encoder_forward.1} parent=11 // pred_region
        _
      $region72: #{text_encoder_forward.1} parent=11 // pred_fallthru
        _
      // Predicated region
      $region73: #{text_encoder_forward.1} parent=11 // pred_check
        %p757 = pneg %p461
      $region74: #{text_encoder_forward.1} parent=11 // pred_check_branch
        %759 = sbr.rel (%p757) target = $region76
      $region75: #{text_encoder_forward.1} parent=11 // pred_region
        _
      $region76: #{text_encoder_forward.1} parent=11 // pred_fallthru
        _
      // Predicated region
      $region77: #{text_encoder_forward.1} parent=11 // pred_check
        %p760 = pneg %p482
      $region78: #{text_encoder_forward.1} parent=11 // pred_check_branch
        %762 = sbr.rel (%p760) target = $region80
      $region79: #{text_encoder_forward.1} parent=11 // pred_region
        _
      $region80: #{text_encoder_forward.1} parent=11 // pred_fallthru
        _
      // Predicated region
      $region81: #{text_encoder_forward.1} parent=11 // pred_check
        %p763 = pneg %p503
      $region82: #{text_encoder_forward.1} parent=11 // pred_check_branch
        %765 = sbr.rel (%p763) target = $region84
      $region83: #{text_encoder_forward.1} parent=11 // pred_region
        _
      $region84: #{text_encoder_forward.1} parent=11 // pred_fallthru
        _
      // Predicated region
      $region85: #{text_encoder_forward.1} parent=11 // pred_check
        %p766 = pneg %p524
      $region86: #{text_encoder_forward.1} parent=11 // pred_check_branch
        %768 = sbr.rel (%p766) target = $region88
      $region87: #{text_encoder_forward.1} parent=11 // pred_region
        _
      $region88: #{text_encoder_forward.1} parent=11 // pred_fallthru
        _
      // Predicated region
      $region89: #{text_encoder_forward.1} parent=11 // pred_check
        %p769 = pneg %p545
      $region90: #{text_encoder_forward.1} parent=11 // pred_check_branch
        %771 = sbr.rel (%p769) target = $region92
      $region91: #{text_encoder_forward.1} parent=11 // pred_region
        _
      $region92: #{text_encoder_forward.1} parent=11 // pred_fallthru
        _
      // Predicated region
      $region93: #{text_encoder_forward.1} parent=11 // pred_check
        %p772 = pneg %p566
      $region94: #{text_encoder_forward.1} parent=11 // pred_check_branch
        %774 = sbr.rel (%p772) target = $region96
      $region95: #{text_encoder_forward.1} parent=11 // pred_region
        _
      $region96: #{text_encoder_forward.1} parent=11 // pred_fallthru
        _
      // Predicated region
      $region97: #{text_encoder_forward.1} parent=11 // pred_check
        %p775 = pneg %p587
      $region98: #{text_encoder_forward.1} parent=11 // pred_check_branch
        %777 = sbr.rel (%p775) target = $region100
      $region99: #{text_encoder_forward.1} parent=11 // pred_region
        _
      $region100: #{text_encoder_forward.1} parent=11 // pred_fallthru
        _
      // Predicated region
      $region101: #{text_encoder_forward.1} parent=11 // pred_check
        %p778 = pneg %p608
      $region102: #{text_encoder_forward.1} parent=11 // pred_check_branch
        %780 = sbr.rel (%p778) target = $region104
      $region103: #{text_encoder_forward.1} parent=11 // pred_region
        _
      $region104: #{text_encoder_forward.1} parent=11 // pred_fallthru
        _
      // Predicated region
      $region105: #{text_encoder_forward.1} parent=11 // pred_check
        %p781 = pneg %p629
      $region106: #{text_encoder_forward.1} parent=11 // pred_check_branch
        %783 = sbr.rel (%p781) target = $region108
      $region107: #{text_encoder_forward.1} parent=11 // pred_region
        _
      $region108: #{text_encoder_forward.1} parent=11 // pred_fallthru
        _
      // Predicated region
      $region109: #{text_encoder_forward.1} parent=11 // pred_check
        %p784 = pneg %p650
      $region110: #{text_encoder_forward.1} parent=11 // pred_check_branch
        %786 = sbr.rel (%p784) target = $region112
      $region111: #{text_encoder_forward.1} parent=11 // pred_region
        _
      $region112: #{text_encoder_forward.1} parent=11 // pred_fallthru
        _
      // Predicated region
      $region113: #{text_encoder_forward.1} parent=11 // pred_check
        %p787 = pneg %p671
      $region114: #{text_encoder_forward.1} parent=11 // pred_check_branch
        %789 = sbr.rel (%p787) target = $region116
      $region115: #{text_encoder_forward.1} parent=11 // pred_region
        _
      $region116: #{text_encoder_forward.1} parent=11 // pred_fallthru
        _
    $region12: #{text_encoder_forward.1} parent=5 // pred_fallthru
      _
    %p790 = scmp.lt.s32.totalorder %s73, 2
    // Predicated region
    $region117: #{text_encoder_forward.1} parent=5 // pred_check
      %p791 = pneg %p790
    $region118: #{text_encoder_forward.1} parent=5 // pred_check_branch
      %793 = sbr.rel (%p791) target = $region120
    $region119: #{text_encoder_forward.1} parent=5 // pred_region
      // Predicated region
      $region121: #{text_encoder_forward.1} parent=119 // pred_check
        %p794 = pneg %p93
      $region122: #{text_encoder_forward.1} parent=119 // pred_check_branch
        %796 = sbr.rel (%p794) target = $region124
      $region123: #{text_encoder_forward.1} parent=119 // pred_region
        %p797 = scmp.lt.s32.totalorder %s73, 1
        %s798 = scalar_select %p797, %s73, 1
        %s799 = smul.addr %s798, 8
        %s800 = scalar_lea.vmem %s3, %s799
      $region124: #{text_encoder_forward.1} parent=119 // pred_fallthru
        _
      // Predicated region
      $region125: #{text_encoder_forward.1} parent=119 // pred_check
        %p801 = pneg %p119
      $region126: #{text_encoder_forward.1} parent=119 // pred_check_branch
        %803 = sbr.rel (%p801) target = $region128
      $region127: #{text_encoder_forward.1} parent=119 // pred_region
        %p804 = scmp.lt.s32.totalorder %s73, 1
        %s805 = scalar_select %p804, %s73, 1
        %s806 = scalar_lea.vmem %s5, %s805
      $region128: #{text_encoder_forward.1} parent=119 // pred_fallthru
        _
    $region120: #{text_encoder_forward.1} parent=5 // pred_fallthru
      _
    %p807 = scmp.le.s32.totalorder 1, %s73
    %p808 = scmp.lt.s32.totalorder %s73, 3
    %p809 = pnand %p807, %p808
    %p810 = pneg %p809
    // Predicated region
    $region129: #{text_encoder_forward.1} parent=5 // pred_check
      _
    $region130: #{text_encoder_forward.1} parent=5 // pred_check_branch
      %812 = sbr.rel (%p809) target = $region132
    $region131: #{text_encoder_forward.1} parent=5 // pred_region
      %s813 = ssub.s32 %s73, 1
      %p814 = scmp.lt.s32.totalorder %s78, 1
      %s815 = scalar_select %p814, %s78, 1
      %s816 = smul.addr %s815, 8
      %s817 = scalar_lea.vmem %s3, %s816
      %p818 = pneg %p99
      %p819 = pneg %p96
      %p820 = scmp.lt.s32.totalorder %s78, 1
      %s821 = scalar_select %p820, %s78, 1
      %s822 = scalar_lea.vmem %s5, %s821
      %p823 = pneg %p125
      %p824 = pneg %p122
      %p825 = pneg %p146
      %p826 = pneg %p143
      %p827 = pneg %p167
      %p828 = pneg %p164
      %p829 = pneg %p188
      %p830 = pneg %p185
      %p831 = pneg %p209
      %p832 = pneg %p206
      %p833 = pneg %p230
      %p834 = pneg %p227
      %p835 = pneg %p251
      %p836 = pneg %p248
      %p837 = pneg %p272
      %p838 = pneg %p269
      %p839 = pneg %p293
      %p840 = pneg %p290
      %p841 = pneg %p314
      %p842 = pneg %p311
      %p843 = pneg %p335
      %p844 = pneg %p332
      %p845 = pneg %p356
      %p846 = pneg %p353
      %p847 = pneg %p377
      %p848 = pneg %p374
      %p849 = pneg %p398
      %p850 = pneg %p395
      %p851 = pneg %p419
      %p852 = pneg %p416
      %p853 = pneg %p440
      %p854 = pneg %p437
      %p855 = pneg %p461
      %p856 = pneg %p458
      %p857 = pneg %p482
      %p858 = pneg %p479
      %p859 = pneg %p503
      %p860 = pneg %p500
      %p861 = pneg %p524
      %p862 = pneg %p521
      %p863 = pneg %p545
      %p864 = pneg %p542
      %p865 = pneg %p566
      %p866 = pneg %p563
      %p867 = pneg %p587
      %p868 = pneg %p584
      %p869 = pneg %p608
      %p870 = pneg %p605
      %p871 = pneg %p629
      %p872 = pneg %p626
      %p873 = pneg %p650
      %p874 = pneg %p647
      %p875 = pneg %p671
      %p876 = pneg %p668
      %p877 = pneg %p697
      %p878 = pneg %p694
      %p879 = scmp.lt.s32.totalorder %s78, 1
      %s880 = scalar_select %p879, %s78, 1
      %s881 = smul.addr %s880, 8
      %s882 = scalar_lea.vmem %s59, %s881
      %p883 = scmp.lt.s32.totalorder %s78, 1
      %s884 = scalar_select %p883, %s78, 1
      %s885 = smul.addr %s884, 8
      %s886 = scalar_lea.vmem %s3, %s885
      %p887 = scmp.lt.s32.totalorder %s78, 1
      %s888 = scalar_select %p887, %s78, 1
      %s889 = scalar_lea.vmem %s5, %s888
      %p890 = scmp.lt.s32.totalorder %s78, 1
      %s891 = scalar_select %p890, %s78, 1
      %s892 = smul.addr %s891, 8
      %s893 = scalar_lea.vmem %s59, %s892
      %s895 = sld [smem:[#allocation4 + %s78]]
      %v896 = vlaneseq
      %v897 = vshrl.u32 %v896, 7
      %v898 = vstv %s895
      %vm899 = vcmp.lt.s32.totalorder %v897, %v898
      %v900 = vsel %vm899, 1, 0
      %v901 = vcvt.s32.f32 %v900
      %vm902 = vcmp.ge.s32.totalorder %v897, 1
      %v903 = vsel %vm902, 1, 0
      %v904 = vcvt.s32.f32 %v903
      %vm905 = vcmp.le.s32.totalorder %v897, 6
      %v906 = vsel %vm905, 1, 0
      %v907 = vcvt.s32.f32 %v906
      %vm908 = vcmp.le.s32.totalorder %v897, %v898
      %vm909 = vmand %vm902, %vm908
      %v910 = vsel %vm909, 1, 0
      %v911 = vcvt.s32.f32 %v910
      %v912 = vadd.s32 %v897, 1
      %vm913 = vcmp.lt.s32.totalorder %v912, %v898
      %v914 = vsel %vm913, 1, 0
      %v915 = vcvt.s32.f32 %v914
      %v916 = vlaneseq
      %v917 = vand.u32 %v916, 127
      %vm918 = vcmp.lt.s32.totalorder %v917, %v898
      %vm919 = vmand %vm899, %vm918
      %v920 = vld [vmem:[%s886] sm:$0xff]
      %921 = vset.pattern.permute.xlu0 0
      %922 = vperm.xlu0 %921, %v920
      %v923 = vpop.permute.xlu0 %922
      %vm924 = vcmp.eq.s32.totalorder %v923, %v917
      %v925 = vsel %vm924, 1, 0
      %v926 = vcvt.s32.f32 %v925
      %v927 = vpack.c.bf16 %v926, %v926
      %v928 = vld [vmem:[%s7] sm:$0xf]
      %v929 = vld [vmem:[%s7 + $0x4] sm:$0xf]
      %v930 = vld [vmem:[%s7 + $0x8] sm:$0xf]
      %v931 = vld [vmem:[%s7 + $0xc] sm:$0xf]
      %v932 = vld [vmem:[%s7 + $0x10] sm:$0xf]
      %v938 = vunpack.c.l.b16 %v928
      %v939 = vunpack.c.l.b16 %v929
      %v940 = vunpack.c.l.b16 %v930
      %v941 = vunpack.c.l.b16 %v931
      %v942 = vunpack.c.l.b16 %v932
      %v943 = vpack.c.b16 %v939, %v938
      %v944 = vpack.c.b16 %v941, %v940
      %v945 = vpack.c.b16 %v942, %v942
      %vm948 = vcmask 326656
      %v950 = vsel %vm948, %v927, 0
      %vm952 = vcmask 1043456
      %v954 = vsel %vm952, %v945, 0
      %956 = vmatprep.subr.bf16.mxu0 0
      %957 = vmatpush1.bf16.msra.mxu0 %v943
      %958 = vmatprep.subr.bf16.mxu0 0
      %959 = vmatpush1.bf16.msra.mxu0 %v944
      %960 = vmatprep.subr.bf16.mxu0 0
      %961 = vmatpush1.bf16.msra.mxu0 %v954
      %962 = vmatprep.subr.bf16.mxu0 0
      %963 = vmatpush1.bf16.msra.mxu0 0
      %964 = vmatprep.subr.bf16.mxu0 0
      %965 = vmatpush1.bf16.msra.mxu0 0
      %966 = vmatprep.subr.bf16.mxu0 0
      %967 = vmatpush1.bf16.msra.mxu0 0
      %968 = vmatprep.subr.bf16.mxu0 0
      %969 = vmatpush1.bf16.msra.mxu0 0
      %970 = vmatprep.subr.bf16.mxu0 0
      %971 = vmatpush1.bf16.msra.mxu0 0
      %972 = vmatprep.subr.bf16.mxu0 0
      %973 = vmatpush1.bf16.msra.mxu0 0
      %974 = vmatprep.subr.bf16.mxu0 0
      %975 = vmatpush1.bf16.msra.mxu0 0
      %976 = vmatprep.subr.bf16.mxu0 0
      %977 = vmatpush1.bf16.msra.mxu0 0
      %978 = vmatprep.subr.bf16.mxu0 0
      %979 = vmatpush1.bf16.msra.mxu0 0
      %980 = vmatprep.subr.bf16.mxu0 0
      %981 = vmatpush1.bf16.msra.mxu0 0
      %982 = vmatprep.subr.bf16.mxu0 0
      %983 = vmatpush1.bf16.msra.mxu0 0
      %984 = vmatprep.subr.bf16.mxu0 0
      %985 = vmatpush1.bf16.msra.mxu0 0
      %986 = vmatprep.subr.bf16.mxu0 0
      %987 = vmatpush1.bf16.msra.mxu0 0
      %988 = vmatprep.mubr.bf16.mxu0 0
      %989 = vmatmul.mubr.bf16.gmra.mrb[0].mxu0 %v950
      %v990 = vpop.f32.mrb[0].mxu0
      %v991 = vadd.f32 0.0, %v990
      %v992 = vpop.f32.mrb[0].mxu0
      %v993 = vpop.f32.mrb[0].mxu0
      %v994 = vpop.f32.mrb[0].mxu0
      %995 = vdwg.mxu0
      %v996 = vmul.f32 %v991, %v901
      %v997 = vld [vmem:[%s9] sm:$0xf]
      %v998 = vld [vmem:[%s9 + $0x4] sm:$0xf]
      %v999 = vld [vmem:[%s9 + $0x8] sm:$0xf]
      %v1000 = vld [vmem:[%s9 + $0xc] sm:$0xf]
      %v1001 = vpack.c.bf16 %v996, %v996
      %v1002 = vld [vmem:[%s11] sm:$0x1]
      %v1004 = vlaneseq
      %v1005 = vshrl.u32 %v1004, 7
      %v1006 = vsub.s32 0, %v1005
      %v1007 = vrot.slane %v1002, %v1006
      %v1013 = vunpack.c.l.b16 %v997
      %v1014 = vunpack.c.l.b16 %v998
      %v1015 = vunpack.c.l.b16 %v999
      %v1016 = vunpack.c.l.b16 %v1000
      %v1017 = vpack.c.b16 %v1014, %v1013
      %v1018 = vpack.c.b16 %v1016, %v1015
      %vm1021 = vcmask 261120
      %v1023 = vsel %vm1021, %v1001, 0
      %1025 = vmatprep.subr.bf16.mxu0 0
      %1026 = vmatpush1.bf16.msra.mxu0 %v1017
      %1027 = vmatprep.subr.bf16.mxu0 0
      %1028 = vmatpush1.bf16.msra.mxu0 %v1018
      %1029 = vmatprep.subr.bf16.mxu0 0
      %1030 = vmatpush1.bf16.msra.mxu0 0
      %1031 = vmatprep.subr.bf16.mxu0 0
      %1032 = vmatpush1.bf16.msra.mxu0 0
      %1033 = vmatprep.subr.bf16.mxu0 0
      %1034 = vmatpush1.bf16.msra.mxu0 0
      %1035 = vmatprep.subr.bf16.mxu0 0
      %1036 = vmatpush1.bf16.msra.mxu0 0
      %1037 = vmatprep.subr.bf16.mxu0 0
      %1038 = vmatpush1.bf16.msra.mxu0 0
      %1039 = vmatprep.subr.bf16.mxu0 0
      %1040 = vmatpush1.bf16.msra.mxu0 0
      %1041 = vmatprep.subr.bf16.mxu0 0
      %1042 = vmatpush1.bf16.msra.mxu0 0
      %1043 = vmatprep.subr.bf16.mxu0 0
      %1044 = vmatpush1.bf16.msra.mxu0 0
      %1045 = vmatprep.subr.bf16.mxu0 0
      %1046 = vmatpush1.bf16.msra.mxu0 0
      %1047 = vmatprep.subr.bf16.mxu0 0
      %1048 = vmatpush1.bf16.msra.mxu0 0
      %1049 = vmatprep.subr.bf16.mxu0 0
      %1050 = vmatpush1.bf16.msra.mxu0 0
      %1051 = vmatprep.subr.bf16.mxu0 0
      %1052 = vmatpush1.bf16.msra.mxu0 0
      %1053 = vmatprep.subr.bf16.mxu0 0
      %1054 = vmatpush1.bf16.msra.mxu0 0
      %1055 = vmatprep.subr.bf16.mxu0 0
      %1056 = vmatpush1.bf16.msra.mxu0 0
      %1057 = vmatprep.mubr.bf16.mxu0 0
      %1058 = vmatmul.mubr.bf16.gmra.mrb[0].mxu0 %v1023
      %v1059 = vpop.f32.mrb[0].mxu0
      %v1060 = vadd.f32 %v1007, %v1059
      %v1061 = vpop.f32.mrb[0].mxu0
      %v1062 = vpop.f32.mrb[0].mxu0
      %v1063 = vpop.f32.mrb[0].mxu0
      %1064 = vdwg.mxu0
      %v1065 = vmul.f32 %v1060, 0.25
      %v1066 = vpack.c.bf16 %v1065, %v1065
      %v1067 = vpack.c.bf16 %v1060, %v1060
      %1069 = vrot.lane.b32.xlu0 %v1067, 96
      %v1070 = vpop.permute.xlu0 %1069
      %vm1071 = vcmask 130048
      %v1073 = vsel %vm1071, %v1066, 0
      %v1076 = vsel %vm1071, %v1070, 0
      %1078 = vmatprep.subr.bf16.mxu0 0
      %1079 = vmatpush1.bf16.xpose.msra.mxu0 %v1076
      %1080 = vmatprep.subr.bf16.mxu0 0
      %1081 = vmatpush1.bf16.xpose.msra.mxu0 0
      %1082 = vmatprep.subr.bf16.mxu0 0
      %1083 = vmatpush1.bf16.xpose.msra.mxu0 0
      %1084 = vmatprep.subr.bf16.mxu0 0
      %1085 = vmatpush1.bf16.xpose.msra.mxu0 0
      %1086 = vmatprep.subr.bf16.mxu0 0
      %1087 = vmatpush1.bf16.xpose.msra.mxu0 0
      %1088 = vmatprep.subr.bf16.mxu0 0
      %1089 = vmatpush1.bf16.xpose.msra.mxu0 0
      %1090 = vmatprep.subr.bf16.mxu0 0
      %1091 = vmatpush1.bf16.xpose.msra.mxu0 0
      %1092 = vmatprep.subr.bf16.mxu0 0
      %1093 = vmatpush1.bf16.xpose.msra.mxu0 0
      %1094 = vmatprep.subr.bf16.mxu0 0
      %1095 = vmatpush1.bf16.xpose.msra.mxu0 0
      %1096 = vmatprep.subr.bf16.mxu0 0
      %1097 = vmatpush1.bf16.xpose.msra.mxu0 0
      %1098 = vmatprep.subr.bf16.mxu0 0
      %1099 = vmatpush1.bf16.xpose.msra.mxu0 0
      %1100 = vmatprep.subr.bf16.mxu0 0
      %1101 = vmatpush1.bf16.xpose.msra.mxu0 0
      %1102 = vmatprep.subr.bf16.mxu0 0
      %1103 = vmatpush1.bf16.xpose.msra.mxu0 0
      %1104 = vmatprep.subr.bf16.mxu0 0
      %1105 = vmatpush1.bf16.xpose.msra.mxu0 0
      %1106 = vmatprep.subr.bf16.mxu0 0
      %1107 = vmatpush1.bf16.xpose.msra.mxu0 0
      %1108 = vmatprep.subr.bf16.mxu0 0
      %1109 = vmatpush1.bf16.xpose.msra.mxu0 0
      %1110 = vmatprep.mubr.bf16.mxu0 0
      %1111 = vmatmul.mubr.bf16.gmra.mrb[0].mxu0 %v1073
      %v1112 = vpop.f32.mrb[0].mxu0
      %v1113 = vadd.f32 0.0, %v1112
      %v1114 = vpop.f32.mrb[0].mxu0
      %v1115 = vpop.f32.mrb[0].mxu0
      %v1116 = vpop.f32.mrb[0].mxu0
      %1117 = vdwg.mxu0
      %v1118 = vsel %vm919, %v1113, -10000.0
      %vm1119 = vcmask 64512
      %v1120 = vsel %vm1119, %v1118, -inf
      %1121 = vmax.xlane.f32.xlu0 %v1120
      %v1122 = vpop.xlane.xlu0 %1121
      %v1123 = vsub.f32 %v1118, %v1122
      %v1124 = vmul.f32 %v1123, 1.442695
      %v1125 = vpow.pop %v1124
      %v1126 = vsel %vm1119, %v1125, 0.0
      %1127 = vadd.xlane.f32.xlu0 %v1126
      %v1128 = vpop.xlane.xlu0 %1127
      %v1129 = vrcp.pop %v1128
      %v1130 = vmul.f32 %v1125, %v1129
      %v1131 = vpack.c.bf16 %v1130, %v1130
      %1132 = vrot.lane.b32.xlu0 %v1067, 64
      %v1133 = vpop.permute.xlu0 %1132
      %v1135 = vsel %vm1119, %v1131, 0
      %v1138 = vsel %vm952, %v1133, 0
      %1140 = vmatprep.subr.bf16.mxu0 0
      %1141 = vmatpush1.bf16.msra.mxu0 %v1138
      %1142 = vmatprep.subr.bf16.mxu0 0
      %1143 = vmatpush1.bf16.msra.mxu0 0
      %1144 = vmatprep.subr.bf16.mxu0 0
      %1145 = vmatpush1.bf16.msra.mxu0 0
      %1146 = vmatprep.subr.bf16.mxu0 0
      %1147 = vmatpush1.bf16.msra.mxu0 0
      %1148 = vmatprep.subr.bf16.mxu0 0
      %1149 = vmatpush1.bf16.msra.mxu0 0
      %1150 = vmatprep.subr.bf16.mxu0 0
      %1151 = vmatpush1.bf16.msra.mxu0 0
      %1152 = vmatprep.subr.bf16.mxu0 0
      %1153 = vmatpush1.bf16.msra.mxu0 0
      %1154 = vmatprep.subr.bf16.mxu0 0
      %1155 = vmatpush1.bf16.msra.mxu0 0
      %1156 = vmatprep.subr.bf16.mxu0 0
      %1157 = vmatpush1.bf16.msra.mxu0 0
      %1158 = vmatprep.subr.bf16.mxu0 0
      %1159 = vmatpush1.bf16.msra.mxu0 0
      %1160 = vmatprep.subr.bf16.mxu0 0
      %1161 = vmatpush1.bf16.msra.mxu0 0
      %1162 = vmatprep.subr.bf16.mxu0 0
      %1163 = vmatpush1.bf16.msra.mxu0 0
      %1164 = vmatprep.subr.bf16.mxu0 0
      %1165 = vmatpush1.bf16.msra.mxu0 0
      %1166 = vmatprep.subr.bf16.mxu0 0
      %1167 = vmatpush1.bf16.msra.mxu0 0
      %1168 = vmatprep.subr.bf16.mxu0 0
      %1169 = vmatpush1.bf16.msra.mxu0 0
      %1170 = vmatprep.subr.bf16.mxu0 0
      %1171 = vmatpush1.bf16.msra.mxu0 0
      %1172 = vmatprep.mubr.bf16.mxu0 0
      %1173 = vmatmul.mubr.bf16.gmra.mrb[0].mxu0 %v1135
      %v1174 = vpop.f32.mrb[0].mxu0
      %v1175 = vadd.f32 0.0, %v1174
      %v1176 = vpop.f32.mrb[0].mxu0
      %v1177 = vpop.f32.mrb[0].mxu0
      %v1178 = vpop.f32.mrb[0].mxu0
      %1179 = vdwg.mxu0
      %1180 = vst.msk [vmem:[#allocation2] sm:$0xff] %vm1071, %v1175
      %1182 = vrot.lane.b32.xlu0 %v1066, 112
      %v1183 = vpop.permute.xlu0 %1182
      %1184 = vrot.lane.b32.xlu0 %v1067, 80
      %v1185 = vpop.permute.xlu0 %1184
      %v1187 = vsel %vm1071, %v1183, 0
      %v1190 = vsel %vm1071, %v1185, 0
      %1192 = vmatprep.subr.bf16.mxu0 0
      %1193 = vmatpush1.bf16.xpose.msra.mxu0 %v1190
      %1194 = vmatprep.subr.bf16.mxu0 0
      %1195 = vmatpush1.bf16.xpose.msra.mxu0 0
      %1196 = vmatprep.subr.bf16.mxu0 0
      %1197 = vmatpush1.bf16.xpose.msra.mxu0 0
      %1198 = vmatprep.subr.bf16.mxu0 0
      %1199 = vmatpush1.bf16.xpose.msra.mxu0 0
      %1200 = vmatprep.subr.bf16.mxu0 0
      %1201 = vmatpush1.bf16.xpose.msra.mxu0 0
      %1202 = vmatprep.subr.bf16.mxu0 0
      %1203 = vmatpush1.bf16.xpose.msra.mxu0 0
      %1204 = vmatprep.subr.bf16.mxu0 0
      %1205 = vmatpush1.bf16.xpose.msra.mxu0 0
      %1206 = vmatprep.subr.bf16.mxu0 0
      %1207 = vmatpush1.bf16.xpose.msra.mxu0 0
      %1208 = vmatprep.subr.bf16.mxu0 0
      %1209 = vmatpush1.bf16.xpose.msra.mxu0 0
      %1210 = vmatprep.subr.bf16.mxu0 0
      %1211 = vmatpush1.bf16.xpose.msra.mxu0 0
      %1212 = vmatprep.subr.bf16.mxu0 0
      %1213 = vmatpush1.bf16.xpose.msra.mxu0 0
      %1214 = vmatprep.subr.bf16.mxu0 0
      %1215 = vmatpush1.bf16.xpose.msra.mxu0 0
      %1216 = vmatprep.subr.bf16.mxu0 0
      %1217 = vmatpush1.bf16.xpose.msra.mxu0 0
      %1218 = vmatprep.subr.bf16.mxu0 0
      %1219 = vmatpush1.bf16.xpose.msra.mxu0 0
      %1220 = vmatprep.subr.bf16.mxu0 0
      %1221 = vmatpush1.bf16.xpose.msra.mxu0 0
      %1222 = vmatprep.subr.bf16.mxu0 0
      %1223 = vmatpush1.bf16.xpose.msra.mxu0 0
      %1224 = vmatprep.mubr.bf16.mxu0 0
      %1225 = vmatmul.mubr.bf16.gmra.mrb[0].mxu0 %v1187
      %v1226 = vpop.f32.mrb[0].mxu0
      %v1227 = vadd.f32 0.0, %v1226
      %v1228 = vpop.f32.mrb[0].mxu0
      %v1229 = vpop.f32.mrb[0].mxu0
      %v1230 = vpop.f32.mrb[0].mxu0
      %1231 = vdwg.mxu0
      %v1232 = vsel %vm919, %v1227, -10000.0
      %v1233 = vsel %vm1119, %v1232, -inf
      %1234 = vmax.xlane.f32.xlu0 %v1233
      %v1235 = vpop.xlane.xlu0 %1234
      %v1236 = vsub.f32 %v1232, %v1235
      %v1237 = vmul.f32 %v1236, 1.442695
      %v1238 = vpow.pop %v1237
      %v1239 = vsel %vm1119, %v1238, 0.0
      %1240 = vadd.xlane.f32.xlu0 %v1239
      %v1241 = vpop.xlane.xlu0 %1240
      %v1242 = vrcp.pop %v1241
      %v1243 = vmul.f32 %v1238, %v1242
      %v1244 = vpack.c.bf16 %v1243, %v1243
      %1245 = vrot.lane.b32.xlu0 %v1067, 48
      %v1246 = vpop.permute.xlu0 %1245
      %v1248 = vsel %vm1119, %v1244, 0
      %v1251 = vsel %vm952, %v1246, 0
      %1253 = vmatprep.subr.bf16.mxu0 0
      %1254 = vmatpush1.bf16.msra.mxu0 %v1251
      %1255 = vmatprep.subr.bf16.mxu0 0
      %1256 = vmatpush1.bf16.msra.mxu0 0
      %1257 = vmatprep.subr.bf16.mxu0 0
      %1258 = vmatpush1.bf16.msra.mxu0 0
      %1259 = vmatprep.subr.bf16.mxu0 0
      %1260 = vmatpush1.bf16.msra.mxu0 0
      %1261 = vmatprep.subr.bf16.mxu0 0
      %1262 = vmatpush1.bf16.msra.mxu0 0
      %1263 = vmatprep.subr.bf16.mxu0 0
      %1264 = vmatpush1.bf16.msra.mxu0 0
      %1265 = vmatprep.subr.bf16.mxu0 0
      %1266 = vmatpush1.bf16.msra.mxu0 0
      %1267 = vmatprep.subr.bf16.mxu0 0
      %1268 = vmatpush1.bf16.msra.mxu0 0
      %1269 = vmatprep.subr.bf16.mxu0 0
      %1270 = vmatpush1.bf16.msra.mxu0 0
      %1271 = vmatprep.subr.bf16.mxu0 0
      %1272 = vmatpush1.bf16.msra.mxu0 0
      %1273 = vmatprep.subr.bf16.mxu0 0
      %1274 = vmatpush1.bf16.msra.mxu0 0
      %1275 = vmatprep.subr.bf16.mxu0 0
      %1276 = vmatpush1.bf16.msra.mxu0 0
      %1277 = vmatprep.subr.bf16.mxu0 0
      %1278 = vmatpush1.bf16.msra.mxu0 0
      %1279 = vmatprep.subr.bf16.mxu0 0
      %1280 = vmatpush1.bf16.msra.mxu0 0
      %1281 = vmatprep.subr.bf16.mxu0 0
      %1282 = vmatpush1.bf16.msra.mxu0 0
      %1283 = vmatprep.subr.bf16.mxu0 0
      %1284 = vmatpush1.bf16.msra.mxu0 0
      %1285 = vmatprep.mubr.bf16.mxu0 0
      %1286 = vmatmul.mubr.bf16.gmra.mrb[0].mxu0 %v1248
      %v1287 = vpop.f32.mrb[0].mxu0
      %v1288 = vadd.f32 0.0, %v1287
      %v1289 = vpop.f32.mrb[0].mxu0
      %v1290 = vpop.f32.mrb[0].mxu0
      %v1291 = vpop.f32.mrb[0].mxu0
      %1292 = vdwg.mxu0
      %1294 = vrot.lane.b32.xlu0 %v1288, 16
      %v1295 = vpop.permute.xlu0 %1294
      %vm1297 = vcmask 261248
      %1298 = vst.msk [vmem:[#allocation2] sm:$0xff] %vm1297, %v1295
      %v1299 = vld [vmem:[#allocation2] sm:$0xff]
      %v1300 = vld [vmem:[%s13] sm:$0xf]
      %v1301 = vld [vmem:[%s13 + $0x4] sm:$0xf]
      %v1302 = vld [vmem:[%s13 + $0x8] sm:$0xf]
      %v1303 = vld [vmem:[%s13 + $0xc] sm:$0xf]
      %v1304 = vpack.c.bf16 %v1299, %v1299
      %v1309 = vunpack.c.l.b16 %v1300
      %v1310 = vunpack.c.l.b16 %v1301
      %v1311 = vunpack.c.l.b16 %v1302
      %v1312 = vunpack.c.l.b16 %v1303
      %v1313 = vpack.c.b16 %v1310, %v1309
      %v1314 = vpack.c.b16 %v1312, %v1311
      %v1318 = vsel %vm1021, %v1304, 0
      %1320 = vmatprep.subr.bf16.mxu0 0
      %1321 = vmatpush1.bf16.msra.mxu0 %v1313
      %1322 = vmatprep.subr.bf16.mxu0 0
      %1323 = vmatpush1.bf16.msra.mxu0 %v1314
      %1324 = vmatprep.subr.bf16.mxu0 0
      %1325 = vmatpush1.bf16.msra.mxu0 0
      %1326 = vmatprep.subr.bf16.mxu0 0
      %1327 = vmatpush1.bf16.msra.mxu0 0
      %1328 = vmatprep.subr.bf16.mxu0 0
      %1329 = vmatpush1.bf16.msra.mxu0 0
      %1330 = vmatprep.subr.bf16.mxu0 0
      %1331 = vmatpush1.bf16.msra.mxu0 0
      %1332 = vmatprep.subr.bf16.mxu0 0
      %1333 = vmatpush1.bf16.msra.mxu0 0
      %1334 = vmatprep.subr.bf16.mxu0 0
      %1335 = vmatpush1.bf16.msra.mxu0 0
      %1336 = vmatprep.subr.bf16.mxu0 0
      %1337 = vmatpush1.bf16.msra.mxu0 0
      %1338 = vmatprep.subr.bf16.mxu0 0
      %1339 = vmatpush1.bf16.msra.mxu0 0
      %1340 = vmatprep.subr.bf16.mxu0 0
      %1341 = vmatpush1.bf16.msra.mxu0 0
      %1342 = vmatprep.subr.bf16.mxu0 0
      %1343 = vmatpush1.bf16.msra.mxu0 0
      %1344 = vmatprep.subr.bf16.mxu0 0
      %1345 = vmatpush1.bf16.msra.mxu0 0
      %1346 = vmatprep.subr.bf16.mxu0 0
      %1347 = vmatpush1.bf16.msra.mxu0 0
      %1348 = vmatprep.subr.bf16.mxu0 0
      %1349 = vmatpush1.bf16.msra.mxu0 0
      %1350 = vmatprep.subr.bf16.mxu0 0
      %1351 = vmatpush1.bf16.msra.mxu0 0
      %1352 = vmatprep.mubr.bf16.mxu0 0
      %1353 = vmatmul.mubr.bf16.gmra.mrb[0].mxu0 %v1318
      %v1354 = vpop.f32.mrb[0].mxu0
      %v1355 = vadd.f32 0.0, %v1354
      %v1356 = vpop.f32.mrb[0].mxu0
      %v1357 = vpop.f32.mrb[0].mxu0
      %v1358 = vpop.f32.mrb[0].mxu0
      %1359 = vdwg.mxu0
      %v1360 = vadd.f32 %v996, %v1355
      %v1361 = vld [vmem:[%s15] sm:$0x1]
      %v1363 = vlaneseq
      %v1364 = vshrl.u32 %v1363, 7
      %v1365 = vsub.s32 0, %v1364
      %v1366 = vrot.slane %v1361, %v1365
      %v1368 = vadd.f32 %v1360, %v1366
      %v1369 = vld [vmem:[%s17] sm:$0x1]
      %v1370 = vld [vmem:[%s19] sm:$0x1]
      %v1371 = vsel %vm1021, %v1368, 0.0
      %1372 = vadd.xlane.f32.xlu0 %v1371
      %v1373 = vpop.xlane.xlu0 %1372
      %v1374 = vrcp.pop 32.0
      %v1375 = vmul.f32 %v1373, %v1374
      %v1376 = vsub.f32 %v1368, %v1375
      %v1377 = vmul.f32 %v1376, %v1376
      %v1378 = vsel %vm1021, %v1377, 0.0
      %1379 = vadd.xlane.f32.xlu0 %v1378
      %v1380 = vpop.xlane.xlu0 %1379
      %v1381 = vmul.f32 %v1380, %v1374
      %v1382 = vadd.f32 %v1381, 0.0001
      %v1383 = vrsqrt.pop %v1382
      %v1384 = vmul.f32 %v1376, %v1383
      %v1386 = vlaneseq
      %v1387 = vshrl.u32 %v1386, 7
      %v1388 = vsub.s32 0, %v1387
      %v1389 = vrot.slane %v1369, %v1388
      %v1391 = vmul.f32 %v1384, %v1389
      %v1393 = vlaneseq
      %v1394 = vshrl.u32 %v1393, 7
      %v1395 = vsub.s32 0, %v1394
      %v1396 = vrot.slane %v1370, %v1395
      %v1398 = vadd.f32 %v1391, %v1396
      %v1399 = vmul.f32 %v1398, %v901
      %v1400 = vld [vmem:[%s21] sm:$0xf]
      %v1401 = vld [vmem:[%s21 + $0x4] sm:$0xf]
      %v1402 = vld [vmem:[%s21 + $0x8] sm:$0xf]
      %v1403 = vld [vmem:[%s21 + $0xc] sm:$0xf]
      %v1404 = vld [vmem:[%s21 + $0x10] sm:$0xf]
      %v1405 = vld [vmem:[%s21 + $0x14] sm:$0xf]
      %v1406 = vld [vmem:[%s21 + $0x18] sm:$0xf]
      %v1407 = vld [vmem:[%s21 + $0x1c] sm:$0xf]
      %v1408 = vld [vmem:[%s21 + $0x20] sm:$0xf]
      %v1409 = vld [vmem:[%s21 + $0x24] sm:$0xf]
      %v1410 = vld [vmem:[%s21 + $0x28] sm:$0xf]
      %v1411 = vld [vmem:[%s21 + $0x2c] sm:$0xf]
      %v1412 = vld [vmem:[%s23] sm:$0x1]
      %v1413 = vrot.slane %v1399, 7
      %v1414 = vmul.f32 %v1413, %v904
      %v1415 = vrot.slane %v1399, 1
      %v1416 = vmul.f32 %v1415, %v907
      %1418 = vrot.lane.b32.xlu0 %v1399, 32
      %v1419 = vpop.permute.xlu0 %1418
      %1422 = vrot.lane.b32.xlu0 %v1416, 64
      %v1423 = vpop.permute.xlu0 %1422
      %v1425 = vsel %vm1021, %v1414, %v1419
      %vm1426 = vcmask 523264
      %v1427 = vsel %vm1426, %v1425, %v1423
      %v1428 = vpack.c.bf16 %v1427, %v1427
      %v1430 = vlaneseq
      %v1431 = vshrl.u32 %v1430, 7
      %v1432 = vsub.s32 0, %v1431
      %v1433 = vrot.slane %v1412, %v1432
      %v1447 = vunpack.c.l.b16 %v1400
      %v1448 = vunpack.c.l.b16 %v1401
      %v1449 = vunpack.c.l.b16 %v1402
      %v1450 = vunpack.c.l.b16 %v1403
      %v1451 = vunpack.c.l.b16 %v1404
      %v1452 = vunpack.c.l.b16 %v1405
      %v1453 = vunpack.c.l.b16 %v1406
      %v1454 = vunpack.c.l.b16 %v1407
      %v1455 = vunpack.c.l.b16 %v1408
      %v1456 = vunpack.c.l.b16 %v1409
      %v1457 = vunpack.c.l.b16 %v1410
      %v1458 = vunpack.c.l.b16 %v1411
      %v1459 = vpack.c.b16 %v1448, %v1447
      %v1460 = vpack.c.b16 %v1450, %v1449
      %v1461 = vpack.c.b16 %v1452, %v1451
      %v1462 = vpack.c.b16 %v1454, %v1453
      %v1463 = vpack.c.b16 %v1456, %v1455
      %v1464 = vpack.c.b16 %v1458, %v1457
      %vm1471 = vcmask 785408
      %v1473 = vsel %vm1471, %v1428, 0
      %1475 = vmatprep.subr.bf16.mxu0 0
      %1476 = vmatpush1.bf16.msra.mxu0 %v1459
      %1477 = vmatprep.subr.bf16.mxu0 0
      %1478 = vmatpush1.bf16.msra.mxu0 %v1460
      %1479 = vmatprep.subr.bf16.mxu0 0
      %1480 = vmatpush1.bf16.msra.mxu0 %v1461
      %1481 = vmatprep.subr.bf16.mxu0 0
      %1482 = vmatpush1.bf16.msra.mxu0 %v1462
      %1483 = vmatprep.subr.bf16.mxu0 0
      %1484 = vmatpush1.bf16.msra.mxu0 %v1463
      %1485 = vmatprep.subr.bf16.mxu0 0
      %1486 = vmatpush1.bf16.msra.mxu0 %v1464
      %1487 = vmatprep.subr.bf16.mxu0 0
      %1488 = vmatpush1.bf16.msra.mxu0 0
      %1489 = vmatprep.subr.bf16.mxu0 0
      %1490 = vmatpush1.bf16.msra.mxu0 0
      %1491 = vmatprep.subr.bf16.mxu0 0
      %1492 = vmatpush1.bf16.msra.mxu0 0
      %1493 = vmatprep.subr.bf16.mxu0 0
      %1494 = vmatpush1.bf16.msra.mxu0 0
      %1495 = vmatprep.subr.bf16.mxu0 0
      %1496 = vmatpush1.bf16.msra.mxu0 0
      %1497 = vmatprep.subr.bf16.mxu0 0
      %1498 = vmatpush1.bf16.msra.mxu0 0
      %1499 = vmatprep.subr.bf16.mxu0 0
      %1500 = vmatpush1.bf16.msra.mxu0 0
      %1501 = vmatprep.subr.bf16.mxu0 0
      %1502 = vmatpush1.bf16.msra.mxu0 0
      %1503 = vmatprep.subr.bf16.mxu0 0
      %1504 = vmatpush1.bf16.msra.mxu0 0
      %1505 = vmatprep.subr.bf16.mxu0 0
      %1506 = vmatpush1.bf16.msra.mxu0 0
      %1507 = vmatprep.mubr.bf16.mxu0 0
      %1508 = vmatmul.mubr.bf16.gmra.mrb[0].mxu0 %v1473
      %v1509 = vpop.f32.mrb[0].mxu0
      %v1510 = vadd.f32 %v1433, %v1509
      %v1511 = vpop.f32.mrb[0].mxu0
      %v1512 = vpop.f32.mrb[0].mxu0
      %v1513 = vpop.f32.mrb[0].mxu0
      %1514 = vdwg.mxu0
      %v1515 = vmax.f32 %v1510, 0.0
      %v1516 = vmul.f32 %v1515, %v901
      %v1517 = vld [vmem:[%s25] sm:$0xf]
      %v1518 = vld [vmem:[%s25 + $0x4] sm:$0xf]
      %v1519 = vld [vmem:[%s25 + $0x8] sm:$0xf]
      %v1520 = vld [vmem:[%s25 + $0xc] sm:$0xf]
      %v1521 = vld [vmem:[%s25 + $0x10] sm:$0xf]
      %v1522 = vld [vmem:[%s25 + $0x14] sm:$0xf]
      %v1523 = vld [vmem:[%s25 + $0x18] sm:$0xf]
      %v1524 = vld [vmem:[%s25 + $0x1c] sm:$0xf]
      %v1525 = vld [vmem:[%s25 + $0x20] sm:$0xf]
      %v1526 = vld [vmem:[%s25 + $0x24] sm:$0xf]
      %v1527 = vld [vmem:[%s25 + $0x28] sm:$0xf]
      %v1528 = vld [vmem:[%s25 + $0x2c] sm:$0xf]
      %v1529 = vld [vmem:[%s25 + $0x30] sm:$0xf]
      %v1530 = vld [vmem:[%s25 + $0x34] sm:$0xf]
      %v1531 = vld [vmem:[%s25 + $0x38] sm:$0xf]
      %v1532 = vld [vmem:[%s25 + $0x3c] sm:$0xf]
      %v1533 = vld [vmem:[%s25 + $0x40] sm:$0xf]
      %v1534 = vld [vmem:[%s25 + $0x44] sm:$0xf]
      %v1535 = vld [vmem:[%s25 + $0x48] sm:$0xf]
      %v1536 = vld [vmem:[%s25 + $0x4c] sm:$0xf]
      %v1537 = vld [vmem:[%s25 + $0x50] sm:$0xf]
      %v1538 = vld [vmem:[%s25 + $0x54] sm:$0xf]
      %v1539 = vld [vmem:[%s25 + $0x58] sm:$0xf]
      %v1540 = vld [vmem:[%s25 + $0x5c] sm:$0xf]
      %v1541 = vld [vmem:[%s27] sm:$0x1]
      %v1542 = vrot.slane %v1516, 7
      %v1543 = vmul.f32 %v1542, %v904
      %v1544 = vrot.slane %v1516, 1
      %v1545 = vmul.f32 %v1544, %v907
      %1547 = vrot.lane.b32.xlu0 %v1516, 64
      %v1548 = vpop.permute.xlu0 %1547
      %v1550 = vsel %vm1426, %v1543, %v1548
      %v1551 = vpack.c.bf16 %v1550, %v1550
      %v1552 = vpack.c.bf16 %v1545, %v1545
      %v1554 = vlaneseq
      %v1555 = vshrl.u32 %v1554, 7
      %v1556 = vsub.s32 0, %v1555
      %v1557 = vrot.slane %v1541, %v1556
      %v1583 = vunpack.c.l.b16 %v1517
      %v1584 = vunpack.c.l.b16 %v1518
      %v1585 = vunpack.c.l.b16 %v1519
      %v1586 = vunpack.c.l.b16 %v1520
      %v1587 = vunpack.c.l.b16 %v1521
      %v1588 = vunpack.c.l.b16 %v1522
      %v1589 = vunpack.c.l.b16 %v1523
      %v1590 = vunpack.c.l.b16 %v1524
      %v1591 = vunpack.c.l.b16 %v1525
      %v1592 = vunpack.c.l.b16 %v1526
      %v1593 = vunpack.c.l.b16 %v1527
      %v1594 = vunpack.c.l.b16 %v1528
      %v1595 = vunpack.c.l.b16 %v1529
      %v1596 = vunpack.c.l.b16 %v1530
      %v1597 = vunpack.c.l.b16 %v1531
      %v1598 = vunpack.c.l.b16 %v1532
      %v1599 = vunpack.c.l.b16 %v1533
      %v1600 = vunpack.c.l.b16 %v1534
      %v1601 = vunpack.c.l.b16 %v1535
      %v1602 = vunpack.c.l.b16 %v1536
      %v1603 = vunpack.c.l.b16 %v1537
      %v1604 = vunpack.c.l.b16 %v1538
      %v1605 = vunpack.c.l.b16 %v1539
      %v1606 = vunpack.c.l.b16 %v1540
      %v1607 = vpack.c.b16 %v1584, %v1583
      %v1608 = vpack.c.b16 %v1586, %v1585
      %v1609 = vpack.c.b16 %v1588, %v1587
      %v1610 = vpack.c.b16 %v1590, %v1589
      %v1611 = vpack.c.b16 %v1592, %v1591
      %v1612 = vpack.c.b16 %v1594, %v1593
      %v1613 = vpack.c.b16 %v1596, %v1595
      %v1614 = vpack.c.b16 %v1598, %v1597
      %v1615 = vpack.c.b16 %v1600, %v1599
      %v1616 = vpack.c.b16 %v1602, %v1601
      %v1617 = vpack.c.b16 %v1604, %v1603
      %v1618 = vpack.c.b16 %v1606, %v1605
      %v1632 = vsel %vm1426, %v1552, 0
      %1634 = vmatprep.subr.bf16.mxu0 0
      %1635 = vmatpush1.bf16.msra.mxu0 %v1607
      %1636 = vmatprep.subr.bf16.mxu0 0
      %1637 = vmatpush1.bf16.msra.mxu0 %v1608
      %1638 = vmatprep.subr.bf16.mxu0 0
      %1639 = vmatpush1.bf16.msra.mxu0 %v1609
      %1640 = vmatprep.subr.bf16.mxu0 0
      %1641 = vmatpush1.bf16.msra.mxu0 %v1610
      %1642 = vmatprep.subr.bf16.mxu0 0
      %1643 = vmatpush1.bf16.msra.mxu0 %v1611
      %1644 = vmatprep.subr.bf16.mxu0 0
      %1645 = vmatpush1.bf16.msra.mxu0 %v1612
      %1646 = vmatprep.subr.bf16.mxu0 0
      %1647 = vmatpush1.bf16.msra.mxu0 %v1613
      %1648 = vmatprep.subr.bf16.mxu0 0
      %1649 = vmatpush1.bf16.msra.mxu0 %v1614
      %1650 = vmatprep.subr.bf16.mxu0 0
      %1651 = vmatpush1.bf16.msra.mxu0 %v1615
      %1652 = vmatprep.subr.bf16.mxu0 0
      %1653 = vmatpush1.bf16.msra.mxu0 %v1616
      %1654 = vmatprep.subr.bf16.mxu0 0
      %1655 = vmatpush1.bf16.msra.mxu0 %v1617
      %1656 = vmatprep.subr.bf16.mxu0 0
      %1657 = vmatpush1.bf16.msra.mxu0 %v1618
      %1658 = vmatprep.subr.bf16.mxu0 0
      %1659 = vmatpush1.bf16.msra.mxu0 0
      %1660 = vmatprep.subr.bf16.mxu0 0
      %1661 = vmatpush1.bf16.msra.mxu0 0
      %1662 = vmatprep.subr.bf16.mxu0 0
      %1663 = vmatpush1.bf16.msra.mxu0 0
      %1664 = vmatprep.subr.bf16.mxu0 0
      %1665 = vmatpush1.bf16.msra.mxu0 0
      %1666 = vmatprep.mubr.bf16.mxu0 %v1632
      %1667 = vmatmul.mubr.bf16.gmra.mrb[0].mxu0 %v1551
      %v1668 = vpop.f32.mrb[0].mxu0
      %v1669 = vadd.f32 %v1557, %v1668
      %v1670 = vpop.f32.mrb[0].mxu0
      %v1671 = vpop.f32.mrb[0].mxu0
      %v1672 = vpop.f32.mrb[0].mxu0
      %1673 = vdwg.mxu0
      %v1674 = vmul.f32 %v1669, %v901
      %v1675 = vadd.f32 %v1398, %v1674
      %v1676 = vld [vmem:[%s29] sm:$0x1]
      %v1677 = vld [vmem:[%s31] sm:$0x1]
      %v1678 = vsel %vm1021, %v1675, 0.0
      %1679 = vadd.xlane.f32.xlu0 %v1678
      %v1680 = vpop.xlane.xlu0 %1679
      %v1681 = vmul.f32 %v1680, %v1374
      %v1682 = vsub.f32 %v1675, %v1681
      %v1683 = vmul.f32 %v1682, %v1682
      %v1684 = vsel %vm1021, %v1683, 0.0
      %1685 = vadd.xlane.f32.xlu0 %v1684
      %v1686 = vpop.xlane.xlu0 %1685
      %v1687 = vmul.f32 %v1686, %v1374
      %v1688 = vadd.f32 %v1687, 0.0001
      %v1689 = vrsqrt.pop %v1688
      %v1690 = vmul.f32 %v1682, %v1689
      %v1692 = vlaneseq
      %v1693 = vshrl.u32 %v1692, 7
      %v1694 = vsub.s32 0, %v1693
      %v1695 = vrot.slane %v1676, %v1694
      %v1697 = vmul.f32 %v1690, %v1695
      %v1699 = vlaneseq
      %v1700 = vshrl.u32 %v1699, 7
      %v1701 = vsub.s32 0, %v1700
      %v1702 = vrot.slane %v1677, %v1701
      %v1704 = vadd.f32 %v1697, %v1702
      %v1705 = vmul.f32 %v1704, %v901
      %s1706 = scalar_lea.vmem %s9, 16
      %v1707 = vld [vmem:[%s1706] sm:$0xf]
      %v1708 = vld [vmem:[%s1706 + $0x4] sm:$0xf]
      %v1709 = vld [vmem:[%s1706 + $0x8] sm:$0xf]
      %v1710 = vld [vmem:[%s1706 + $0xc] sm:$0xf]
      %v1711 = vpack.c.bf16 %v1705, %v1705
      %s1712 = scalar_lea.vmem %s11, 1
      %v1713 = vld [vmem:[%s1712] sm:$0x1]
      %v1715 = vlaneseq
      %v1716 = vshrl.u32 %v1715, 7
      %v1717 = vsub.s32 0, %v1716
      %v1718 = vrot.slane %v1713, %v1717
      %v1724 = vunpack.c.l.b16 %v1707
      %v1725 = vunpack.c.l.b16 %v1708
      %v1726 = vunpack.c.l.b16 %v1709
      %v1727 = vunpack.c.l.b16 %v1710
      %v1728 = vpack.c.b16 %v1725, %v1724
      %v1729 = vpack.c.b16 %v1727, %v1726
      %v1733 = vsel %vm1021, %v1711, 0
      %1735 = vmatprep.subr.bf16.mxu0 0
      %1736 = vmatpush1.bf16.msra.mxu0 %v1728
      %1737 = vmatprep.subr.bf16.mxu0 0
      %1738 = vmatpush1.bf16.msra.mxu0 %v1729
      %1739 = vmatprep.subr.bf16.mxu0 0
      %1740 = vmatpush1.bf16.msra.mxu0 0
      %1741 = vmatprep.subr.bf16.mxu0 0
      %1742 = vmatpush1.bf16.msra.mxu0 0
      %1743 = vmatprep.subr.bf16.mxu0 0
      %1744 = vmatpush1.bf16.msra.mxu0 0
      %1745 = vmatprep.subr.bf16.mxu0 0
      %1746 = vmatpush1.bf16.msra.mxu0 0
      %1747 = vmatprep.subr.bf16.mxu0 0
      %1748 = vmatpush1.bf16.msra.mxu0 0
      %1749 = vmatprep.subr.bf16.mxu0 0
      %1750 = vmatpush1.bf16.msra.mxu0 0
      %1751 = vmatprep.subr.bf16.mxu0 0
      %1752 = vmatpush1.bf16.msra.mxu0 0
      %1753 = vmatprep.subr.bf16.mxu0 0
      %1754 = vmatpush1.bf16.msra.mxu0 0
      %1755 = vmatprep.subr.bf16.mxu0 0
      %1756 = vmatpush1.bf16.msra.mxu0 0
      %1757 = vmatprep.subr.bf16.mxu0 0
      %1758 = vmatpush1.bf16.msra.mxu0 0
      %1759 = vmatprep.subr.bf16.mxu0 0
      %1760 = vmatpush1.bf16.msra.mxu0 0
      %1761 = vmatprep.subr.bf16.mxu0 0
      %1762 = vmatpush1.bf16.msra.mxu0 0
      %1763 = vmatprep.subr.bf16.mxu0 0
      %1764 = vmatpush1.bf16.msra.mxu0 0
      %1765 = vmatprep.subr.bf16.mxu0 0
      %1766 = vmatpush1.bf16.msra.mxu0 0
      %1767 = vmatprep.mubr.bf16.mxu0 0
      %1768 = vmatmul.mubr.bf16.gmra.mrb[0].mxu0 %v1733
      %v1769 = vpop.f32.mrb[0].mxu0
      %v1770 = vadd.f32 %v1718, %v1769
      %v1771 = vpop.f32.mrb[0].mxu0
      %v1772 = vpop.f32.mrb[0].mxu0
      %v1773 = vpop.f32.mrb[0].mxu0
      %1774 = vdwg.mxu0
      %v1775 = vmul.f32 %v1770, 0.25
      %v1776 = vpack.c.bf16 %v1775, %v1775
      %v1777 = vpack.c.bf16 %v1770, %v1770
      %1779 = vrot.lane.b32.xlu0 %v1777, 96
      %v1780 = vpop.permute.xlu0 %1779
      %v1782 = vsel %vm1071, %v1776, 0
      %v1785 = vsel %vm1071, %v1780, 0
      %1787 = vmatprep.subr.bf16.mxu0 0
      %1788 = vmatpush1.bf16.xpose.msra.mxu0 %v1785
      %1789 = vmatprep.subr.bf16.mxu0 0
      %1790 = vmatpush1.bf16.xpose.msra.mxu0 0
      %1791 = vmatprep.subr.bf16.mxu0 0
      %1792 = vmatpush1.bf16.xpose.msra.mxu0 0
      %1793 = vmatprep.subr.bf16.mxu0 0
      %1794 = vmatpush1.bf16.xpose.msra.mxu0 0
      %1795 = vmatprep.subr.bf16.mxu0 0
      %1796 = vmatpush1.bf16.xpose.msra.mxu0 0
      %1797 = vmatprep.subr.bf16.mxu0 0
      %1798 = vmatpush1.bf16.xpose.msra.mxu0 0
      %1799 = vmatprep.subr.bf16.mxu0 0
      %1800 = vmatpush1.bf16.xpose.msra.mxu0 0
      %1801 = vmatprep.subr.bf16.mxu0 0
      %1802 = vmatpush1.bf16.xpose.msra.mxu0 0
      %1803 = vmatprep.subr.bf16.mxu0 0
      %1804 = vmatpush1.bf16.xpose.msra.mxu0 0
      %1805 = vmatprep.subr.bf16.mxu0 0
      %1806 = vmatpush1.bf16.xpose.msra.mxu0 0
      %1807 = vmatprep.subr.bf16.mxu0 0
      %1808 = vmatpush1.bf16.xpose.msra.mxu0 0
      %1809 = vmatprep.subr.bf16.mxu0 0
      %1810 = vmatpush1.bf16.xpose.msra.mxu0 0
      %1811 = vmatprep.subr.bf16.mxu0 0
      %1812 = vmatpush1.bf16.xpose.msra.mxu0 0
      %1813 = vmatprep.subr.bf16.mxu0 0
      %1814 = vmatpush1.bf16.xpose.msra.mxu0 0
      %1815 = vmatprep.subr.bf16.mxu0 0
      %1816 = vmatpush1.bf16.xpose.msra.mxu0 0
      %1817 = vmatprep.subr.bf16.mxu0 0
      %1818 = vmatpush1.bf16.xpose.msra.mxu0 0
      %1819 = vmatprep.mubr.bf16.mxu0 0
      %1820 = vmatmul.mubr.bf16.gmra.mrb[0].mxu0 %v1782
      %v1821 = vpop.f32.mrb[0].mxu0
      %v1822 = vadd.f32 0.0, %v1821
      %v1823 = vpop.f32.mrb[0].mxu0
      %v1824 = vpop.f32.mrb[0].mxu0
      %v1825 = vpop.f32.mrb[0].mxu0
      %1826 = vdwg.mxu0
      %v1827 = vsel %vm919, %v1822, -10000.0
      %v1828 = vsel %vm1119, %v1827, -inf
      %1829 = vmax.xlane.f32.xlu0 %v1828
      %v1830 = vpop.xlane.xlu0 %1829
      %v1831 = vsub.f32 %v1827, %v1830
      %v1832 = vmul.f32 %v1831, 1.442695
      %v1833 = vpow.pop %v1832
      %v1834 = vsel %vm1119, %v1833, 0.0
      %1835 = vadd.xlane.f32.xlu0 %v1834
      %v1836 = vpop.xlane.xlu0 %1835
      %v1837 = vrcp.pop %v1836
      %v1838 = vmul.f32 %v1833, %v1837
      %v1839 = vpack.c.bf16 %v1838, %v1838
      %1840 = vrot.lane.b32.xlu0 %v1777, 64
      %v1841 = vpop.permute.xlu0 %1840
      %v1843 = vsel %vm1119, %v1839, 0
      %v1846 = vsel %vm952, %v1841, 0
      %1848 = vmatprep.subr.bf16.mxu0 0
      %1849 = vmatpush1.bf16.msra.mxu0 %v1846
      %1850 = vmatprep.subr.bf16.mxu0 0
      %1851 = vmatpush1.bf16.msra.mxu0 0
      %1852 = vmatprep.subr.bf16.mxu0 0
      %1853 = vmatpush1.bf16.msra.mxu0 0
      %1854 = vmatprep.subr.bf16.mxu0 0
      %1855 = vmatpush1.bf16.msra.mxu0 0
      %1856 = vmatprep.subr.bf16.mxu0 0
      %1857 = vmatpush1.bf16.msra.mxu0 0
      %1858 = vmatprep.subr.bf16.mxu0 0
      %1859 = vmatpush1.bf16.msra.mxu0 0
      %1860 = vmatprep.subr.bf16.mxu0 0
      %1861 = vmatpush1.bf16.msra.mxu0 0
      %1862 = vmatprep.subr.bf16.mxu0 0
      %1863 = vmatpush1.bf16.msra.mxu0 0
      %1864 = vmatprep.subr.bf16.mxu0 0
      %1865 = vmatpush1.bf16.msra.mxu0 0
      %1866 = vmatprep.subr.bf16.mxu0 0
      %1867 = vmatpush1.bf16.msra.mxu0 0
      %1868 = vmatprep.subr.bf16.mxu0 0
      %1869 = vmatpush1.bf16.msra.mxu0 0
      %1870 = vmatprep.subr.bf16.mxu0 0
      %1871 = vmatpush1.bf16.msra.mxu0 0
      %1872 = vmatprep.subr.bf16.mxu0 0
      %1873 = vmatpush1.bf16.msra.mxu0 0
      %1874 = vmatprep.subr.bf16.mxu0 0
      %1875 = vmatpush1.bf16.msra.mxu0 0
      %1876 = vmatprep.subr.bf16.mxu0 0
      %1877 = vmatpush1.bf16.msra.mxu0 0
      %1878 = vmatprep.subr.bf16.mxu0 0
      %1879 = vmatpush1.bf16.msra.mxu0 0
      %1880 = vmatprep.mubr.bf16.mxu0 0
      %1881 = vmatmul.mubr.bf16.gmra.mrb[0].mxu0 %v1843
      %v1882 = vpop.f32.mrb[0].mxu0
      %v1883 = vadd.f32 0.0, %v1882
      %v1884 = vpop.f32.mrb[0].mxu0
      %v1885 = vpop.f32.mrb[0].mxu0
      %v1886 = vpop.f32.mrb[0].mxu0
      %1887 = vdwg.mxu0
      %1888 = vst.msk [vmem:[#allocation2] sm:$0xff] %vm1071, %v1883
      %1890 = vrot.lane.b32.xlu0 %v1776, 112
      %v1891 = vpop.permute.xlu0 %1890
      %1892 = vrot.lane.b32.xlu0 %v1777, 80
      %v1893 = vpop.permute.xlu0 %1892
      %v1895 = vsel %vm1071, %v1891, 0
      %v1898 = vsel %vm1071, %v1893, 0
      %1900 = vmatprep.subr.bf16.mxu0 0
      %1901 = vmatpush1.bf16.xpose.msra.mxu0 %v1898
      %1902 = vmatprep.subr.bf16.mxu0 0
      %1903 = vmatpush1.bf16.xpose.msra.mxu0 0
      %1904 = vmatprep.subr.bf16.mxu0 0
      %1905 = vmatpush1.bf16.xpose.msra.mxu0 0
      %1906 = vmatprep.subr.bf16.mxu0 0
      %1907 = vmatpush1.bf16.xpose.msra.mxu0 0
      %1908 = vmatprep.subr.bf16.mxu0 0
      %1909 = vmatpush1.bf16.xpose.msra.mxu0 0
      %1910 = vmatprep.subr.bf16.mxu0 0
      %1911 = vmatpush1.bf16.xpose.msra.mxu0 0
      %1912 = vmatprep.subr.bf16.mxu0 0
      %1913 = vmatpush1.bf16.xpose.msra.mxu0 0
      %1914 = vmatprep.subr.bf16.mxu0 0
      %1915 = vmatpush1.bf16.xpose.msra.mxu0 0
      %1916 = vmatprep.subr.bf16.mxu0 0
      %1917 = vmatpush1.bf16.xpose.msra.mxu0 0
      %1918 = vmatprep.subr.bf16.mxu0 0
      %1919 = vmatpush1.bf16.xpose.msra.mxu0 0
      %1920 = vmatprep.subr.bf16.mxu0 0
      %1921 = vmatpush1.bf16.xpose.msra.mxu0 0
      %1922 = vmatprep.subr.bf16.mxu0 0
      %1923 = vmatpush1.bf16.xpose.msra.mxu0 0
      %1924 = vmatprep.subr.bf16.mxu0 0
      %1925 = vmatpush1.bf16.xpose.msra.mxu0 0
      %1926 = vmatprep.subr.bf16.mxu0 0
      %1927 = vmatpush1.bf16.xpose.msra.mxu0 0
      %1928 = vmatprep.subr.bf16.mxu0 0
      %1929 = vmatpush1.bf16.xpose.msra.mxu0 0
      %1930 = vmatprep.subr.bf16.mxu0 0
      %1931 = vmatpush1.bf16.xpose.msra.mxu0 0
      %1932 = vmatprep.mubr.bf16.mxu0 0
      %1933 = vmatmul.mubr.bf16.gmra.mrb[0].mxu0 %v1895
      %v1934 = vpop.f32.mrb[0].mxu0
      %v1935 = vadd.f32 0.0, %v1934
      %v1936 = vpop.f32.mrb[0].mxu0
      %v1937 = vpop.f32.mrb[0].mxu0
      %v1938 = vpop.f32.mrb[0].mxu0
      %1939 = vdwg.mxu0
      %v1940 = vsel %vm919, %v1935, -10000.0
      %v1941 = vsel %vm1119, %v1940, -inf
      %1942 = vmax.xlane.f32.xlu0 %v1941
      %v1943 = vpop.xlane.xlu0 %1942
      %v1944 = vsub.f32 %v1940, %v1943
      %v1945 = vmul.f32 %v1944, 1.442695
      %v1946 = vpow.pop %v1945
      %v1947 = vsel %vm1119, %v1946, 0.0
      %1948 = vadd.xlane.f32.xlu0 %v1947
      %v1949 = vpop.xlane.xlu0 %1948
      %v1950 = vrcp.pop %v1949
      %v1951 = vmul.f32 %v1946, %v1950
      %v1952 = vpack.c.bf16 %v1951, %v1951
      %1953 = vrot.lane.b32.xlu0 %v1777, 48
      %v1954 = vpop.permute.xlu0 %1953
      %v1956 = vsel %vm1119, %v1952, 0
      %v1959 = vsel %vm952, %v1954, 0
      %1961 = vmatprep.subr.bf16.mxu0 0
      %1962 = vmatpush1.bf16.msra.mxu0 %v1959
      %1963 = vmatprep.subr.bf16.mxu0 0
      %1964 = vmatpush1.bf16.msra.mxu0 0
      %1965 = vmatprep.subr.bf16.mxu0 0
      %1966 = vmatpush1.bf16.msra.mxu0 0
      %1967 = vmatprep.subr.bf16.mxu0 0
      %1968 = vmatpush1.bf16.msra.mxu0 0
      %1969 = vmatprep.subr.bf16.mxu0 0
      %1970 = vmatpush1.bf16.msra.mxu0 0
      %1971 = vmatprep.subr.bf16.mxu0 0
      %1972 = vmatpush1.bf16.msra.mxu0 0
      %1973 = vmatprep.subr.bf16.mxu0 0
      %1974 = vmatpush1.bf16.msra.mxu0 0
      %1975 = vmatprep.subr.bf16.mxu0 0
      %1976 = vmatpush1.bf16.msra.mxu0 0
      %1977 = vmatprep.subr.bf16.mxu0 0
      %1978 = vmatpush1.bf16.msra.mxu0 0
      %1979 = vmatprep.subr.bf16.mxu0 0
      %1980 = vmatpush1.bf16.msra.mxu0 0
      %1981 = vmatprep.subr.bf16.mxu0 0
      %1982 = vmatpush1.bf16.msra.mxu0 0
      %1983 = vmatprep.subr.bf16.mxu0 0
      %1984 = vmatpush1.bf16.msra.mxu0 0
      %1985 = vmatprep.subr.bf16.mxu0 0
      %1986 = vmatpush1.bf16.msra.mxu0 0
      %1987 = vmatprep.subr.bf16.mxu0 0
      %1988 = vmatpush1.bf16.msra.mxu0 0
      %1989 = vmatprep.subr.bf16.mxu0 0
      %1990 = vmatpush1.bf16.msra.mxu0 0
      %1991 = vmatprep.subr.bf16.mxu0 0
      %1992 = vmatpush1.bf16.msra.mxu0 0
      %1993 = vmatprep.mubr.bf16.mxu0 0
      %1994 = vmatmul.mubr.bf16.gmra.mrb[0].mxu0 %v1956
      %v1995 = vpop.f32.mrb[0].mxu0
      %v1996 = vadd.f32 0.0, %v1995
      %v1997 = vpop.f32.mrb[0].mxu0
      %v1998 = vpop.f32.mrb[0].mxu0
      %v1999 = vpop.f32.mrb[0].mxu0
      %2000 = vdwg.mxu0
      %2002 = vrot.lane.b32.xlu0 %v1996, 16
      %v2003 = vpop.permute.xlu0 %2002
      %2005 = vst.msk [vmem:[#allocation2] sm:$0xff] %vm1297, %v2003
      %v2006 = vld [vmem:[#allocation2] sm:$0xff]
      %s2007 = scalar_lea.vmem %s13, 16
      %v2008 = vld [vmem:[%s2007] sm:$0xf]
      %v2009 = vld [vmem:[%s2007 + $0x4] sm:$0xf]
      %v2010 = vld [vmem:[%s2007 + $0x8] sm:$0xf]
      %v2011 = vld [vmem:[%s2007 + $0xc] sm:$0xf]
      %v2012 = vpack.c.bf16 %v2006, %v2006
      %v2017 = vunpack.c.l.b16 %v2008
      %v2018 = vunpack.c.l.b16 %v2009
      %v2019 = vunpack.c.l.b16 %v2010
      %v2020 = vunpack.c.l.b16 %v2011
      %v2021 = vpack.c.b16 %v2018, %v2017
      %v2022 = vpack.c.b16 %v2020, %v2019
      %v2026 = vsel %vm1021, %v2012, 0
      %2028 = vmatprep.subr.bf16.mxu0 0
      %2029 = vmatpush1.bf16.msra.mxu0 %v2021
      %2030 = vmatprep.subr.bf16.mxu0 0
      %2031 = vmatpush1.bf16.msra.mxu0 %v2022
      %2032 = vmatprep.subr.bf16.mxu0 0
      %2033 = vmatpush1.bf16.msra.mxu0 0
      %2034 = vmatprep.subr.bf16.mxu0 0
      %2035 = vmatpush1.bf16.msra.mxu0 0
      %2036 = vmatprep.subr.bf16.mxu0 0
      %2037 = vmatpush1.bf16.msra.mxu0 0
      %2038 = vmatprep.subr.bf16.mxu0 0
      %2039 = vmatpush1.bf16.msra.mxu0 0
      %2040 = vmatprep.subr.bf16.mxu0 0
      %2041 = vmatpush1.bf16.msra.mxu0 0
      %2042 = vmatprep.subr.bf16.mxu0 0
      %2043 = vmatpush1.bf16.msra.mxu0 0
      %2044 = vmatprep.subr.bf16.mxu0 0
      %2045 = vmatpush1.bf16.msra.mxu0 0
      %2046 = vmatprep.subr.bf16.mxu0 0
      %2047 = vmatpush1.bf16.msra.mxu0 0
      %2048 = vmatprep.subr.bf16.mxu0 0
      %2049 = vmatpush1.bf16.msra.mxu0 0
      %2050 = vmatprep.subr.bf16.mxu0 0
      %2051 = vmatpush1.bf16.msra.mxu0 0
      %2052 = vmatprep.subr.bf16.mxu0 0
      %2053 = vmatpush1.bf16.msra.mxu0 0
      %2054 = vmatprep.subr.bf16.mxu0 0
      %2055 = vmatpush1.bf16.msra.mxu0 0
      %2056 = vmatprep.subr.bf16.mxu0 0
      %2057 = vmatpush1.bf16.msra.mxu0 0
      %2058 = vmatprep.subr.bf16.mxu0 0
      %2059 = vmatpush1.bf16.msra.mxu0 0
      %2060 = vmatprep.mubr.bf16.mxu0 0
      %2061 = vmatmul.mubr.bf16.gmra.mrb[0].mxu0 %v2026
      %v2062 = vpop.f32.mrb[0].mxu0
      %v2063 = vadd.f32 0.0, %v2062
      %v2064 = vpop.f32.mrb[0].mxu0
      %v2065 = vpop.f32.mrb[0].mxu0
      %v2066 = vpop.f32.mrb[0].mxu0
      %2067 = vdwg.mxu0
      %v2068 = vadd.f32 %v1705, %v2063
      %s2069 = scalar_lea.vmem %s15, 1
      %v2070 = vld [vmem:[%s2069] sm:$0x1]
      %v2072 = vlaneseq
      %v2073 = vshrl.u32 %v2072, 7
      %v2074 = vsub.s32 0, %v2073
      %v2075 = vrot.slane %v2070, %v2074
      %v2077 = vadd.f32 %v2068, %v2075
      %s2078 = scalar_lea.vmem %s17, 1
      %v2079 = vld [vmem:[%s2078] sm:$0x1]
      %s2080 = scalar_lea.vmem %s19, 1
      %v2081 = vld [vmem:[%s2080] sm:$0x1]
      %v2082 = vsel %vm1021, %v2077, 0.0
      %2083 = vadd.xlane.f32.xlu0 %v2082
      %v2084 = vpop.xlane.xlu0 %2083
      %v2085 = vmul.f32 %v2084, %v1374
      %v2086 = vsub.f32 %v2077, %v2085
      %v2087 = vmul.f32 %v2086, %v2086
      %v2088 = vsel %vm1021, %v2087, 0.0
      %2089 = vadd.xlane.f32.xlu0 %v2088
      %v2090 = vpop.xlane.xlu0 %2089
      %v2091 = vmul.f32 %v2090, %v1374
      %v2092 = vadd.f32 %v2091, 0.0001
      %v2093 = vrsqrt.pop %v2092
      %v2094 = vmul.f32 %v2086, %v2093
      %v2096 = vlaneseq
      %v2097 = vshrl.u32 %v2096, 7
      %v2098 = vsub.s32 0, %v2097
      %v2099 = vrot.slane %v2079, %v2098
      %v2101 = vmul.f32 %v2094, %v2099
      %v2103 = vlaneseq
      %v2104 = vshrl.u32 %v2103, 7
      %v2105 = vsub.s32 0, %v2104
      %v2106 = vrot.slane %v2081, %v2105
      %v2108 = vadd.f32 %v2101, %v2106
      %v2109 = vmul.f32 %v2108, %v901
      %s2110 = scalar_lea.vmem %s21, 48
      %v2111 = vld [vmem:[%s2110] sm:$0xf]
      %v2112 = vld [vmem:[%s2110 + $0x4] sm:$0xf]
      %v2113 = vld [vmem:[%s2110 + $0x8] sm:$0xf]
      %v2114 = vld [vmem:[%s2110 + $0xc] sm:$0xf]
      %v2115 = vld [vmem:[%s2110 + $0x10] sm:$0xf]
      %v2116 = vld [vmem:[%s2110 + $0x14] sm:$0xf]
      %v2117 = vld [vmem:[%s2110 + $0x18] sm:$0xf]
      %v2118 = vld [vmem:[%s2110 + $0x1c] sm:$0xf]
      %v2119 = vld [vmem:[%s2110 + $0x20] sm:$0xf]
      %v2120 = vld [vmem:[%s2110 + $0x24] sm:$0xf]
      %v2121 = vld [vmem:[%s2110 + $0x28] sm:$0xf]
      %v2122 = vld [vmem:[%s2110 + $0x2c] sm:$0xf]
      %s2123 = scalar_lea.vmem %s23, 1
      %v2124 = vld [vmem:[%s2123] sm:$0x1]
      %v2125 = vrot.slane %v2109, 7
      %v2126 = vmul.f32 %v2125, %v904
      %v2127 = vrot.slane %v2109, 1
      %v2128 = vmul.f32 %v2127, %v907
      %2130 = vrot.lane.b32.xlu0 %v2109, 32
      %v2131 = vpop.permute.xlu0 %2130
      %2134 = vrot.lane.b32.xlu0 %v2128, 64
      %v2135 = vpop.permute.xlu0 %2134
      %v2137 = vsel %vm1021, %v2126, %v2131
      %v2138 = vsel %vm1426, %v2137, %v2135
      %v2139 = vpack.c.bf16 %v2138, %v2138
      %v2141 = vlaneseq
      %v2142 = vshrl.u32 %v2141, 7
      %v2143 = vsub.s32 0, %v2142
      %v2144 = vrot.slane %v2124, %v2143
      %v2158 = vunpack.c.l.b16 %v2111
      %v2159 = vunpack.c.l.b16 %v2112
      %v2160 = vunpack.c.l.b16 %v2113
      %v2161 = vunpack.c.l.b16 %v2114
      %v2162 = vunpack.c.l.b16 %v2115
      %v2163 = vunpack.c.l.b16 %v2116
      %v2164 = vunpack.c.l.b16 %v2117
      %v2165 = vunpack.c.l.b16 %v2118
      %v2166 = vunpack.c.l.b16 %v2119
      %v2167 = vunpack.c.l.b16 %v2120
      %v2168 = vunpack.c.l.b16 %v2121
      %v2169 = vunpack.c.l.b16 %v2122
      %v2170 = vpack.c.b16 %v2159, %v2158
      %v2171 = vpack.c.b16 %v2161, %v2160
      %v2172 = vpack.c.b16 %v2163, %v2162
      %v2173 = vpack.c.b16 %v2165, %v2164
      %v2174 = vpack.c.b16 %v2167, %v2166
      %v2175 = vpack.c.b16 %v2169, %v2168
      %v2183 = vsel %vm1471, %v2139, 0
      %2185 = vmatprep.subr.bf16.mxu0 0
      %2186 = vmatpush1.bf16.msra.mxu0 %v2170
      %2187 = vmatprep.subr.bf16.mxu0 0
      %2188 = vmatpush1.bf16.msra.mxu0 %v2171
      %2189 = vmatprep.subr.bf16.mxu0 0
      %2190 = vmatpush1.bf16.msra.mxu0 %v2172
      %2191 = vmatprep.subr.bf16.mxu0 0
      %2192 = vmatpush1.bf16.msra.mxu0 %v2173
      %2193 = vmatprep.subr.bf16.mxu0 0
      %2194 = vmatpush1.bf16.msra.mxu0 %v2174
      %2195 = vmatprep.subr.bf16.mxu0 0
      %2196 = vmatpush1.bf16.msra.mxu0 %v2175
      %2197 = vmatprep.subr.bf16.mxu0 0
      %2198 = vmatpush1.bf16.msra.mxu0 0
      %2199 = vmatprep.subr.bf16.mxu0 0
      %2200 = vmatpush1.bf16.msra.mxu0 0
      %2201 = vmatprep.subr.bf16.mxu0 0
      %2202 = vmatpush1.bf16.msra.mxu0 0
      %2203 = vmatprep.subr.bf16.mxu0 0
      %2204 = vmatpush1.bf16.msra.mxu0 0
      %2205 = vmatprep.subr.bf16.mxu0 0
      %2206 = vmatpush1.bf16.msra.mxu0 0
      %2207 = vmatprep.subr.bf16.mxu0 0
      %2208 = vmatpush1.bf16.msra.mxu0 0
      %2209 = vmatprep.subr.bf16.mxu0 0
      %2210 = vmatpush1.bf16.msra.mxu0 0
      %2211 = vmatprep.subr.bf16.mxu0 0
      %2212 = vmatpush1.bf16.msra.mxu0 0
      %2213 = vmatprep.subr.bf16.mxu0 0
      %2214 = vmatpush1.bf16.msra.mxu0 0
      %2215 = vmatprep.subr.bf16.mxu0 0
      %2216 = vmatpush1.bf16.msra.mxu0 0
      %2217 = vmatprep.mubr.bf16.mxu0 0
      %2218 = vmatmul.mubr.bf16.gmra.mrb[0].mxu0 %v2183
      %v2219 = vpop.f32.mrb[0].mxu0
      %v2220 = vadd.f32 %v2144, %v2219
      %v2221 = vpop.f32.mrb[0].mxu0
      %v2222 = vpop.f32.mrb[0].mxu0
      %v2223 = vpop.f32.mrb[0].mxu0
      %2224 = vdwg.mxu0
      %v2225 = vmax.f32 %v2220, 0.0
      %v2226 = vmul.f32 %v2225, %v901
      %s2227 = scalar_lea.vmem %s25, 96
      %v2228 = vld [vmem:[%s2227] sm:$0xf]
      %v2229 = vld [vmem:[%s2227 + $0x4] sm:$0xf]
      %v2230 = vld [vmem:[%s2227 + $0x8] sm:$0xf]
      %v2231 = vld [vmem:[%s2227 + $0xc] sm:$0xf]
      %v2232 = vld [vmem:[%s2227 + $0x10] sm:$0xf]
      %v2233 = vld [vmem:[%s2227 + $0x14] sm:$0xf]
      %v2234 = vld [vmem:[%s2227 + $0x18] sm:$0xf]
      %v2235 = vld [vmem:[%s2227 + $0x1c] sm:$0xf]
      %v2236 = vld [vmem:[%s2227 + $0x20] sm:$0xf]
      %v2237 = vld [vmem:[%s2227 + $0x24] sm:$0xf]
      %v2238 = vld [vmem:[%s2227 + $0x28] sm:$0xf]
      %v2239 = vld [vmem:[%s2227 + $0x2c] sm:$0xf]
      %v2240 = vld [vmem:[%s2227 + $0x30] sm:$0xf]
      %v2241 = vld [vmem:[%s2227 + $0x34] sm:$0xf]
      %v2242 = vld [vmem:[%s2227 + $0x38] sm:$0xf]
      %v2243 = vld [vmem:[%s2227 + $0x3c] sm:$0xf]
      %v2244 = vld [vmem:[%s2227 + $0x40] sm:$0xf]
      %v2245 = vld [vmem:[%s2227 + $0x44] sm:$0xf]
      %v2246 = vld [vmem:[%s2227 + $0x48] sm:$0xf]
      %v2247 = vld [vmem:[%s2227 + $0x4c] sm:$0xf]
      %v2248 = vld [vmem:[%s2227 + $0x50] sm:$0xf]
      %v2249 = vld [vmem:[%s2227 + $0x54] sm:$0xf]
      %v2250 = vld [vmem:[%s2227 + $0x58] sm:$0xf]
      %v2251 = vld [vmem:[%s2227 + $0x5c] sm:$0xf]
      %s2252 = scalar_lea.vmem %s27, 1
      %v2253 = vld [vmem:[%s2252] sm:$0x1]
      %v2254 = vrot.slane %v2226, 7
      %v2255 = vmul.f32 %v2254, %v904
      %v2256 = vrot.slane %v2226, 1
      %v2257 = vmul.f32 %v2256, %v907
      %2259 = vrot.lane.b32.xlu0 %v2226, 64
      %v2260 = vpop.permute.xlu0 %2259
      %v2262 = vsel %vm1426, %v2255, %v2260
      %v2263 = vpack.c.bf16 %v2262, %v2262
      %v2264 = vpack.c.bf16 %v2257, %v2257
      %v2266 = vlaneseq
      %v2267 = vshrl.u32 %v2266, 7
      %v2268 = vsub.s32 0, %v2267
      %v2269 = vrot.slane %v2253, %v2268
      %v2295 = vunpack.c.l.b16 %v2228
      %v2296 = vunpack.c.l.b16 %v2229
      %v2297 = vunpack.c.l.b16 %v2230
      %v2298 = vunpack.c.l.b16 %v2231
      %v2299 = vunpack.c.l.b16 %v2232
      %v2300 = vunpack.c.l.b16 %v2233
      %v2301 = vunpack.c.l.b16 %v2234
      %v2302 = vunpack.c.l.b16 %v2235
      %v2303 = vunpack.c.l.b16 %v2236
      %v2304 = vunpack.c.l.b16 %v2237
      %v2305 = vunpack.c.l.b16 %v2238
      %v2306 = vunpack.c.l.b16 %v2239
      %v2307 = vunpack.c.l.b16 %v2240
      %v2308 = vunpack.c.l.b16 %v2241
      %v2309 = vunpack.c.l.b16 %v2242
      %v2310 = vunpack.c.l.b16 %v2243
      %v2311 = vunpack.c.l.b16 %v2244
      %v2312 = vunpack.c.l.b16 %v2245
      %v2313 = vunpack.c.l.b16 %v2246
      %v2314 = vunpack.c.l.b16 %v2247
      %v2315 = vunpack.c.l.b16 %v2248
      %v2316 = vunpack.c.l.b16 %v2249
      %v2317 = vunpack.c.l.b16 %v2250
      %v2318 = vunpack.c.l.b16 %v2251
      %v2319 = vpack.c.b16 %v2296, %v2295
      %v2320 = vpack.c.b16 %v2298, %v2297
      %v2321 = vpack.c.b16 %v2300, %v2299
      %v2322 = vpack.c.b16 %v2302, %v2301
      %v2323 = vpack.c.b16 %v2304, %v2303
      %v2324 = vpack.c.b16 %v2306, %v2305
      %v2325 = vpack.c.b16 %v2308, %v2307
      %v2326 = vpack.c.b16 %v2310, %v2309
      %v2327 = vpack.c.b16 %v2312, %v2311
      %v2328 = vpack.c.b16 %v2314, %v2313
      %v2329 = vpack.c.b16 %v2316, %v2315
      %v2330 = vpack.c.b16 %v2318, %v2317
      %v2344 = vsel %vm1426, %v2264, 0
      %2346 = vmatprep.subr.bf16.mxu0 0
      %2347 = vmatpush1.bf16.msra.mxu0 %v2319
      %2348 = vmatprep.subr.bf16.mxu0 0
      %2349 = vmatpush1.bf16.msra.mxu0 %v2320
      %2350 = vmatprep.subr.bf16.mxu0 0
      %2351 = vmatpush1.bf16.msra.mxu0 %v2321
      %2352 = vmatprep.subr.bf16.mxu0 0
      %2353 = vmatpush1.bf16.msra.mxu0 %v2322
      %2354 = vmatprep.subr.bf16.mxu0 0
      %2355 = vmatpush1.bf16.msra.mxu0 %v2323
      %2356 = vmatprep.subr.bf16.mxu0 0
      %2357 = vmatpush1.bf16.msra.mxu0 %v2324
      %2358 = vmatprep.subr.bf16.mxu0 0
      %2359 = vmatpush1.bf16.msra.mxu0 %v2325
      %2360 = vmatprep.subr.bf16.mxu0 0
      %2361 = vmatpush1.bf16.msra.mxu0 %v2326
      %2362 = vmatprep.subr.bf16.mxu0 0
      %2363 = vmatpush1.bf16.msra.mxu0 %v2327
      %2364 = vmatprep.subr.bf16.mxu0 0
      %2365 = vmatpush1.bf16.msra.mxu0 %v2328
      %2366 = vmatprep.subr.bf16.mxu0 0
      %2367 = vmatpush1.bf16.msra.mxu0 %v2329
      %2368 = vmatprep.subr.bf16.mxu0 0
      %2369 = vmatpush1.bf16.msra.mxu0 %v2330
      %2370 = vmatprep.subr.bf16.mxu0 0
      %2371 = vmatpush1.bf16.msra.mxu0 0
      %2372 = vmatprep.subr.bf16.mxu0 0
      %2373 = vmatpush1.bf16.msra.mxu0 0
      %2374 = vmatprep.subr.bf16.mxu0 0
      %2375 = vmatpush1.bf16.msra.mxu0 0
      %2376 = vmatprep.subr.bf16.mxu0 0
      %2377 = vmatpush1.bf16.msra.mxu0 0
      %2378 = vmatprep.mubr.bf16.mxu0 %v2344
      %2379 = vmatmul.mubr.bf16.gmra.mrb[0].mxu0 %v2263
      %v2380 = vpop.f32.mrb[0].mxu0
      %v2381 = vadd.f32 %v2269, %v2380
      %v2382 = vpop.f32.mrb[0].mxu0
      %v2383 = vpop.f32.mrb[0].mxu0
      %v2384 = vpop.f32.mrb[0].mxu0
      %2385 = vdwg.mxu0
      %v2386 = vmul.f32 %v2381, %v901
      %v2387 = vadd.f32 %v2108, %v2386
      %s2388 = scalar_lea.vmem %s29, 1
      %v2389 = vld [vmem:[%s2388] sm:$0x1]
      %s2390 = scalar_lea.vmem %s31, 1
      %v2391 = vld [vmem:[%s2390] sm:$0x1]
      %v2392 = vsel %vm1021, %v2387, 0.0
      %2393 = vadd.xlane.f32.xlu0 %v2392
      %v2394 = vpop.xlane.xlu0 %2393
      %v2395 = vmul.f32 %v2394, %v1374
      %v2396 = vsub.f32 %v2387, %v2395
      %v2397 = vmul.f32 %v2396, %v2396
      %v2398 = vsel %vm1021, %v2397, 0.0
      %2399 = vadd.xlane.f32.xlu0 %v2398
      %v2400 = vpop.xlane.xlu0 %2399
      %v2401 = vmul.f32 %v2400, %v1374
      %v2402 = vadd.f32 %v2401, 0.0001
      %v2403 = vrsqrt.pop %v2402
      %v2404 = vmul.f32 %v2396, %v2403
      %v2406 = vlaneseq
      %v2407 = vshrl.u32 %v2406, 7
      %v2408 = vsub.s32 0, %v2407
      %v2409 = vrot.slane %v2389, %v2408
      %v2411 = vmul.f32 %v2404, %v2409
      %v2413 = vlaneseq
      %v2414 = vshrl.u32 %v2413, 7
      %v2415 = vsub.s32 0, %v2414
      %v2416 = vrot.slane %v2391, %v2415
      %v2418 = vadd.f32 %v2411, %v2416
      %v2419 = vmul.f32 %v2418, %v901
      %v2420 = vld [vmem:[%s33] sm:$0xf]
      %v2421 = vld [vmem:[%s33 + $0x4] sm:$0xf]
      %v2422 = vld [vmem:[%s33 + $0x8] sm:$0xf]
      %v2423 = vld [vmem:[%s33 + $0xc] sm:$0xf]
      %v2424 = vpack.c.bf16 %v2419, %v2419
      %v2425 = vld [vmem:[%s35] sm:$0x1]
      %v2427 = vlaneseq
      %v2428 = vshrl.u32 %v2427, 7
      %v2429 = vsub.s32 0, %v2428
      %v2430 = vrot.slane %v2425, %v2429
      %v2436 = vunpack.c.l.b16 %v2420
      %v2437 = vunpack.c.l.b16 %v2421
      %v2438 = vunpack.c.l.b16 %v2422
      %v2439 = vunpack.c.l.b16 %v2423
      %v2440 = vpack.c.b16 %v2437, %v2436
      %v2441 = vpack.c.b16 %v2439, %v2438
      %v2445 = vsel %vm1021, %v2424, 0
      %2447 = vmatprep.subr.bf16.mxu0 0
      %2448 = vmatpush1.bf16.msra.mxu0 %v2440
      %2449 = vmatprep.subr.bf16.mxu0 0
      %2450 = vmatpush1.bf16.msra.mxu0 %v2441
      %2451 = vmatprep.subr.bf16.mxu0 0
      %2452 = vmatpush1.bf16.msra.mxu0 0
      %2453 = vmatprep.subr.bf16.mxu0 0
      %2454 = vmatpush1.bf16.msra.mxu0 0
      %2455 = vmatprep.subr.bf16.mxu0 0
      %2456 = vmatpush1.bf16.msra.mxu0 0
      %2457 = vmatprep.subr.bf16.mxu0 0
      %2458 = vmatpush1.bf16.msra.mxu0 0
      %2459 = vmatprep.subr.bf16.mxu0 0
      %2460 = vmatpush1.bf16.msra.mxu0 0
      %2461 = vmatprep.subr.bf16.mxu0 0
      %2462 = vmatpush1.bf16.msra.mxu0 0
      %2463 = vmatprep.subr.bf16.mxu0 0
      %2464 = vmatpush1.bf16.msra.mxu0 0
      %2465 = vmatprep.subr.bf16.mxu0 0
      %2466 = vmatpush1.bf16.msra.mxu0 0
      %2467 = vmatprep.subr.bf16.mxu0 0
      %2468 = vmatpush1.bf16.msra.mxu0 0
      %2469 = vmatprep.subr.bf16.mxu0 0
      %2470 = vmatpush1.bf16.msra.mxu0 0
      %2471 = vmatprep.subr.bf16.mxu0 0
      %2472 = vmatpush1.bf16.msra.mxu0 0
      %2473 = vmatprep.subr.bf16.mxu0 0
      %2474 = vmatpush1.bf16.msra.mxu0 0
      %2475 = vmatprep.subr.bf16.mxu0 0
      %2476 = vmatpush1.bf16.msra.mxu0 0
      %2477 = vmatprep.subr.bf16.mxu0 0
      %2478 = vmatpush1.bf16.msra.mxu0 0
      %2479 = vmatprep.mubr.bf16.mxu0 0
      %2480 = vmatmul.mubr.bf16.gmra.mrb[0].mxu0 %v2445
      %v2481 = vpop.f32.mrb[0].mxu0
      %v2482 = vadd.f32 %v2430, %v2481
      %v2483 = vpop.f32.mrb[0].mxu0
      %v2484 = vpop.f32.mrb[0].mxu0
      %v2485 = vpop.f32.mrb[0].mxu0
      %2486 = vdwg.mxu0
      %v2487 = vmul.f32 %v2482, %v901
      %v2488 = vld [vmem:[%s889] sm:$0x1]
      %v2489 = vrot.slane %v2419, 7
      %v2490 = vmul.f32 %v2489, %v904
      %v2491 = vrot.slane %v2419, 1
      %v2492 = vmul.f32 %v2491, %v907
      %2494 = vrot.lane.b32.xlu0 %v2419, 32
      %v2495 = vpop.permute.xlu0 %2494
      %2498 = vrot.lane.b32.xlu0 %v2492, 64
      %v2499 = vpop.permute.xlu0 %2498
      %v2501 = vsel %vm1021, %v2490, %v2495
      %v2502 = vsel %vm1426, %v2501, %v2499
      %v2503 = vld [vmem:[%s37] sm:$0xf]
      %v2504 = vld [vmem:[%s37 + $0x4] sm:$0xf]
      %v2505 = vld [vmem:[%s37 + $0x8] sm:$0xf]
      %v2506 = vld [vmem:[%s37 + $0xc] sm:$0xf]
      %v2507 = vld [vmem:[%s37 + $0x10] sm:$0xf]
      %v2508 = vld [vmem:[%s37 + $0x14] sm:$0xf]
      %v2509 = vld [vmem:[%s37 + $0x18] sm:$0xf]
      %v2510 = vld [vmem:[%s37 + $0x1c] sm:$0xf]
      %v2511 = vld [vmem:[%s37 + $0x20] sm:$0xf]
      %v2512 = vld [vmem:[%s37 + $0x24] sm:$0xf]
      %v2513 = vld [vmem:[%s37 + $0x28] sm:$0xf]
      %v2514 = vld [vmem:[%s37 + $0x2c] sm:$0xf]
      %v2515 = vpack.c.bf16 %v2502, %v2502
      %v2516 = vld [vmem:[%s39] sm:$0xf]
      %v2517 = vpack.c.bf16 %v2488, %v2488
      %v2519 = vsel %vm1119, %v2517, 0
      %v2522 = vsel %vm952, %v2516, 0
      %2524 = vmatprep.subr.bf16.mxu0 0
      %2525 = vmatpush1.bf16.msra.mxu0 %v2522
      %2526 = vmatprep.subr.bf16.mxu0 0
      %2527 = vmatpush1.bf16.msra.mxu0 0
      %2528 = vmatprep.subr.bf16.mxu0 0
      %2529 = vmatpush1.bf16.msra.mxu0 0
      %2530 = vmatprep.subr.bf16.mxu0 0
      %2531 = vmatpush1.bf16.msra.mxu0 0
      %2532 = vmatprep.subr.bf16.mxu0 0
      %2533 = vmatpush1.bf16.msra.mxu0 0
      %2534 = vmatprep.subr.bf16.mxu0 0
      %2535 = vmatpush1.bf16.msra.mxu0 0
      %2536 = vmatprep.subr.bf16.mxu0 0
      %2537 = vmatpush1.bf16.msra.mxu0 0
      %2538 = vmatprep.subr.bf16.mxu0 0
      %2539 = vmatpush1.bf16.msra.mxu0 0
      %2540 = vmatprep.subr.bf16.mxu0 0
      %2541 = vmatpush1.bf16.msra.mxu0 0
      %2542 = vmatprep.subr.bf16.mxu0 0
      %2543 = vmatpush1.bf16.msra.mxu0 0
      %2544 = vmatprep.subr.bf16.mxu0 0
      %2545 = vmatpush1.bf16.msra.mxu0 0
      %2546 = vmatprep.subr.bf16.mxu0 0
      %2547 = vmatpush1.bf16.msra.mxu0 0
      %2548 = vmatprep.subr.bf16.mxu0 0
      %2549 = vmatpush1.bf16.msra.mxu0 0
      %2550 = vmatprep.subr.bf16.mxu0 0
      %2551 = vmatpush1.bf16.msra.mxu0 0
      %2552 = vmatprep.subr.bf16.mxu0 0
      %2553 = vmatpush1.bf16.msra.mxu0 0
      %2554 = vmatprep.subr.bf16.mxu0 0
      %2555 = vmatpush1.bf16.msra.mxu0 0
      %2556 = vmatprep.mubr.bf16.mxu0 0
      %2557 = vmatmul.mubr.bf16.gmra.mrb[0].mxu0 %v2519
      %v2558 = vpop.f32.mrb[0].mxu0
      %v2559 = vadd.f32 0.0, %v2558
      %v2560 = vpop.f32.mrb[0].mxu0
      %v2561 = vpop.f32.mrb[0].mxu0
      %v2562 = vpop.f32.mrb[0].mxu0
      %2563 = vdwg.mxu0
      %v2564 = vlaneseq
      %v2565 = vshrl.u32 %v2564, 7
      %v2566 = vsub.s32 0, %v2565
      %v2567 = vrot.slane %v2559, %v2566
      %v2568 = vmul.f32 %v911, %v2567
      %v2581 = vunpack.c.l.b16 %v2503
      %v2582 = vunpack.c.l.b16 %v2504
      %v2583 = vunpack.c.l.b16 %v2505
      %v2584 = vunpack.c.l.b16 %v2506
      %v2585 = vunpack.c.l.b16 %v2507
      %v2586 = vunpack.c.l.b16 %v2508
      %v2587 = vunpack.c.l.b16 %v2509
      %v2588 = vunpack.c.l.b16 %v2510
      %v2589 = vunpack.c.l.b16 %v2511
      %v2590 = vunpack.c.l.b16 %v2512
      %v2591 = vunpack.c.l.b16 %v2513
      %v2592 = vunpack.c.l.b16 %v2514
      %v2593 = vpack.c.b16 %v2582, %v2581
      %v2594 = vpack.c.b16 %v2584, %v2583
      %v2595 = vpack.c.b16 %v2586, %v2585
      %v2596 = vpack.c.b16 %v2588, %v2587
      %v2597 = vpack.c.b16 %v2590, %v2589
      %v2598 = vpack.c.b16 %v2592, %v2591
      %v2606 = vsel %vm1471, %v2515, 0
      %2608 = vmatprep.subr.bf16.mxu0 0
      %2609 = vmatpush1.bf16.msra.mxu0 %v2593
      %2610 = vmatprep.subr.bf16.mxu0 0
      %2611 = vmatpush1.bf16.msra.mxu0 %v2594
      %2612 = vmatprep.subr.bf16.mxu0 0
      %2613 = vmatpush1.bf16.msra.mxu0 %v2595
      %2614 = vmatprep.subr.bf16.mxu0 0
      %2615 = vmatpush1.bf16.msra.mxu0 %v2596
      %2616 = vmatprep.subr.bf16.mxu0 0
      %2617 = vmatpush1.bf16.msra.mxu0 %v2597
      %2618 = vmatprep.subr.bf16.mxu0 0
      %2619 = vmatpush1.bf16.msra.mxu0 %v2598
      %2620 = vmatprep.subr.bf16.mxu0 0
      %2621 = vmatpush1.bf16.msra.mxu0 0
      %2622 = vmatprep.subr.bf16.mxu0 0
      %2623 = vmatpush1.bf16.msra.mxu0 0
      %2624 = vmatprep.subr.bf16.mxu0 0
      %2625 = vmatpush1.bf16.msra.mxu0 0
      %2626 = vmatprep.subr.bf16.mxu0 0
      %2627 = vmatpush1.bf16.msra.mxu0 0
      %2628 = vmatprep.subr.bf16.mxu0 0
      %2629 = vmatpush1.bf16.msra.mxu0 0
      %2630 = vmatprep.subr.bf16.mxu0 0
      %2631 = vmatpush1.bf16.msra.mxu0 0
      %2632 = vmatprep.subr.bf16.mxu0 0
      %2633 = vmatpush1.bf16.msra.mxu0 0
      %2634 = vmatprep.subr.bf16.mxu0 0
      %2635 = vmatpush1.bf16.msra.mxu0 0
      %2636 = vmatprep.subr.bf16.mxu0 0
      %2637 = vmatpush1.bf16.msra.mxu0 0
      %2638 = vmatprep.subr.bf16.mxu0 0
      %2639 = vmatpush1.bf16.msra.mxu0 0
      %2640 = vmatprep.mubr.bf16.mxu0 0
      %2641 = vmatmul.mubr.bf16.gmra.mrb[0].mxu0 %v2606
      %v2642 = vpop.f32.mrb[0].mxu0
      %v2643 = vadd.f32 %v2568, %v2642
      %v2644 = vpop.f32.mrb[0].mxu0
      %v2645 = vpop.f32.mrb[0].mxu0
      %v2646 = vpop.f32.mrb[0].mxu0
      %2647 = vdwg.mxu0
      %s2648 = scalar_lea.vmem %s39, 4
      %v2649 = vld [vmem:[%s2648] sm:$0xf]
      %v2651 = vsel %vm952, %v2649, 0
      %2653 = vmatprep.subr.bf16.mxu0 0
      %2654 = vmatpush1.bf16.msra.mxu0 %v2651
      %2655 = vmatprep.subr.bf16.mxu0 0
      %2656 = vmatpush1.bf16.msra.mxu0 0
      %2657 = vmatprep.subr.bf16.mxu0 0
      %2658 = vmatpush1.bf16.msra.mxu0 0
      %2659 = vmatprep.subr.bf16.mxu0 0
      %2660 = vmatpush1.bf16.msra.mxu0 0
      %2661 = vmatprep.subr.bf16.mxu0 0
      %2662 = vmatpush1.bf16.msra.mxu0 0
      %2663 = vmatprep.subr.bf16.mxu0 0
      %2664 = vmatpush1.bf16.msra.mxu0 0
      %2665 = vmatprep.subr.bf16.mxu0 0
      %2666 = vmatpush1.bf16.msra.mxu0 0
      %2667 = vmatprep.subr.bf16.mxu0 0
      %2668 = vmatpush1.bf16.msra.mxu0 0
      %2669 = vmatprep.subr.bf16.mxu0 0
      %2670 = vmatpush1.bf16.msra.mxu0 0
      %2671 = vmatprep.subr.bf16.mxu0 0
      %2672 = vmatpush1.bf16.msra.mxu0 0
      %2673 = vmatprep.subr.bf16.mxu0 0
      %2674 = vmatpush1.bf16.msra.mxu0 0
      %2675 = vmatprep.subr.bf16.mxu0 0
      %2676 = vmatpush1.bf16.msra.mxu0 0
      %2677 = vmatprep.subr.bf16.mxu0 0
      %2678 = vmatpush1.bf16.msra.mxu0 0
      %2679 = vmatprep.subr.bf16.mxu0 0
      %2680 = vmatpush1.bf16.msra.mxu0 0
      %2681 = vmatprep.subr.bf16.mxu0 0
      %2682 = vmatpush1.bf16.msra.mxu0 0
      %2683 = vmatprep.subr.bf16.mxu0 0
      %2684 = vmatpush1.bf16.msra.mxu0 0
      %2685 = vmatprep.mubr.bf16.mxu0 0
      %2686 = vmatmul.mubr.bf16.gmra.mrb[0].mxu0 %v2519
      %v2687 = vpop.f32.mrb[0].mxu0
      %v2688 = vadd.f32 0.0, %v2687
      %v2689 = vpop.f32.mrb[0].mxu0
      %v2690 = vpop.f32.mrb[0].mxu0
      %v2691 = vpop.f32.mrb[0].mxu0
      %2692 = vdwg.mxu0
      %v2693 = vlaneseq
      %v2694 = vshrl.u32 %v2693, 7
      %v2695 = vsub.s32 0, %v2694
      %v2696 = vrot.slane %v2688, %v2695
      %v2697 = vmul.f32 %v901, %v2696
      %v2698 = vadd.f32 %v2643, %v2697
      %s2699 = scalar_lea.vmem %s39, 8
      %v2700 = vld [vmem:[%s2699] sm:$0xf]
      %v2702 = vsel %vm952, %v2700, 0
      %2704 = vmatprep.subr.bf16.mxu0 0
      %2705 = vmatpush1.bf16.msra.mxu0 %v2702
      %2706 = vmatprep.subr.bf16.mxu0 0
      %2707 = vmatpush1.bf16.msra.mxu0 0
      %2708 = vmatprep.subr.bf16.mxu0 0
      %2709 = vmatpush1.bf16.msra.mxu0 0
      %2710 = vmatprep.subr.bf16.mxu0 0
      %2711 = vmatpush1.bf16.msra.mxu0 0
      %2712 = vmatprep.subr.bf16.mxu0 0
      %2713 = vmatpush1.bf16.msra.mxu0 0
      %2714 = vmatprep.subr.bf16.mxu0 0
      %2715 = vmatpush1.bf16.msra.mxu0 0
      %2716 = vmatprep.subr.bf16.mxu0 0
      %2717 = vmatpush1.bf16.msra.mxu0 0
      %2718 = vmatprep.subr.bf16.mxu0 0
      %2719 = vmatpush1.bf16.msra.mxu0 0
      %2720 = vmatprep.subr.bf16.mxu0 0
      %2721 = vmatpush1.bf16.msra.mxu0 0
      %2722 = vmatprep.subr.bf16.mxu0 0
      %2723 = vmatpush1.bf16.msra.mxu0 0
      %2724 = vmatprep.subr.bf16.mxu0 0
      %2725 = vmatpush1.bf16.msra.mxu0 0
      %2726 = vmatprep.subr.bf16.mxu0 0
      %2727 = vmatpush1.bf16.msra.mxu0 0
      %2728 = vmatprep.subr.bf16.mxu0 0
      %2729 = vmatpush1.bf16.msra.mxu0 0
      %2730 = vmatprep.subr.bf16.mxu0 0
      %2731 = vmatpush1.bf16.msra.mxu0 0
      %2732 = vmatprep.subr.bf16.mxu0 0
      %2733 = vmatpush1.bf16.msra.mxu0 0
      %2734 = vmatprep.subr.bf16.mxu0 0
      %2735 = vmatpush1.bf16.msra.mxu0 0
      %2736 = vmatprep.mubr.bf16.mxu0 0
      %2737 = vmatmul.mubr.bf16.gmra.mrb[0].mxu0 %v2519
      %v2738 = vpop.f32.mrb[0].mxu0
      %v2739 = vadd.f32 0.0, %v2738
      %v2740 = vpop.f32.mrb[0].mxu0
      %v2741 = vpop.f32.mrb[0].mxu0
      %v2742 = vpop.f32.mrb[0].mxu0
      %2743 = vdwg.mxu0
      %v2744 = vlaneseq
      %v2745 = vshrl.u32 %v2744, 7
      %v2746 = vsub.s32 0, %v2745
      %v2747 = vrot.slane %v2739, %v2746
      %v2748 = vmul.f32 %v915, %v2747
      %v2749 = vadd.f32 %v2698, %v2748
      %v2750 = vld [vmem:[%s41] sm:$0x1]
      %v2752 = vlaneseq
      %v2753 = vshrl.u32 %v2752, 7
      %v2754 = vsub.s32 0, %v2753
      %v2755 = vrot.slane %v2750, %v2754
      %v2757 = vadd.f32 %v2749, %v2755
      %v2758 = vmax.f32 %v2757, 0.0
      %v2759 = vld [vmem:[%s43] sm:$0x1]
      %v2760 = vld [vmem:[%s45] sm:$0x1]
      %v2761 = vsel %vm1426, %v2758, 0.0
      %2762 = vadd.xlane.f32.xlu0 %v2761
      %v2763 = vpop.xlane.xlu0 %2762
      %v2764 = vrcp.pop 64.0
      %v2765 = vmul.f32 %v2763, %v2764
      %v2766 = vsub.f32 %v2758, %v2765
      %v2767 = vmul.f32 %v2766, %v2766
      %v2768 = vsel %vm1426, %v2767, 0.0
      %2769 = vadd.xlane.f32.xlu0 %v2768
      %v2770 = vpop.xlane.xlu0 %2769
      %v2771 = vmul.f32 %v2770, %v2764
      %v2772 = vadd.f32 %v2771, 0.0001
      %v2773 = vrsqrt.pop %v2772
      %v2774 = vmul.f32 %v2766, %v2773
      %v2776 = vlaneseq
      %v2777 = vshrl.u32 %v2776, 7
      %v2778 = vsub.s32 0, %v2777
      %v2779 = vrot.slane %v2759, %v2778
      %v2781 = vmul.f32 %v2774, %v2779
      %v2783 = vlaneseq
      %v2784 = vshrl.u32 %v2783, 7
      %v2785 = vsub.s32 0, %v2784
      %v2786 = vrot.slane %v2760, %v2785
      %v2788 = vadd.f32 %v2781, %v2786
      %v2789 = vmul.f32 %v2788, %v901
      %v2790 = vld [vmem:[%s47] sm:$0xf]
      %v2791 = vld [vmem:[%s47 + $0x4] sm:$0xf]
      %v2792 = vld [vmem:[%s47 + $0x8] sm:$0xf]
      %v2793 = vld [vmem:[%s47 + $0xc] sm:$0xf]
      %v2794 = vld [vmem:[%s47 + $0x10] sm:$0xf]
      %v2795 = vld [vmem:[%s47 + $0x14] sm:$0xf]
      %v2796 = vld [vmem:[%s47 + $0x18] sm:$0xf]
      %v2797 = vld [vmem:[%s47 + $0x1c] sm:$0xf]
      %v2798 = vld [vmem:[%s47 + $0x20] sm:$0xf]
      %v2799 = vld [vmem:[%s47 + $0x24] sm:$0xf]
      %v2800 = vld [vmem:[%s47 + $0x28] sm:$0xf]
      %v2801 = vld [vmem:[%s47 + $0x2c] sm:$0xf]
      %v2802 = vld [vmem:[%s47 + $0x30] sm:$0xf]
      %v2803 = vld [vmem:[%s47 + $0x34] sm:$0xf]
      %v2804 = vld [vmem:[%s47 + $0x38] sm:$0xf]
      %v2805 = vld [vmem:[%s47 + $0x3c] sm:$0xf]
      %v2806 = vld [vmem:[%s47 + $0x40] sm:$0xf]
      %v2807 = vld [vmem:[%s47 + $0x44] sm:$0xf]
      %v2808 = vld [vmem:[%s47 + $0x48] sm:$0xf]
      %v2809 = vld [vmem:[%s47 + $0x4c] sm:$0xf]
      %v2810 = vld [vmem:[%s47 + $0x50] sm:$0xf]
      %v2811 = vld [vmem:[%s47 + $0x54] sm:$0xf]
      %v2812 = vld [vmem:[%s47 + $0x58] sm:$0xf]
      %v2813 = vld [vmem:[%s47 + $0x5c] sm:$0xf]
      %v2814 = vld [vmem:[%s49] sm:$0x1]
      %v2815 = vrot.slane %v2789, 7
      %v2816 = vmul.f32 %v2815, %v904
      %v2817 = vrot.slane %v2789, 1
      %v2818 = vmul.f32 %v2817, %v907
      %2820 = vrot.lane.b32.xlu0 %v2789, 64
      %v2821 = vpop.permute.xlu0 %2820
      %v2823 = vsel %vm1426, %v2816, %v2821
      %v2824 = vpack.c.bf16 %v2823, %v2823
      %v2825 = vpack.c.bf16 %v2818, %v2818
      %v2827 = vlaneseq
      %v2828 = vshrl.u32 %v2827, 7
      %v2829 = vsub.s32 0, %v2828
      %v2830 = vrot.slane %v2814, %v2829
      %v2856 = vunpack.c.l.b16 %v2790
      %v2857 = vunpack.c.l.b16 %v2791
      %v2858 = vunpack.c.l.b16 %v2792
      %v2859 = vunpack.c.l.b16 %v2793
      %v2860 = vunpack.c.l.b16 %v2794
      %v2861 = vunpack.c.l.b16 %v2795
      %v2862 = vunpack.c.l.b16 %v2796
      %v2863 = vunpack.c.l.b16 %v2797
      %v2864 = vunpack.c.l.b16 %v2798
      %v2865 = vunpack.c.l.b16 %v2799
      %v2866 = vunpack.c.l.b16 %v2800
      %v2867 = vunpack.c.l.b16 %v2801
      %v2868 = vunpack.c.l.b16 %v2802
      %v2869 = vunpack.c.l.b16 %v2803
      %v2870 = vunpack.c.l.b16 %v2804
      %v2871 = vunpack.c.l.b16 %v2805
      %v2872 = vunpack.c.l.b16 %v2806
      %v2873 = vunpack.c.l.b16 %v2807
      %v2874 = vunpack.c.l.b16 %v2808
      %v2875 = vunpack.c.l.b16 %v2809
      %v2876 = vunpack.c.l.b16 %v2810
      %v2877 = vunpack.c.l.b16 %v2811
      %v2878 = vunpack.c.l.b16 %v2812
      %v2879 = vunpack.c.l.b16 %v2813
      %v2880 = vpack.c.b16 %v2857, %v2856
      %v2881 = vpack.c.b16 %v2859, %v2858
      %v2882 = vpack.c.b16 %v2861, %v2860
      %v2883 = vpack.c.b16 %v2863, %v2862
      %v2884 = vpack.c.b16 %v2865, %v2864
      %v2885 = vpack.c.b16 %v2867, %v2866
      %v2886 = vpack.c.b16 %v2869, %v2868
      %v2887 = vpack.c.b16 %v2871, %v2870
      %v2888 = vpack.c.b16 %v2873, %v2872
      %v2889 = vpack.c.b16 %v2875, %v2874
      %v2890 = vpack.c.b16 %v2877, %v2876
      %v2891 = vpack.c.b16 %v2879, %v2878
      %v2905 = vsel %vm1426, %v2825, 0
      %2907 = vmatprep.subr.bf16.mxu0 0
      %2908 = vmatpush1.bf16.msra.mxu0 %v2880
      %2909 = vmatprep.subr.bf16.mxu0 0
      %2910 = vmatpush1.bf16.msra.mxu0 %v2881
      %2911 = vmatprep.subr.bf16.mxu0 0
      %2912 = vmatpush1.bf16.msra.mxu0 %v2882
      %2913 = vmatprep.subr.bf16.mxu0 0
      %2914 = vmatpush1.bf16.msra.mxu0 %v2883
      %2915 = vmatprep.subr.bf16.mxu0 0
      %2916 = vmatpush1.bf16.msra.mxu0 %v2884
      %2917 = vmatprep.subr.bf16.mxu0 0
      %2918 = vmatpush1.bf16.msra.mxu0 %v2885
      %2919 = vmatprep.subr.bf16.mxu0 0
      %2920 = vmatpush1.bf16.msra.mxu0 %v2886
      %2921 = vmatprep.subr.bf16.mxu0 0
      %2922 = vmatpush1.bf16.msra.mxu0 %v2887
      %2923 = vmatprep.subr.bf16.mxu0 0
      %2924 = vmatpush1.bf16.msra.mxu0 %v2888
      %2925 = vmatprep.subr.bf16.mxu0 0
      %2926 = vmatpush1.bf16.msra.mxu0 %v2889
      %2927 = vmatprep.subr.bf16.mxu0 0
      %2928 = vmatpush1.bf16.msra.mxu0 %v2890
      %2929 = vmatprep.subr.bf16.mxu0 0
      %2930 = vmatpush1.bf16.msra.mxu0 %v2891
      %2931 = vmatprep.subr.bf16.mxu0 0
      %2932 = vmatpush1.bf16.msra.mxu0 0
      %2933 = vmatprep.subr.bf16.mxu0 0
      %2934 = vmatpush1.bf16.msra.mxu0 0
      %2935 = vmatprep.subr.bf16.mxu0 0
      %2936 = vmatpush1.bf16.msra.mxu0 0
      %2937 = vmatprep.subr.bf16.mxu0 0
      %2938 = vmatpush1.bf16.msra.mxu0 0
      %2939 = vmatprep.mubr.bf16.mxu0 %v2905
      %2940 = vmatmul.mubr.bf16.gmra.mrb[0].mxu0 %v2824
      %v2941 = vpop.f32.mrb[0].mxu0
      %v2942 = vadd.f32 %v2830, %v2941
      %v2943 = vpop.f32.mrb[0].mxu0
      %v2944 = vpop.f32.mrb[0].mxu0
      %v2945 = vpop.f32.mrb[0].mxu0
      %2946 = vdwg.mxu0
      %v2947 = vmax.f32 %v2942, 0.0
      %v2948 = vld [vmem:[%s51] sm:$0x1]
      %v2949 = vld [vmem:[%s53] sm:$0x1]
      %v2950 = vsel %vm1426, %v2947, 0.0
      %2951 = vadd.xlane.f32.xlu0 %v2950
      %v2952 = vpop.xlane.xlu0 %2951
      %v2953 = vmul.f32 %v2952, %v2764
      %v2954 = vsub.f32 %v2947, %v2953
      %v2955 = vmul.f32 %v2954, %v2954
      %v2956 = vsel %vm1426, %v2955, 0.0
      %2957 = vadd.xlane.f32.xlu0 %v2956
      %v2958 = vpop.xlane.xlu0 %2957
      %v2959 = vmul.f32 %v2958, %v2764
      %v2960 = vadd.f32 %v2959, 0.0001
      %v2961 = vrsqrt.pop %v2960
      %v2962 = vmul.f32 %v2954, %v2961
      %v2964 = vlaneseq
      %v2965 = vshrl.u32 %v2964, 7
      %v2966 = vsub.s32 0, %v2965
      %v2967 = vrot.slane %v2948, %v2966
      %v2969 = vmul.f32 %v2962, %v2967
      %v2971 = vlaneseq
      %v2972 = vshrl.u32 %v2971, 7
      %v2973 = vsub.s32 0, %v2972
      %v2974 = vrot.slane %v2949, %v2973
      %v2976 = vadd.f32 %v2969, %v2974
      %v2977 = vmul.f32 %v2976, %v901
      %v2978 = vld [vmem:[%s55] sm:$0x1]
      %v2980 = vlaneseq
      %v2981 = vshrl.u32 %v2980, 7
      %v2982 = vsub.s32 0, %v2981
      %v2983 = vrot.slane %v2978, %v2982
      %v2985 = vmul.f32 %v2977, %v2983
      %v2986 = vsel %vm1426, %v2985, 0.0
      %2987 = vadd.xlane.f32.xlu0 %v2986
      %v2988 = vpop.xlane.xlu0 %2987
      %v2989 = vld [vmem:[#allocation5] sm:$0x1]
      %v2991 = vlaneseq
      %v2992 = vshrl.u32 %v2991, 7
      %v2993 = vsub.s32 0, %v2992
      %v2994 = vrot.slane %v2989, %v2993
      %v2996 = vadd.f32 %v2988, %v2994
      %2998 = vrot.lane.b32.xlu0 %v2996, 32
      %v2999 = vpop.permute.xlu0 %2998
      %v3001 = vsel %vm1021, %v2487, %v2999
      %vm3002 = vcmask 269312
      %v3003 = vsel %vm3002, %v3001, 0.0
      %3004 = vst [vmem:[%s893] sm:$0xff] %v3003
      %p3005 = scmp.lt.s32.totalorder %s78, 1
      %s3006 = scalar_select %p3005, %s78, 1
      %s3007 = smul.addr %s3006, 8
      %s3008 = scalar_lea.vmem %s59, %s3007
      // Predicated region
      $region133: #{text_encoder_forward.1} parent=131 // pred_check
        %p3009 = pneg %p694
      $region134: #{text_encoder_forward.1} parent=131 // pred_check_branch
        %3011 = sbr.rel (%p3009) target = $region136
      $region135: #{text_encoder_forward.1} parent=131 // pred_region
        _
      $region136: #{text_encoder_forward.1} parent=131 // pred_fallthru
        _
    $region132: #{text_encoder_forward.1} parent=5 // pred_fallthru
      _
    %p3012 = scmp.le.s32.totalorder 2, %s73
    // Predicated region
    $region137: #{text_encoder_forward.1} parent=5 // pred_check
      %p3013 = pneg %p3012
    $region138: #{text_encoder_forward.1} parent=5 // pred_check_branch
      %3015 = sbr.rel (%p3013) target = $region140
    $region139: #{text_encoder_forward.1} parent=5 // pred_region
      %s3016 = ssub.s32 %s73, 2
      // Predicated region
      $region141: #{text_encoder_forward.1} parent=139 // pred_check
        %p3017 = pneg %p700
      $region142: #{text_encoder_forward.1} parent=139 // pred_check_branch
        %3019 = sbr.rel (%p3017) target = $region144
      $region143: #{text_encoder_forward.1} parent=139 // pred_region
        %p3020 = scmp.lt.s32.totalorder %s79, 1
        %s3021 = scalar_select %p3020, %s79, 1
        %s3022 = smul.addr %s3021, 8
        %s3023 = scalar_lea.vmem %s59, %s3022
      $region144: #{text_encoder_forward.1} parent=139 // pred_fallthru
        _
    $region140: #{text_encoder_forward.1} parent=5 // pred_fallthru
      _
  $region6: #{text_encoder_forward.1} parent=0 // loop_footer
    %s77 = sadd.s32 1, %s73
  $region7: #{text_encoder_forward.1} parent=0 // loop_footer_branch
    %72 = sbr.rel target = $region3
  $region8: #{text_encoder_forward.1} parent=0 // loop_exit
    _

</llo_original>
